<compile_context>
chip_gen: v7x
topology: tpu7x:2x2x1
jax: 0.10.0
libtpu: 0.0.40
codegen_flags: <defaults>
</compile_context>

<pallas_src>
import functools

import jax
import jax.numpy as jnp
from jax.experimental import pallas as pl
from jax.experimental.pallas import tpu as pltpu

BN_EPS = 1e-5


def _round_up(x, m):
    return (x + m - 1) // m * m


def _vmem_limit_bytes():
    """Generation-aware VMEM limit: ~16 MiB headroom on v7x (64 MiB physical VMEM),
    up to ~100 MiB on the 128 MiB parts (v5e / v6e)."""
    try:
        cap = int(pltpu.get_tpu_info().vmem_capacity_bytes)
    except Exception:                      # query unavailable -> safe everywhere
        return 48 * 1024 * 1024
    return int(min(max(cap - 16 * 1024 * 1024, 32 * 1024 * 1024), 100 * 1024 * 1024))


VMEM_LIMIT = _vmem_limit_bytes()


def _choose_row_tiling(M, block, min_tiles=2):
    """Pick (tile_m, padded_M).  Tiles are multiples of 8, padding waste is bounded by one
    tile (not one `block`), and we aim for >= min_tiles grid steps so both v7x TensorCores
    get work (harmless extra step overhead on v5e/v6e)."""
    Mp = _round_up(max(M, 1), 8)
    nt = -(-Mp // block)
    nt = max(nt, min_tiles)
    nt = max(1, min(nt, Mp // 8))
    tm = _round_up(-(-Mp // nt), 8)
    return tm, _round_up(Mp, tm)


# ----------------------------- fused affine -> matmul -> affine (K-tiled) -----------------------------

def _linear_bn_kernel(*refs, pre_affine, post_affine, pre_relu, post_relu):
    refs = list(refs)
    x_ref = refs.pop(0)
    w_ref = refs.pop(0)
    if pre_affine:
        ps_ref = refs.pop(0)
        pb_ref = refs.pop(0)
    if post_affine:
        qs_ref = refs.pop(0)
        qb_ref = refs.pop(0)
    o_ref = refs.pop(0)
    acc_ref = refs.pop(0)

    k = pl.program_id(1)

    @pl.when(k == 0)
    def _():
        acc_ref[...] = jnp.zeros_like(acc_ref)

    x = x_ref[...]                                    # bf16 tile (tm, tk)
    if pre_affine:
        xf = x.astype(jnp.float32) * ps_ref[...] + pb_ref[...]
        if pre_relu:
            xf = jnp.maximum(xf, 0.0)
        x = xf.astype(jnp.bfloat16)
    elif pre_relu:
        x = jnp.maximum(x, 0).astype(jnp.bfloat16)

    acc_ref[...] += jnp.dot(x, w_ref[...], preferred_element_type=jnp.float32)

    @pl.when(k == pl.num_programs(1) - 1)
    def _():
        y = acc_ref[...]
        if post_affine:
            y = y * qs_ref[...] + qb_ref[...]
        if post_relu:
            y = jnp.maximum(y, 0.0)
        o_ref[...] = y.astype(o_ref.dtype)


def linear_bn(x, w, *, pre_scale=None, pre_bias=None, post_scale=None, post_bias=None,
              pre_relu=False, post_relu=False, out_dtype=jnp.bfloat16,
              block_m=512, block_k=512):
    """Fused (optional affine -> optional relu -> bf16 matmul -> optional affine -> relu).
    Grid = (M_tiles, K_tiles); K is the last ("arbitrary") axis with an f32 VMEM accumulator,
    so the resident weight block is bounded by (block_k, N) regardless of K."""
    M, K = x.shape
    Kw, N = w.shape
    assert K == Kw

    xb = x.astype(jnp.bfloat16)
    wb = w.astype(jnp.bfloat16)

    tm, Mp = _choose_row_tiling(M, block_m, min_tiles=2)
    if K <= block_k:
        tk, Kp = K, K
    else:
        tk = block_k                                   # multiple of 256 -> MXU aligned
        Kp = _round_up(K, tk)

    pre_affine = pre_scale is not None
    post_affine = post_scale is not None

    if Mp != M or Kp != K:
        xb = jnp.pad(xb, ((0, Mp - M), (0, Kp - K)))
    if Kp != K:
        wb = jnp.pad(wb, ((0, Kp - K), (0, 0)))        # zero rows -> no contribution

    args = [xb, wb]
    in_specs = [
        pl.BlockSpec((tm, tk), lambda i, k: (i, k)),
        pl.BlockSpec((tk, N), lambda i, k: (k, 0)),
    ]
    if pre_affine:
        ps = pre_scale.reshape(1, K).astype(jnp.float32)
        pb = pre_bias.reshape(1, K).astype(jnp.float32)
        if Kp != K:
            ps = jnp.pad(ps, ((0, 0), (0, Kp - K)))
            pb = jnp.pad(pb, ((0, 0), (0, Kp - K)))
        args += [ps, pb]
        in_specs += [pl.BlockSpec((1, tk), lambda i, k: (0, k)),
                     pl.BlockSpec((1, tk), lambda i, k: (0, k))]
    if post_affine:
        args += [post_scale.reshape(1, N).astype(jnp.float32),
                 post_bias.reshape(1, N).astype(jnp.float32)]
        in_specs += [pl.BlockSpec((1, N), lambda i, k: (0, 0)),
                     pl.BlockSpec((1, N), lambda i, k: (0, 0))]

    kernel = functools.partial(_linear_bn_kernel, pre_affine=pre_affine,
                               post_affine=post_affine, pre_relu=pre_relu,
                               post_relu=post_relu)
    out_bytes = jnp.dtype(out_dtype).itemsize
    cost = pl.CostEstimate(flops=2 * Mp * Kp * N, transcendentals=0,
                           bytes_accessed=Mp * Kp * 2 + Kp * N * 2 + Mp * N * out_bytes)

    # NOTE(v5e): if the x-row DMA is exposed, pipeline_mode=pl.Buffered(3) on the x spec
    # can hide it; left at the default double-buffering here.
    out = pl.pallas_call(
        kernel,
        out_shape=jax.ShapeDtypeStruct((Mp, N), out_dtype),
        grid_spec=pltpu.PrefetchScalarGridSpec(
            num_scalar_prefetch=0,
            grid=(Mp // tm, Kp // tk),
            in_specs=in_specs,
            out_specs=pl.BlockSpec((tm, N), lambda i, k: (i, 0)),
            scratch_shapes=[pltpu.VMEM((tm, N), jnp.float32)]),
        compiler_params=pltpu.CompilerParams(
            dimension_semantics=("parallel", "arbitrary"),
            vmem_limit_bytes=VMEM_LIMIT),
        cost_estimate=cost,
    )(*args)
    return out[:M] if Mp != M else out


# ----------------------------- attention (grid over batch x heads) -----------------------------

def _attention_kernel(q_ref, k_ref, v_ref, bias_ref, o_ref, *, scale):
    q = q_ref[0, 0]                                    # (N, d) bf16, one head
    k = k_ref[0, 0]
    v = v_ref[0, 0]
    sim = jax.lax.dot_general(q, k, (((1,), (1,)), ((), ())),
                              preferred_element_type=jnp.float32) * scale
    sim = sim + bias_ref[0, 0].astype(jnp.float32)
    m = jnp.max(sim, axis=-1, keepdims=True)
    p = jnp.exp(sim - m)
    denom = jnp.sum(p, axis=-1, keepdims=True)
    attn = p * pl.reciprocal(denom, approx=True)
    out = jnp.dot(attn.astype(v.dtype), v, preferred_element_type=jnp.float32)
    o_ref[0, 0] = out.astype(o_ref.dtype)


def attention_pallas(q, k, v, bias, *, scale):
    # q, k, v: (B, heads, N, dim_head) bf16; bias: (B, heads, N, N) bf16
    # TODO(synk): for fmap >= 32 (N >= 1024) convert to flash-style KV tiling with online
    #             softmax scratch so the (N, N) f32 score tile never exceeds VMEM on v7x.
    B, heads, N, d = q.shape
    spec_qkv = pl.BlockSpec((1, 1, N, d), lambda b, h: (b, h, 0, 0))
    spec_bias = pl.BlockSpec((1, 1, N, N), lambda b, h: (b, h, 0, 0))
    cost = pl.CostEstimate(
        flops=4 * B * heads * N * N * d,
        transcendentals=B * heads * N * N,
        bytes_accessed=4 * B * heads * N * d * 2 + B * heads * N * N * 2)
    return pl.pallas_call(
        functools.partial(_attention_kernel, scale=scale),
        out_shape=jax.ShapeDtypeStruct((B, heads, N, d), jnp.bfloat16),
        grid=(B, heads),
        in_specs=[spec_qkv, spec_qkv, spec_qkv, spec_bias],
        out_specs=spec_qkv,
        compiler_params=pltpu.CompilerParams(dimension_semantics=("parallel", "parallel"),
                                             vmem_limit_bytes=VMEM_LIMIT),
        cost_estimate=cost,
    )(q, k, v, bias)


# ----------------------------- SE gate * x + residual + relu (streaming) -----------------------------

def _se_apply_kernel(x_ref, res_ref, g_ref, o_ref):
    g = g_ref[0]                                       # (1, C) f32 gate, precomputed
    y = x_ref[0].astype(jnp.float32) * g + res_ref[0].astype(jnp.float32)
    o_ref[0] = jnp.maximum(y, 0.0).astype(o_ref.dtype)


def se_residual_pallas(x, residual, gate, *, block_np=512):
    """out = relu(gate * x + residual), bf16 in / bf16 out, tiled over (batch, spatial)."""
    B, Np, C = x.shape
    xb = x.astype(jnp.bfloat16)
    rb = residual.astype(jnp.bfloat16)
    gf = gate.reshape(B, 1, C).astype(jnp.float32)

    tnp, Npp = _choose_row_tiling(Np, block_np, min_tiles=1)
    if Npp != Np:
        pad = ((0, 0), (0, Npp - Np), (0, 0))
        xb = jnp.pad(xb, pad)
        rb = jnp.pad(rb, pad)

    out = pl.pallas_call(
        _se_apply_kernel,
        out_shape=jax.ShapeDtypeStruct((B, Npp, C), jnp.bfloat16),
        grid=(B, Npp // tnp),
        in_specs=[
            pl.BlockSpec((1, tnp, C), lambda b, t: (b, t, 0)),
            pl.BlockSpec((1, tnp, C), lambda b, t: (b, t, 0)),
            pl.BlockSpec((1, 1, C), lambda b, t: (b, 0, 0)),
        ],
        out_specs=pl.BlockSpec((1, tnp, C), lambda b, t: (b, t, 0)),
        compiler_params=pltpu.CompilerParams(dimension_semantics=("parallel", "parallel"),
                                             vmem_limit_bytes=VMEM_LIMIT),
        cost_estimate=pl.CostEstimate(flops=2 * B * Npp * C, transcendentals=0,
                                      bytes_accessed=3 * B * Npp * C * 2 + B * C * 4),
    )(xb, rb, gf)
    return out[:, :Np] if Npp != Np else out


def se_gate(x, w1, b1, w2, b2):
    """sigmoid(fc2(relu(fc1(avgpool(x))))) computed once per batch in JAX — it is only
    (B, C)-sized, so re-running it per spatial tile inside a kernel is pure waste."""
    s = jnp.mean(x.astype(jnp.float32), axis=1)        # (B, C)  AdaptiveAvgPool2d(1)
    h = jnp.maximum(s @ w1.astype(jnp.float32) + b1.astype(jnp.float32), 0.0)
    return jax.nn.sigmoid(h @ w2.astype(jnp.float32) + b2.astype(jnp.float32))


# ----------------------------- JAX glue (rel-pos, im2col) -----------------------------

def relative_to_absolute(x):
    b, h, l, _ = x.shape
    x = jnp.concatenate([x, jnp.zeros((b, h, l, 1), x.dtype)], axis=3)
    flat_x = x.reshape(b, h, l * 2 * l)
    flat_x = jnp.concatenate([flat_x, jnp.zeros((b, h, l - 1), x.dtype)], axis=2)
    final = flat_x.reshape(b, h, l + 1, 2 * l - 1)
    return final[:, :, :l, l - 1:]


def relative_logits_1d(q, rel_k):
    # q: (b, heads, h, w, d), rel_k: (2w-1, d)
    b, heads, h, w, d = q.shape
    logits = jnp.einsum('bhxyd,rd->bhxyr', q, rel_k) * (d ** -0.5)
    logits = logits.reshape(b, heads * h, w, -1)
    logits = relative_to_absolute(logits)
    logits = logits.reshape(b, heads, h, w, w)
    logits = jnp.broadcast_to(logits[:, :, :, None, :, :], (b, heads, h, h, w, w))
    return logits


def rel_pos_bias(q, rel_h, rel_w, fmap):
    # q: (B, heads, N, d) with N = fmap*fmap (row-major x,y)
    # TODO(synk): the O(N^2) bias is still materialized in HBM (bf16, now tiled per (b,h)
    #             block); recomputing it inside the attention kernel from the (2*fmap-1, d)
    #             tables would remove that traffic but needs the relative_to_absolute
    #             reshuffle in-kernel.
    B, heads, N, d = q.shape
    q5 = q.astype(jnp.float32).reshape(B, heads, fmap, fmap, d)
    lw = relative_logits_1d(q5, rel_w)
    lw = jnp.transpose(lw, (0, 1, 2, 4, 3, 5)).reshape(B, heads, N, N)
    qt = jnp.transpose(q5, (0, 1, 3, 2, 4))
    lh = relative_logits_1d(qt, rel_h)
    lh = jnp.transpose(lh, (0, 1, 4, 2, 5, 3)).reshape(B, heads, N, N)
    return (lw + lh).astype(jnp.bfloat16)


def im2col_3x3_s2(x):
    # x: (B, H, W, C) -> (B, Ho, Wo, 9*C), 3x3 kernel, stride 2, padding 1
    # TODO(synk): this still writes a 9x-wide (bf16) patch tensor to HBM; an in-kernel
    #             strided DMA gather (or 9 accumulated matmuls over strided views) would
    #             avoid that round trip.
    B, H, W, C = x.shape
    xp = jnp.pad(x, ((0, 0), (1, 1), (1, 1), (0, 0)))
    Ho = (H + 2 - 3) // 2 + 1
    Wo = (W + 2 - 3) // 2 + 1
    cols = []
    for ky in range(3):
        for kx in range(3):
            cols.append(xp[:, ky::2, kx::2, :][:, :Ho, :Wo, :])
    return jnp.concatenate(cols, axis=-1)


def fold_bn(bn):
    # TODO(synk): BatchNorm folded in eval mode from stored running statistics;
    #             training-mode batch statistics are not reproduced.
    gamma, beta, mean, var = bn
    scale = gamma * jax.lax.rsqrt(var + BN_EPS)
    bias = beta - mean * scale
    return scale.astype(jnp.float32), bias.astype(jnp.float32)


# ----------------------------- BottleBlock / BottleStack -----------------------------

def bottle_block_forward(x, p, *, downsample, heads, dim_head):
    B, H, W, Cin = x.shape
    N = H * W
    out_ch = p['conv2_w'].shape[0]
    inner = heads * dim_head

    # ---- shortcut ----
    if p['shortcut_w'] is None:
        residual = x.astype(jnp.bfloat16)
    else:
        s_sc, b_sc = fold_bn(p['shortcut_bn'])
        wsc = p['shortcut_w']
        if wsc.shape[-1] == 3:
            patches = im2col_3x3_s2(x.astype(jnp.bfloat16))
            wmat = jnp.transpose(wsc, (2, 3, 1, 0)).reshape(9 * Cin, out_ch)
        else:
            patches = x.astype(jnp.bfloat16)
            wmat = wsc[:, :, 0, 0].T
        _, Ho, Wo, Kp = patches.shape
        residual = linear_bn(patches.reshape(B * Ho * Wo, Kp), wmat,
                             post_scale=s_sc, post_bias=b_sc,
                             out_dtype=jnp.bfloat16).reshape(B, Ho, Wo, out_ch)

    # ---- conv1 (1x1, no bias) + bn1 + relu ----
    s1, b1 = fold_bn(p['bn1'])
    w1 = p['conv1_w'][:, :, 0, 0].T
    h = linear_bn(x.reshape(B * N, Cin), w1, post_scale=s1, post_bias=b1,
                  post_relu=True, out_dtype=jnp.bfloat16)            # (B*N, attn_dim)

    # ---- attention (to_qkv 1x1 conv + relative-pos attention) ----
    wqkv = p['qkv_w'][:, :, 0, 0].T                                   # (attn_dim, 3*inner)
    qkv = linear_bn(h, wqkv, out_dtype=jnp.bfloat16)                  # plain matmul
    # channels are [q|k|v], each head-major (h d) -> (3, B, heads, N, dim_head)
    qkv = jnp.transpose(qkv.reshape(B, N, 3, heads, dim_head), (2, 0, 3, 1, 4))
    q, k, v = qkv[0], qkv[1], qkv[2]
    bias = rel_pos_bias(q, p['rel_h'], p['rel_w'], H)                 # (B, heads, N, N) bf16
    out = attention_pallas(q, k, v, bias, scale=dim_head ** -0.5)     # (B, heads, N, d) bf16
    # back to channel-last, head-major channels: b h (x y) d -> b (x y) (h d)
    out = jnp.transpose(out, (0, 2, 1, 3)).reshape(B, H, W, inner).astype(jnp.float32)

    # ---- AvgPool2d(2) if downsample ----
    if downsample:
        out = out.reshape(B, H // 2, 2, W // 2, 2, inner).mean(axis=(2, 4))
    Ho2, Wo2 = out.shape[1], out.shape[2]

    # ---- bn2 + relu + conv2 (1x1) + bn3 ----
    s2, b2 = fold_bn(p['bn2'])
    s3, b3 = fold_bn(p['bn3'])
    w2 = p['conv2_w'][:, :, 0, 0].T
    y = linear_bn(out.reshape(B * Ho2 * Wo2, inner), w2,
                  pre_scale=s2, pre_bias=b2, pre_relu=True,
                  post_scale=s3, post_bias=b3, out_dtype=jnp.bfloat16)
    y = y.reshape(B, Ho2 * Wo2, out_ch)

    # ---- SE gate * x + residual, then final ReLU ----
    w_se1 = p['se_w1'][:, :, 0, 0].T
    w_se2 = p['se_w2'][:, :, 0, 0].T
    gate = se_gate(y, w_se1, p['se_b1'], w_se2, p['se_b2'])           # (B, C) f32, once per batch
    res = residual.reshape(B, Ho2 * Wo2, out_ch)
    o = se_residual_pallas(y, res, gate)
    return o.reshape(B, Ho2, Wo2, out_ch)


def init_bn(key, n):
    k1, k2 = jax.random.split(key)
    gamma = 1.0 + 0.1 * jax.random.normal(k1, (n,), jnp.float32)
    beta = 0.1 * jax.random.normal(k2, (n,), jnp.float32)
    running_mean = jnp.zeros((n,), jnp.float32)
    running_var = jnp.ones((n,), jnp.float32)
    return gamma, beta, running_mean, running_var


def init_block_params(key, in_ch, out_ch, fmap, heads, dim_head, proj_factor,
                      se_reduction, downsample):
    attn_dim = out_ch // proj_factor
    inner = heads * dim_head
    assert inner == attn_dim, "BottleBlock requires heads*dim_head == out_channels//proj_factor"
    ks = jax.random.split(key, 14)
    p = {}
    if in_ch != out_ch or downsample:
        ksz = 3 if downsample else 1
        p['shortcut_w'] = 0.1 * jax.random.normal(ks[0], (out_ch, in_ch, ksz, ksz), jnp.float32)
        p['shortcut_bn'] = init_bn(ks[1], out_ch)
    else:
        p['shortcut_w'] = None
        p['shortcut_bn'] = None
    p['conv1_w'] = 0.1 * jax.random.normal(ks[2], (attn_dim, in_ch, 1, 1), jnp.float32)
    p['bn1'] = init_bn(ks[3], attn_dim)
    p['qkv_w'] = 0.1 * jax.random.normal(ks[4], (inner * 3, attn_dim, 1, 1), jnp.float32)
    p['rel_h'] = (dim_head ** -0.5) * jax.random.normal(ks[5], (fmap * 2 - 1, dim_head), jnp.float32)
    p['rel_w'] = (dim_head ** -0.5) * jax.random.normal(ks[6], (fmap * 2 - 1, dim_head), jnp.float32)
    p['bn2'] = init_bn(ks[7], attn_dim)
    p['conv2_w'] = 0.1 * jax.random.normal(ks[8], (out_ch, attn_dim, 1, 1), jnp.float32)
    # NOTE: PyTorch zero-inits the final BN gamma; we use random init so the attention
    # branch actually contributes (forward-pass semantics are identical, only init differs).
    p['bn3'] = init_bn(ks[9], out_ch)
    p['se_w1'] = 0.1 * jax.random.normal(ks[10], (out_ch // se_reduction, out_ch, 1, 1), jnp.float32)
    p['se_b1'] = 0.1 * jax.random.normal(ks[11], (out_ch // se_reduction,), jnp.float32)
    p['se_w2'] = 0.1 * jax.random.normal(ks[12], (out_ch, out_ch // se_reduction, 1, 1), jnp.float32)
    p['se_b2'] = 0.1 * jax.random.normal(ks[13], (out_ch,), jnp.float32)
    return p


def init_stack_params(key, *, in_channels, fmap_size, out_channels, proj_factor,
                      num_layers, heads, dim_head, downsample, se_reduction):
    keys = jax.random.split(key, num_layers)
    params = []
    for i in range(num_layers):
        is_first = i == 0
        layer_in = in_channels if is_first else out_channels
        layer_downsample = is_first and downsample
        layer_fmap = fmap_size // (2 if downsample and (not is_first) else 1)
        params.append(init_block_params(keys[i], layer_in, out_channels, layer_fmap,
                                        heads, dim_head, proj_factor, se_reduction,
                                        layer_downsample))
    return params


def bottle_stack_forward(x_nchw, params, *, in_channels, fmap_size, heads, dim_head, downsample):
    B, C, H, W = x_nchw.shape
    assert C == in_channels, "channels of feature map must match channels given at init"
    assert H == fmap_size and W == fmap_size, "feature map size must match fmap_size"
    x = jnp.transpose(x_nchw, (0, 2, 3, 1))        # NCHW -> NHWC
    for i, p in enumerate(params):
        layer_downsample = (i == 0) and downsample
        x = bottle_block_forward(x, p, downsample=layer_downsample,
                                 heads=heads, dim_head=dim_head)
    return jnp.transpose(x, (0, 3, 1, 2)).astype(jnp.float32)   # NHWC -> NCHW


if __name__ == "__main__":
    cfg = dict(in_channels=8, fmap_size=8, out_channels=64, proj_factor=4,
               num_layers=3, heads=2, dim_head=8, downsample=True, se_reduction=16)
    key = jax.random.PRNGKey(0)
    kx, kp = jax.random.split(key)
    x = jax.random.normal(kx, (2, cfg['in_channels'], cfg['fmap_size'], cfg['fmap_size']),
                          jnp.float32)
    params = init_stack_params(kp, **cfg)

    fwd = jax.jit(functools.partial(
        bottle_stack_forward,
        in_channels=cfg['in_channels'], fmap_size=cfg['fmap_size'],
        heads=cfg['heads'], dim_head=cfg['dim_head'], downsample=cfg['downsample']))

    out = fwd(x, params)
    jax.block_until_ready(out)
    expected = (2, cfg['out_channels'], cfg['fmap_size'] // 2, cfg['fmap_size'] // 2)
    assert out.shape == expected, (out.shape, expected)
    assert jnp.all(jnp.isfinite(out))
    print("KERNEL_OK")
</pallas_src>

<mosaic_0001>
module attributes {stable_mosaic.version = 11 : i64} {
  func.func @_linear_bn_kernel(%arg0: i32, %arg1: i32, %arg2: memref<64x16xbf16, #tpu.memory_space<vmem>>, %arg3: memref<16x48xbf16, #tpu.memory_space<vmem>>, %arg4: memref<64x48xbf16, #tpu.memory_space<vmem>>, %arg5: memref<64x48xf32, #tpu.memory_space<vmem>>) attributes {dimension_semantics = [#tpu.dimension_semantics<parallel>, #tpu.dimension_semantics<arbitrary>], iteration_bounds = array<i64: 2, 1>, scalar_prefetch = 0 : i64, scratch_operands = 1 : i64, tpu.core_type = #tpu.core_type<tc>, window_params = [{transform_indices = @transform_0, window_bounds = array<i64: 64, 16>}, {transform_indices = @transform_1, window_bounds = array<i64: 16, 48>}, {transform_indices = @transform_2, window_bounds = array<i64: 64, 48>}]} {
    %c0_i32 = arith.constant 0 : i32
    %0 = arith.cmpi eq, %arg1, %c0_i32 : i32
    %1 = arith.extui %0 : i1 to i32
    %c0_i32_0 = arith.constant 0 : i32
    %2 = arith.cmpi ne, %1, %c0_i32_0 : i32
    scf.if %2 {
      %cst_10 = arith.constant 0.000000e+00 : f32
      %12 = vector.broadcast %cst_10 : f32 to vector<64x48xf32>
      %c0_11 = arith.constant 0 : index
      %c0_12 = arith.constant 0 : index
      %13 = vector.load %arg5[%c0_11, %c0_12] : memref<64x48xf32, #tpu.memory_space<vmem>>, vector<64x48xf32>
      tpu.vector_store %arg5[%c0_11, %c0_12], %12 {strides = array<i32>} : memref<64x48xf32, #tpu.memory_space<vmem>>, vector<64x48xf32>,
    } else {
    }
    %c0 = arith.constant 0 : index
    %c0_1 = arith.constant 0 : index
    %3 = vector.load %arg2[%c0, %c0_1] : memref<64x16xbf16, #tpu.memory_space<vmem>>, vector<64x16xbf16>
    %c0_2 = arith.constant 0 : index
    %c0_3 = arith.constant 0 : index
    %4 = vector.load %arg5[%c0_2, %c0_3] : memref<64x48xf32, #tpu.memory_space<vmem>>, vector<64x48xf32>
    %c0_4 = arith.constant 0 : index
    %c0_5 = arith.constant 0 : index
    %5 = vector.load %arg3[%c0_4, %c0_5] : memref<16x48xbf16, #tpu.memory_space<vmem>>, vector<16x48xbf16>
    %cst = arith.constant dense<0.000000e+00> : vector<64x48xf32>
    %6 = tpu.matmul %3, %5, %cst {dimension_numbers = #tpu.dot_dimension_numbers<[1], [0], [0], [1], [0, 0, 1, 1], [], []>} : vector<64x16xbf16>, vector<16x48xbf16>, vector<64x48xf32> -> vector<64x48xf32>
    %7 = arith.addf %4, %6 : vector<64x48xf32>
    %c0_6 = arith.constant 0 : index
    %c0_7 = arith.constant 0 : index
    %8 = vector.load %arg5[%c0_6, %c0_7] : memref<64x48xf32, #tpu.memory_space<vmem>>, vector<64x48xf32>
    tpu.vector_store %arg5[%c0_6, %c0_7], %7 {strides = array<i32>} : memref<64x48xf32, #tpu.memory_space<vmem>>, vector<64x48xf32>,
    %c0_i32_8 = arith.constant 0 : i32
    %9 = arith.cmpi eq, %arg1, %c0_i32_8 : i32
    %10 = arith.extui %9 : i1 to i32
    %c0_i32_9 = arith.constant 0 : i32
    %11 = arith.cmpi ne, %10, %c0_i32_9 : i32
    scf.if %11 {
      %c0_10 = arith.constant 0 : index
      %c0_11 = arith.constant 0 : index
      %12 = vector.load %arg5[%c0_10, %c0_11] : memref<64x48xf32, #tpu.memory_space<vmem>>, vector<64x48xf32>
      %13 = arith.truncf %12 : vector<64x48xf32> to vector<64x48xbf16>
      %c0_12 = arith.constant 0 : index
      %c0_13 = arith.constant 0 : index
      %14 = vector.load %arg4[%c0_12, %c0_13] : memref<64x48xbf16, #tpu.memory_space<vmem>>, vector<64x48xbf16>
      tpu.vector_store %arg4[%c0_12, %c0_13], %13 {strides = array<i32>} : memref<64x48xbf16, #tpu.memory_space<vmem>>, vector<64x48xbf16>,
    } else {
    }
    return
  }
  func.func @transform_0(%arg0: i32, %arg1: i32) -> (i32, i32) {
    %c0_i32 = arith.constant 0 : i32
    return %arg0, %arg1 : i32, i32
  }
  func.func @transform_1(%arg0: i32, %arg1: i32) -> (i32, i32) {
    %c0_i32 = arith.constant 0 : i32
    %c0_i32_0 = arith.constant 0 : i32
    return %arg1, %c0_i32 : i32, i32
  }
  func.func @transform_2(%arg0: i32, %arg1: i32) -> (i32, i32) {
    %c0_i32 = arith.constant 0 : i32
    %c0_i32_0 = arith.constant 0 : i32
    return %arg0, %c0_i32 : i32, i32
  }
}

module attributes {stable_mosaic.version = 11 : i64} {
  func.func @_linear_bn_kernel(%arg0: i32, %arg1: i32, %arg2: memref<16x72xbf16, #tpu.memory_space<vmem>>, %arg3: memref<72x64xbf16, #tpu.memory_space<vmem>>, %arg4: memref<1x64xf32, #tpu.memory_space<vmem>>, %arg5: memref<1x64xf32, #tpu.memory_space<vmem>>, %arg6: memref<16x64xbf16, #tpu.memory_space<vmem>>, %arg7: memref<16x64xf32, #tpu.memory_space<vmem>>) attributes {dimension_semantics = [#tpu.dimension_semantics<parallel>, #tpu.dimension_semantics<arbitrary>], iteration_bounds = array<i64: 2, 1>, scalar_prefetch = 0 : i64, scratch_operands = 1 : i64, tpu.core_type = #tpu.core_type<tc>, window_params = [{transform_indices = @transform_0, window_bounds = array<i64: 16, 72>}, {transform_indices = @transform_1, window_bounds = array<i64: 72, 64>}, {pipeline_mode = #tpu.pipeline_mode<synchronous>, transform_indices = @transform_2, window_bounds = array<i64: 1, 64>}, {pipeline_mode = #tpu.pipeline_mode<synchronous>, transform_indices = @transform_3, window_bounds = array<i64: 1, 64>}, {transform_indices = @transform_4, window_bounds = array<i64: 16, 64>}]} {
    %c0_i32 = arith.constant 0 : i32
    %0 = arith.cmpi eq, %arg1, %c0_i32 : i32
    %1 = arith.extui %0 : i1 to i32
    %c0_i32_0 = arith.constant 0 : i32
    %2 = arith.cmpi ne, %1, %c0_i32_0 : i32
    scf.if %2 {
      %cst_10 = arith.constant 0.000000e+00 : f32
      %12 = vector.broadcast %cst_10 : f32 to vector<16x64xf32>
      %c0_11 = arith.constant 0 : index
      %c0_12 = arith.constant 0 : index
      %13 = vector.load %arg7[%c0_11, %c0_12] : memref<16x64xf32, #tpu.memory_space<vmem>>, vector<16x64xf32>
      tpu.vector_store %arg7[%c0_11, %c0_12], %12 {strides = array<i32>} : memref<16x64xf32, #tpu.memory_space<vmem>>, vector<16x64xf32>,
    } else {
    }
    %c0 = arith.constant 0 : index
    %c0_1 = arith.constant 0 : index
    %3 = vector.load %arg2[%c0, %c0_1] : memref<16x72xbf16, #tpu.memory_space<vmem>>, vector<16x72xbf16>
    %c0_2 = arith.constant 0 : index
    %c0_3 = arith.constant 0 : index
    %4 = vector.load %arg7[%c0_2, %c0_3] : memref<16x64xf32, #tpu.memory_space<vmem>>, vector<16x64xf32>
    %c0_4 = arith.constant 0 : index
    %c0_5 = arith.constant 0 : index
    %5 = vector.load %arg3[%c0_4, %c0_5] : memref<72x64xbf16, #tpu.memory_space<vmem>>, vector<72x64xbf16>
    %cst = arith.constant dense<0.000000e+00> : vector<16x64xf32>
    %6 = tpu.matmul %3, %5, %cst {dimension_numbers = #tpu.dot_dimension_numbers<[1], [0], [0], [1], [0, 0, 1, 1], [], []>} : vector<16x72xbf16>, vector<72x64xbf16>, vector<16x64xf32> -> vector<16x64xf32>
    %7 = arith.addf %4, %6 : vector<16x64xf32>
    %c0_6 = arith.constant 0 : index
    %c0_7 = arith.constant 0 : index
    %8 = vector.load %arg7[%c0_6, %c0_7] : memref<16x64xf32, #tpu.memory_space<vmem>>, vector<16x64xf32>
    tpu.vector_store %arg7[%c0_6, %c0_7], %7 {strides = array<i32>} : memref<16x64xf32, #tpu.memory_space<vmem>>, vector<16x64xf32>,
    %c0_i32_8 = arith.constant 0 : i32
    %9 = arith.cmpi eq, %arg1, %c0_i32_8 : i32
    %10 = arith.extui %9 : i1 to i32
    %c0_i32_9 = arith.constant 0 : i32
    %11 = arith.cmpi ne, %10, %c0_i32_9 : i32
    scf.if %11 {
      %c0_10 = arith.constant 0 : index
      %c0_11 = arith.constant 0 : index
      %12 = vector.load %arg7[%c0_10, %c0_11] : memref<16x64xf32, #tpu.memory_space<vmem>>, vector<16x64xf32>
      %c0_12 = arith.constant 0 : index
      %c0_13 = arith.constant 0 : index
      %13 = vector.load %arg4[%c0_12, %c0_13] : memref<1x64xf32, #tpu.memory_space<vmem>>, vector<1x64xf32>
      %14 = vector.broadcast %13 : vector<1x64xf32> to vector<16x64xf32>
      %15 = arith.mulf %12, %14 : vector<16x64xf32>
      %c0_14 = arith.constant 0 : index
      %c0_15 = arith.constant 0 : index
      %16 = vector.load %arg5[%c0_14, %c0_15] : memref<1x64xf32, #tpu.memory_space<vmem>>, vector<1x64xf32>
      %17 = vector.broadcast %16 : vector<1x64xf32> to vector<16x64xf32>
      %18 = arith.addf %15, %17 : vector<16x64xf32>
      %19 = arith.truncf %18 : vector<16x64xf32> to vector<16x64xbf16>
      %c0_16 = arith.constant 0 : index
      %c0_17 = arith.constant 0 : index
      %20 = vector.load %arg6[%c0_16, %c0_17] : memref<16x64xbf16, #tpu.memory_space<vmem>>, vector<16x64xbf16>
      tpu.vector_store %arg6[%c0_16, %c0_17], %19 {strides = array<i32>} : memref<16x64xbf16, #tpu.memory_space<vmem>>, vector<16x64xbf16>,
    } else {
    }
    return
  }
  func.func @transform_0(%arg0: i32, %arg1: i32) -> (i32, i32) {
    %c0_i32 = arith.constant 0 : i32
    return %arg0, %arg1 : i32, i32
  }
  func.func @transform_1(%arg0: i32, %arg1: i32) -> (i32, i32) {
    %c0_i32 = arith.constant 0 : i32
    %c0_i32_0 = arith.constant 0 : i32
    return %arg1, %c0_i32 : i32, i32
  }
  func.func @transform_2(%arg0: i32, %arg1: i32) -> (i32, i32) {
    %c0_i32 = arith.constant 0 : i32
    %c0_i32_0 = arith.constant 0 : i32
    %c0_i32_1 = arith.constant 0 : i32
    return %c0_i32, %c0_i32_0 : i32, i32
  }
  func.func @transform_3(%arg0: i32, %arg1: i32) -> (i32, i32) {
    %c0_i32 = arith.constant 0 : i32
    %c0_i32_0 = arith.constant 0 : i32
    %c0_i32_1 = arith.constant 0 : i32
    return %c0_i32, %c0_i32_0 : i32, i32
  }
  func.func @transform_4(%arg0: i32, %arg1: i32) -> (i32, i32) {
    %c0_i32 = arith.constant 0 : i32
    %c0_i32_0 = arith.constant 0 : i32
    return %arg0, %c0_i32 : i32, i32
  }
}

module attributes {stable_mosaic.version = 11 : i64} {
  func.func @_linear_bn_kernel(%arg0: i32, %arg1: i32, %arg2: memref<64x8xbf16, #tpu.memory_space<vmem>>, %arg3: memref<8x16xbf16, #tpu.memory_space<vmem>>, %arg4: memref<1x16xf32, #tpu.memory_space<vmem>>, %arg5: memref<1x16xf32, #tpu.memory_space<vmem>>, %arg6: memref<64x16xbf16, #tpu.memory_space<vmem>>, %arg7: memref<64x16xf32, #tpu.memory_space<vmem>>) attributes {dimension_semantics = [#tpu.dimension_semantics<parallel>, #tpu.dimension_semantics<arbitrary>], iteration_bounds = array<i64: 2, 1>, scalar_prefetch = 0 : i64, scratch_operands = 1 : i64, tpu.core_type = #tpu.core_type<tc>, window_params = [{transform_indices = @transform_0, window_bounds = array<i64: 64, 8>}, {transform_indices = @transform_1, window_bounds = array<i64: 8, 16>}, {pipeline_mode = #tpu.pipeline_mode<synchronous>, transform_indices = @transform_2, window_bounds = array<i64: 1, 16>}, {pipeline_mode = #tpu.pipeline_mode<synchronous>, transform_indices = @transform_3, window_bounds = array<i64: 1, 16>}, {transform_indices = @transform_4, window_bounds = array<i64: 64, 16>}]} {
    %c0_i32 = arith.constant 0 : i32
    %0 = arith.cmpi eq, %arg1, %c0_i32 : i32
    %1 = arith.extui %0 : i1 to i32
    %c0_i32_0 = arith.constant 0 : i32
    %2 = arith.cmpi ne, %1, %c0_i32_0 : i32
    scf.if %2 {
      %cst_10 = arith.constant 0.000000e+00 : f32
      %12 = vector.broadcast %cst_10 : f32 to vector<64x16xf32>
      %c0_11 = arith.constant 0 : index
      %c0_12 = arith.constant 0 : index
      %13 = vector.load %arg7[%c0_11, %c0_12] : memref<64x16xf32, #tpu.memory_space<vmem>>, vector<64x16xf32>
      tpu.vector_store %arg7[%c0_11, %c0_12], %12 {strides = array<i32>} : memref<64x16xf32, #tpu.memory_space<vmem>>, vector<64x16xf32>,
    } else {
    }
    %c0 = arith.constant 0 : index
    %c0_1 = arith.constant 0 : index
    %3 = vector.load %arg2[%c0, %c0_1] : memref<64x8xbf16, #tpu.memory_space<vmem>>, vector<64x8xbf16>
    %c0_2 = arith.constant 0 : index
    %c0_3 = arith.constant 0 : index
    %4 = vector.load %arg7[%c0_2, %c0_3] : memref<64x16xf32, #tpu.memory_space<vmem>>, vector<64x16xf32>
    %c0_4 = arith.constant 0 : index
    %c0_5 = arith.constant 0 : index
    %5 = vector.load %arg3[%c0_4, %c0_5] : memref<8x16xbf16, #tpu.memory_space<vmem>>, vector<8x16xbf16>
    %cst = arith.constant dense<0.000000e+00> : vector<64x16xf32>
    %6 = tpu.matmul %3, %5, %cst {dimension_numbers = #tpu.dot_dimension_numbers<[1], [0], [0], [1], [0, 0, 1, 1], [], []>} : vector<64x8xbf16>, vector<8x16xbf16>, vector<64x16xf32> -> vector<64x16xf32>
    %7 = arith.addf %4, %6 : vector<64x16xf32>
    %c0_6 = arith.constant 0 : index
    %c0_7 = arith.constant 0 : index
    %8 = vector.load %arg7[%c0_6, %c0_7] : memref<64x16xf32, #tpu.memory_space<vmem>>, vector<64x16xf32>
    tpu.vector_store %arg7[%c0_6, %c0_7], %7 {strides = array<i32>} : memref<64x16xf32, #tpu.memory_space<vmem>>, vector<64x16xf32>,
    %c0_i32_8 = arith.constant 0 : i32
    %9 = arith.cmpi eq, %arg1, %c0_i32_8 : i32
    %10 = arith.extui %9 : i1 to i32
    %c0_i32_9 = arith.constant 0 : i32
    %11 = arith.cmpi ne, %10, %c0_i32_9 : i32
    scf.if %11 {
      %c0_10 = arith.constant 0 : index
      %c0_11 = arith.constant 0 : index
      %12 = vector.load %arg7[%c0_10, %c0_11] : memref<64x16xf32, #tpu.memory_space<vmem>>, vector<64x16xf32>
      %c0_12 = arith.constant 0 : index
      %c0_13 = arith.constant 0 : index
      %13 = vector.load %arg4[%c0_12, %c0_13] : memref<1x16xf32, #tpu.memory_space<vmem>>, vector<1x16xf32>
      %14 = vector.broadcast %13 : vector<1x16xf32> to vector<64x16xf32>
      %15 = arith.mulf %12, %14 : vector<64x16xf32>
      %c0_14 = arith.constant 0 : index
      %c0_15 = arith.constant 0 : index
      %16 = vector.load %arg5[%c0_14, %c0_15] : memref<1x16xf32, #tpu.memory_space<vmem>>, vector<1x16xf32>
      %17 = vector.broadcast %16 : vector<1x16xf32> to vector<64x16xf32>
      %18 = arith.addf %15, %17 : vector<64x16xf32>
      %cst_16 = arith.constant 0.000000e+00 : f32
      %19 = vector.broadcast %cst_16 : f32 to vector<64x16xf32>
      %20 = arith.maximumf %18, %19 : vector<64x16xf32>
      %21 = arith.truncf %20 : vector<64x16xf32> to vector<64x16xbf16>
      %c0_17 = arith.constant 0 : index
      %c0_18 = arith.constant 0 : index
      %22 = vector.load %arg6[%c0_17, %c0_18] : memref<64x16xbf16, #tpu.memory_space<vmem>>, vector<64x16xbf16>
      tpu.vector_store %arg6[%c0_17, %c0_18], %21 {strides = array<i32>} : memref<64x16xbf16, #tpu.memory_space<vmem>>, vector<64x16xbf16>,
    } else {
    }
    return
  }
  func.func @transform_0(%arg0: i32, %arg1: i32) -> (i32, i32) {
    %c0_i32 = arith.constant 0 : i32
    return %arg0, %arg1 : i32, i32
  }
  func.func @transform_1(%arg0: i32, %arg1: i32) -> (i32, i32) {
    %c0_i32 = arith.constant 0 : i32
    %c0_i32_0 = arith.constant 0 : i32
    return %arg1, %c0_i32 : i32, i32
  }
  func.func @transform_2(%arg0: i32, %arg1: i32) -> (i32, i32) {
    %c0_i32 = arith.constant 0 : i32
    %c0_i32_0 = arith.constant 0 : i32
    %c0_i32_1 = arith.constant 0 : i32
    return %c0_i32, %c0_i32_0 : i32, i32
  }
  func.func @transform_3(%arg0: i32, %arg1: i32) -> (i32, i32) {
    %c0_i32 = arith.constant 0 : i32
    %c0_i32_0 = arith.constant 0 : i32
    %c0_i32_1 = arith.constant 0 : i32
    return %c0_i32, %c0_i32_0 : i32, i32
  }
  func.func @transform_4(%arg0: i32, %arg1: i32) -> (i32, i32) {
    %c0_i32 = arith.constant 0 : i32
    %c0_i32_0 = arith.constant 0 : i32
    return %arg0, %c0_i32 : i32, i32
  }
}

module attributes {stable_mosaic.version = 11 : i64} {
  func.func @_attention_kernel(%arg0: i32, %arg1: i32, %arg2: memref<1x1x64x8xbf16, #tpu.memory_space<vmem>>, %arg3: memref<1x1x64x8xbf16, #tpu.memory_space<vmem>>, %arg4: memref<1x1x64x8xbf16, #tpu.memory_space<vmem>>, %arg5: memref<1x1x64x64xbf16, #tpu.memory_space<vmem>>, %arg6: memref<1x1x64x8xbf16, #tpu.memory_space<vmem>>) attributes {dimension_semantics = [#tpu.dimension_semantics<parallel>, #tpu.dimension_semantics<parallel>], iteration_bounds = array<i64: 2, 2>, scalar_prefetch = 0 : i64, scratch_operands = 0 : i64, tpu.core_type = #tpu.core_type<tc>, window_params = [{transform_indices = @transform_0, window_bounds = array<i64: 1, 1, 64, 8>}, {transform_indices = @transform_1, window_bounds = array<i64: 1, 1, 64, 8>}, {transform_indices = @transform_2, window_bounds = array<i64: 1, 1, 64, 8>}, {transform_indices = @transform_3, window_bounds = array<i64: 1, 1, 64, 64>}, {transform_indices = @transform_4, window_bounds = array<i64: 1, 1, 64, 8>}]} {
    %c0 = arith.constant 0 : index
    %c0_0 = arith.constant 0 : index
    %c0_1 = arith.constant 0 : index
    %c0_2 = arith.constant 0 : index
    %0 = vector.load %arg2[%c0, %c0_0, %c0_1, %c0_2] : memref<1x1x64x8xbf16, #tpu.memory_space<vmem>>, vector<1x1x64x8xbf16>
    %1 = vector.shape_cast %0 : vector<1x1x64x8xbf16> to vector<64x8xbf16>
    %c0_3 = arith.constant 0 : index
    %c0_4 = arith.constant 0 : index
    %c0_5 = arith.constant 0 : index
    %c0_6 = arith.constant 0 : index
    %2 = vector.load %arg3[%c0_3, %c0_4, %c0_5, %c0_6] : memref<1x1x64x8xbf16, #tpu.memory_space<vmem>>, vector<1x1x64x8xbf16>
    %3 = vector.shape_cast %2 : vector<1x1x64x8xbf16> to vector<64x8xbf16>
    %c0_7 = arith.constant 0 : index
    %c0_8 = arith.constant 0 : index
    %c0_9 = arith.constant 0 : index
    %c0_10 = arith.constant 0 : index
    %4 = vector.load %arg4[%c0_7, %c0_8, %c0_9, %c0_10] : memref<1x1x64x8xbf16, #tpu.memory_space<vmem>>, vector<1x1x64x8xbf16>
    %5 = vector.shape_cast %4 : vector<1x1x64x8xbf16> to vector<64x8xbf16>
    %cst = arith.constant dense<0.000000e+00> : vector<64x64xf32>
    %6 = tpu.matmul %1, %3, %cst {dimension_numbers = #tpu.dot_dimension_numbers<[1], [1], [0], [0], [0, 0, 1, 0], [], []>} : vector<64x8xbf16>, vector<64x8xbf16>, vector<64x64xf32> -> vector<64x64xf32>
    %cst_11 = arith.constant 0.353553385 : f32
    %7 = vector.broadcast %cst_11 : f32 to vector<64x64xf32>
    %8 = arith.mulf %6, %7 : vector<64x64xf32>
    %c0_12 = arith.constant 0 : index
    %c0_13 = arith.constant 0 : index
    %c0_14 = arith.constant 0 : index
    %c0_15 = arith.constant 0 : index
    %9 = vector.load %arg5[%c0_12, %c0_13, %c0_14, %c0_15] : memref<1x1x64x64xbf16, #tpu.memory_space<vmem>>, vector<1x1x64x64xbf16>
    %10 = vector.shape_cast %9 : vector<1x1x64x64xbf16> to vector<64x64xbf16>
    %11 = arith.extf %10 : vector<64x64xbf16> to vector<64x64xf32>
    %12 = arith.addf %8, %11 : vector<64x64xf32>
    %cst_16 = arith.constant dense<0xFF800000> : vector<64xf32>
    %13 = vector.multi_reduction <maximumf>, %12, %cst_16 [1] : vector<64x64xf32> to vector<64xf32>
    %14 = vector.shape_cast %13 : vector<64xf32> to vector<64x1xf32>
    %15 = vector.broadcast %14 : vector<64x1xf32> to vector<64x64xf32>
    %16 = arith.subf %12, %15 : vector<64x64xf32>
    %17 = math.exp %16 : vector<64x64xf32>
    %cst_17 = arith.constant dense<0.000000e+00> : vector<64xf32>
    %18 = vector.multi_reduction <add>, %17, %cst_17 [1] : vector<64x64xf32> to vector<64xf32>
    %19 = vector.shape_cast %18 : vector<64xf32> to vector<64x1xf32>
    %20 = tpu.reciprocal %19 {approx = true} : vector<64x1xf32> -> vector<64x1xf32>
    %21 = vector.broadcast %20 : vector<64x1xf32> to vector<64x64xf32>
    %22 = arith.mulf %17, %21 : vector<64x64xf32>
    %23 = arith.truncf %22 : vector<64x64xf32> to vector<64x64xbf16>
    %cst_18 = arith.constant dense<0.000000e+00> : vector<64x8xf32>
    %24 = tpu.matmul %23, %5, %cst_18 {dimension_numbers = #tpu.dot_dimension_numbers<[1], [0], [0], [1], [0, 0, 1, 1], [], []>} : vector<64x64xbf16>, vector<64x8xbf16>, vector<64x8xf32> -> vector<64x8xf32>
    %25 = arith.truncf %24 : vector<64x8xf32> to vector<64x8xbf16>
    %c0_19 = arith.constant 0 : index
    %c0_20 = arith.constant 0 : index
    %c0_21 = arith.constant 0 : index
    %c0_22 = arith.constant 0 : index
    %26 = vector.load %arg6[%c0_19, %c0_20, %c0_21, %c0_22] : memref<1x1x64x8xbf16, #tpu.memory_space<vmem>>, vector<1x1x64x8xbf16>
    %27 = vector.shape_cast %26 : vector<1x1x64x8xbf16> to vector<64x8xbf16>
    %28 = vector.shape_cast %25 : vector<64x8xbf16> to vector<1x1x64x8xbf16>
    tpu.vector_store %arg6[%c0_19, %c0_20, %c0_21, %c0_22], %28 {strides = array<i32>} : memref<1x1x64x8xbf16, #tpu.memory_space<vmem>>, vector<1x1x64x8xbf16>,
    return
  }
  func.func @transform_0(%arg0: i32, %arg1: i32) -> (i32, i32, i32, i32) {
    %c0_i32 = arith.constant 0 : i32
    %c0_i32_0 = arith.constant 0 : i32
    %c0_i32_1 = arith.constant 0 : i32
    return %arg0, %arg1, %c0_i32, %c0_i32_0 : i32, i32, i32, i32
  }
  func.func @transform_1(%arg0: i32, %arg1: i32) -> (i32, i32, i32, i32) {
    %c0_i32 = arith.constant 0 : i32
    %c0_i32_0 = arith.constant 0 : i32
    %c0_i32_1 = arith.constant 0 : i32
    return %arg0, %arg1, %c0_i32, %c0_i32_0 : i32, i32, i32, i32
  }
  func.func @transform_2(%arg0: i32, %arg1: i32) -> (i32, i32, i32, i32) {
    %c0_i32 = arith.constant 0 : i32
    %c0_i32_0 = arith.constant 0 : i32
    %c0_i32_1 = arith.constant 0 : i32
    return %arg0, %arg1, %c0_i32, %c0_i32_0 : i32, i32, i32, i32
  }
  func.func @transform_3(%arg0: i32, %arg1: i32) -> (i32, i32, i32, i32) {
    %c0_i32 = arith.constant 0 : i32
    %c0_i32_0 = arith.constant 0 : i32
    %c0_i32_1 = arith.constant 0 : i32
    return %arg0, %arg1, %c0_i32, %c0_i32_0 : i32, i32, i32, i32
  }
  func.func @transform_4(%arg0: i32, %arg1: i32) -> (i32, i32, i32, i32) {
    %c0_i32 = arith.constant 0 : i32
    %c0_i32_0 = arith.constant 0 : i32
    %c0_i32_1 = arith.constant 0 : i32
    return %arg0, %arg1, %c0_i32, %c0_i32_0 : i32, i32, i32, i32
  }
}

module attributes {stable_mosaic.version = 11 : i64} {
  func.func @_linear_bn_kernel(%arg0: i32, %arg1: i32, %arg2: memref<16x16xbf16, #tpu.memory_space<vmem>>, %arg3: memref<16x64xbf16, #tpu.memory_space<vmem>>, %arg4: memref<1x16xf32, #tpu.memory_space<vmem>>, %arg5: memref<1x16xf32, #tpu.memory_space<vmem>>, %arg6: memref<1x64xf32, #tpu.memory_space<vmem>>, %arg7: memref<1x64xf32, #tpu.memory_space<vmem>>, %arg8: memref<16x64xbf16, #tpu.memory_space<vmem>>, %arg9: memref<16x64xf32, #tpu.memory_space<vmem>>) attributes {dimension_semantics = [#tpu.dimension_semantics<parallel>, #tpu.dimension_semantics<arbitrary>], iteration_bounds = array<i64: 2, 1>, scalar_prefetch = 0 : i64, scratch_operands = 1 : i64, tpu.core_type = #tpu.core_type<tc>, window_params = [{transform_indices = @transform_0, window_bounds = array<i64: 16, 16>}, {transform_indices = @transform_1, window_bounds = array<i64: 16, 64>}, {transform_indices = @transform_2, window_bounds = array<i64: 1, 16>}, {transform_indices = @transform_3, window_bounds = array<i64: 1, 16>}, {pipeline_mode = #tpu.pipeline_mode<synchronous>, transform_indices = @transform_4, window_bounds = array<i64: 1, 64>}, {pipeline_mode = #tpu.pipeline_mode<synchronous>, transform_indices = @transform_5, window_bounds = array<i64: 1, 64>}, {transform_indices = @transform_6, window_bounds = array<i64: 16, 64>}]} {
    %c0_i32 = arith.constant 0 : i32
    %0 = arith.cmpi eq, %arg1, %c0_i32 : i32
    %1 = arith.extui %0 : i1 to i32
    %c0_i32_0 = arith.constant 0 : i32
    %2 = arith.cmpi ne, %1, %c0_i32_0 : i32
    scf.if %2 {
      %cst_15 = arith.constant 0.000000e+00 : f32
      %22 = vector.broadcast %cst_15 : f32 to vector<16x64xf32>
      %c0_16 = arith.constant 0 : index
      %c0_17 = arith.constant 0 : index
      %23 = vector.load %arg9[%c0_16, %c0_17] : memref<16x64xf32, #tpu.memory_space<vmem>>, vector<16x64xf32>
      tpu.vector_store %arg9[%c0_16, %c0_17], %22 {strides = array<i32>} : memref<16x64xf32, #tpu.memory_space<vmem>>, vector<16x64xf32>,
    } else {
    }
    %c0 = arith.constant 0 : index
    %c0_1 = arith.constant 0 : index
    %3 = vector.load %arg2[%c0, %c0_1] : memref<16x16xbf16, #tpu.memory_space<vmem>>, vector<16x16xbf16>
    %4 = arith.extf %3 : vector<16x16xbf16> to vector<16x16xf32>
    %c0_2 = arith.constant 0 : index
    %c0_3 = arith.constant 0 : index
    %5 = vector.load %arg4[%c0_2, %c0_3] : memref<1x16xf32, #tpu.memory_space<vmem>>, vector<1x16xf32>
    %6 = vector.broadcast %5 : vector<1x16xf32> to vector<16x16xf32>
    %7 = arith.mulf %4, %6 : vector<16x16xf32>
    %c0_4 = arith.constant 0 : index
    %c0_5 = arith.constant 0 : index
    %8 = vector.load %arg5[%c0_4, %c0_5] : memref<1x16xf32, #tpu.memory_space<vmem>>, vector<1x16xf32>
    %9 = vector.broadcast %8 : vector<1x16xf32> to vector<16x16xf32>
    %10 = arith.addf %7, %9 : vector<16x16xf32>
    %cst = arith.constant 0.000000e+00 : f32
    %11 = vector.broadcast %cst : f32 to vector<16x16xf32>
    %12 = arith.maximumf %10, %11 : vector<16x16xf32>
    %13 = arith.truncf %12 : vector<16x16xf32> to vector<16x16xbf16>
    %c0_6 = arith.constant 0 : index
    %c0_7 = arith.constant 0 : index
    %14 = vector.load %arg9[%c0_6, %c0_7] : memref<16x64xf32, #tpu.memory_space<vmem>>, vector<16x64xf32>
    %c0_8 = arith.constant 0 : index
    %c0_9 = arith.constant 0 : index
    %15 = vector.load %arg3[%c0_8, %c0_9] : memref<16x64xbf16, #tpu.memory_space<vmem>>, vector<16x64xbf16>
    %cst_10 = arith.constant dense<0.000000e+00> : vector<16x64xf32>
    %16 = tpu.matmul %13, %15, %cst_10 {dimension_numbers = #tpu.dot_dimension_numbers<[1], [0], [0], [1], [0, 0, 1, 1], [], []>} : vector<16x16xbf16>, vector<16x64xbf16>, vector<16x64xf32> -> vector<16x64xf32>
    %17 = arith.addf %14, %16 : vector<16x64xf32>
    %c0_11 = arith.constant 0 : index
    %c0_12 = arith.constant 0 : index
    %18 = vector.load %arg9[%c0_11, %c0_12] : memref<16x64xf32, #tpu.memory_space<vmem>>, vector<16x64xf32>
    tpu.vector_store %arg9[%c0_11, %c0_12], %17 {strides = array<i32>} : memref<16x64xf32, #tpu.memory_space<vmem>>, vector<16x64xf32>,
    %c0_i32_13 = arith.constant 0 : i32
    %19 = arith.cmpi eq, %arg1, %c0_i32_13 : i32
    %20 = arith.extui %19 : i1 to i32
    %c0_i32_14 = arith.constant 0 : i32
    %21 = arith.cmpi ne, %20, %c0_i32_14 : i32
    scf.if %21 {
      %c0_15 = arith.constant 0 : index
      %c0_16 = arith.constant 0 : index
      %22 = vector.load %arg9[%c0_15, %c0_16] : memref<16x64xf32, #tpu.memory_space<vmem>>, vector<16x64xf32>
      %c0_17 = arith.constant 0 : index
      %c0_18 = arith.constant 0 : index
      %23 = vector.load %arg6[%c0_17, %c0_18] : memref<1x64xf32, #tpu.memory_space<vmem>>, vector<1x64xf32>
      %24 = vector.broadcast %23 : vector<1x64xf32> to vector<16x64xf32>
      %25 = arith.mulf %22, %24 : vector<16x64xf32>
      %c0_19 = arith.constant 0 : index
      %c0_20 = arith.constant 0 : index
      %26 = vector.load %arg7[%c0_19, %c0_20] : memref<1x64xf32, #tpu.memory_space<vmem>>, vector<1x64xf32>
      %27 = vector.broadcast %26 : vector<1x64xf32> to vector<16x64xf32>
      %28 = arith.addf %25, %27 : vector<16x64xf32>
      %29 = arith.truncf %28 : vector<16x64xf32> to vector<16x64xbf16>
      %c0_21 = arith.constant 0 : index
      %c0_22 = arith.constant 0 : index
      %30 = vector.load %arg8[%c0_21, %c0_22] : memref<16x64xbf16, #tpu.memory_space<vmem>>, vector<16x64xbf16>
      tpu.vector_store %arg8[%c0_21, %c0_22], %29 {strides = array<i32>} : memref<16x64xbf16, #tpu.memory_space<vmem>>, vector<16x64xbf16>,
    } else {
    }
    return
  }
  func.func @transform_0(%arg0: i32, %arg1: i32) -> (i32, i32) {
    %c0_i32 = arith.constant 0 : i32
    return %arg0, %arg1 : i32, i32
  }
  func.func @transform_1(%arg0: i32, %arg1: i32) -> (i32, i32) {
    %c0_i32 = arith.constant 0 : i32
    %c0_i32_0 = arith.constant 0 : i32
    return %arg1, %c0_i32 : i32, i32
  }
  func.func @transform_2(%arg0: i32, %arg1: i32) -> (i32, i32) {
    %c0_i32 = arith.constant 0 : i32
    %c0_i32_0 = arith.constant 0 : i32
    return %c0_i32, %arg1 : i32, i32
  }
  func.func @transform_3(%arg0: i32, %arg1: i32) -> (i32, i32) {
    %c0_i32 = arith.constant 0 : i32
    %c0_i32_0 = arith.constant 0 : i32
    return %c0_i32, %arg1 : i32, i32
  }
  func.func @transform_4(%arg0: i32, %arg1: i32) -> (i32, i32) {
    %c0_i32 = arith.constant 0 : i32
    %c0_i32_0 = arith.constant 0 : i32
    %c0_i32_1 = arith.constant 0 : i32
    return %c0_i32, %c0_i32_0 : i32, i32
  }
  func.func @transform_5(%arg0: i32, %arg1: i32) -> (i32, i32) {
    %c0_i32 = arith.constant 0 : i32
    %c0_i32_0 = arith.constant 0 : i32
    %c0_i32_1 = arith.constant 0 : i32
    return %c0_i32, %c0_i32_0 : i32, i32
  }
  func.func @transform_6(%arg0: i32, %arg1: i32) -> (i32, i32) {
    %c0_i32 = arith.constant 0 : i32
    %c0_i32_0 = arith.constant 0 : i32
    return %arg0, %c0_i32 : i32, i32
  }
}

module attributes {stable_mosaic.version = 11 : i64} {
  func.func @_se_apply_kernel(%arg0: i32, %arg1: i32, %arg2: memref<1x16x64xbf16, #tpu.memory_space<vmem>>, %arg3: memref<1x16x64xbf16, #tpu.memory_space<vmem>>, %arg4: memref<1x1x64xf32, #tpu.memory_space<vmem>>, %arg5: memref<1x16x64xbf16, #tpu.memory_space<vmem>>) attributes {dimension_semantics = [#tpu.dimension_semantics<parallel>, #tpu.dimension_semantics<parallel>], iteration_bounds = array<i64: 2, 1>, scalar_prefetch = 0 : i64, scratch_operands = 0 : i64, tpu.core_type = #tpu.core_type<tc>, window_params = [{transform_indices = @transform_0, window_bounds = array<i64: 1, 16, 64>}, {transform_indices = @transform_1, window_bounds = array<i64: 1, 16, 64>}, {transform_indices = @transform_2, window_bounds = array<i64: 1, 1, 64>}, {transform_indices = @transform_3, window_bounds = array<i64: 1, 16, 64>}]} {
    %c0 = arith.constant 0 : index
    %c0_0 = arith.constant 0 : index
    %c0_1 = arith.constant 0 : index
    %0 = vector.load %arg4[%c0, %c0_0, %c0_1] : memref<1x1x64xf32, #tpu.memory_space<vmem>>, vector<1x1x64xf32>
    %1 = vector.shape_cast %0 : vector<1x1x64xf32> to vector<1x64xf32>
    %c0_2 = arith.constant 0 : index
    %c0_3 = arith.constant 0 : index
    %c0_4 = arith.constant 0 : index
    %2 = vector.load %arg2[%c0_2, %c0_3, %c0_4] : memref<1x16x64xbf16, #tpu.memory_space<vmem>>, vector<1x16x64xbf16>
    %3 = vector.shape_cast %2 : vector<1x16x64xbf16> to vector<16x64xbf16>
    %4 = arith.extf %3 : vector<16x64xbf16> to vector<16x64xf32>
    %5 = vector.broadcast %1 : vector<1x64xf32> to vector<16x64xf32>
    %6 = arith.mulf %4, %5 : vector<16x64xf32>
    %c0_5 = arith.constant 0 : index
    %c0_6 = arith.constant 0 : index
    %c0_7 = arith.constant 0 : index
    %7 = vector.load %arg3[%c0_5, %c0_6, %c0_7] : memref<1x16x64xbf16, #tpu.memory_space<vmem>>, vector<1x16x64xbf16>
    %8 = vector.shape_cast %7 : vector<1x16x64xbf16> to vector<16x64xbf16>
    %9 = arith.extf %8 : vector<16x64xbf16> to vector<16x64xf32>
    %10 = arith.addf %6, %9 : vector<16x64xf32>
    %cst = arith.constant 0.000000e+00 : f32
    %11 = vector.broadcast %cst : f32 to vector<16x64xf32>
    %12 = arith.maximumf %10, %11 : vector<16x64xf32>
    %13 = arith.truncf %12 : vector<16x64xf32> to vector<16x64xbf16>
    %c0_8 = arith.constant 0 : index
    %c0_9 = arith.constant 0 : index
    %c0_10 = arith.constant 0 : index
    %14 = vector.load %arg5[%c0_8, %c0_9, %c0_10] : memref<1x16x64xbf16, #tpu.memory_space<vmem>>, vector<1x16x64xbf16>
    %15 = vector.shape_cast %14 : vector<1x16x64xbf16> to vector<16x64xbf16>
    %16 = vector.shape_cast %13 : vector<16x64xbf16> to vector<1x16x64xbf16>
    tpu.vector_store %arg5[%c0_8, %c0_9, %c0_10], %16 {strides = array<i32>} : memref<1x16x64xbf16, #tpu.memory_space<vmem>>, vector<1x16x64xbf16>,
    return
  }
  func.func @transform_0(%arg0: i32, %arg1: i32) -> (i32, i32, i32) {
    %c0_i32 = arith.constant 0 : i32
    %c0_i32_0 = arith.constant 0 : i32
    return %arg0, %arg1, %c0_i32 : i32, i32, i32
  }
  func.func @transform_1(%arg0: i32, %arg1: i32) -> (i32, i32, i32) {
    %c0_i32 = arith.constant 0 : i32
    %c0_i32_0 = arith.constant 0 : i32
    return %arg0, %arg1, %c0_i32 : i32, i32, i32
  }
  func.func @transform_2(%arg0: i32, %arg1: i32) -> (i32, i32, i32) {
    %c0_i32 = arith.constant 0 : i32
    %c0_i32_0 = arith.constant 0 : i32
    %c0_i32_1 = arith.constant 0 : i32
    return %arg0, %c0_i32, %c0_i32_0 : i32, i32, i32
  }
  func.func @transform_3(%arg0: i32, %arg1: i32) -> (i32, i32, i32) {
    %c0_i32 = arith.constant 0 : i32
    %c0_i32_0 = arith.constant 0 : i32
    return %arg0, %arg1, %c0_i32 : i32, i32, i32
  }
}

module attributes {stable_mosaic.version = 11 : i64} {
  func.func @_linear_bn_kernel(%arg0: i32, %arg1: i32, %arg2: memref<16x64xbf16, #tpu.memory_space<vmem>>, %arg3: memref<64x16xbf16, #tpu.memory_space<vmem>>, %arg4: memref<1x16xf32, #tpu.memory_space<vmem>>, %arg5: memref<1x16xf32, #tpu.memory_space<vmem>>, %arg6: memref<16x16xbf16, #tpu.memory_space<vmem>>, %arg7: memref<16x16xf32, #tpu.memory_space<vmem>>) attributes {dimension_semantics = [#tpu.dimension_semantics<parallel>, #tpu.dimension_semantics<arbitrary>], iteration_bounds = array<i64: 2, 1>, scalar_prefetch = 0 : i64, scratch_operands = 1 : i64, tpu.core_type = #tpu.core_type<tc>, window_params = [{transform_indices = @transform_0, window_bounds = array<i64: 16, 64>}, {transform_indices = @transform_1, window_bounds = array<i64: 64, 16>}, {pipeline_mode = #tpu.pipeline_mode<synchronous>, transform_indices = @transform_2, window_bounds = array<i64: 1, 16>}, {pipeline_mode = #tpu.pipeline_mode<synchronous>, transform_indices = @transform_3, window_bounds = array<i64: 1, 16>}, {transform_indices = @transform_4, window_bounds = array<i64: 16, 16>}]} {
    %c0_i32 = arith.constant 0 : i32
    %0 = arith.cmpi eq, %arg1, %c0_i32 : i32
    %1 = arith.extui %0 : i1 to i32
    %c0_i32_0 = arith.constant 0 : i32
    %2 = arith.cmpi ne, %1, %c0_i32_0 : i32
    scf.if %2 {
      %cst_10 = arith.constant 0.000000e+00 : f32
      %12 = vector.broadcast %cst_10 : f32 to vector<16x16xf32>
      %c0_11 = arith.constant 0 : index
      %c0_12 = arith.constant 0 : index
      %13 = vector.load %arg7[%c0_11, %c0_12] : memref<16x16xf32, #tpu.memory_space<vmem>>, vector<16x16xf32>
      tpu.vector_store %arg7[%c0_11, %c0_12], %12 {strides = array<i32>} : memref<16x16xf32, #tpu.memory_space<vmem>>, vector<16x16xf32>,
    } else {
    }
    %c0 = arith.constant 0 : index
    %c0_1 = arith.constant 0 : index
    %3 = vector.load %arg2[%c0, %c0_1] : memref<16x64xbf16, #tpu.memory_space<vmem>>, vector<16x64xbf16>
    %c0_2 = arith.constant 0 : index
    %c0_3 = arith.constant 0 : index
    %4 = vector.load %arg7[%c0_2, %c0_3] : memref<16x16xf32, #tpu.memory_space<vmem>>, vector<16x16xf32>
    %c0_4 = arith.constant 0 : index
    %c0_5 = arith.constant 0 : index
    %5 = vector.load %arg3[%c0_4, %c0_5] : memref<64x16xbf16, #tpu.memory_space<vmem>>, vector<64x16xbf16>
    %cst = arith.constant dense<0.000000e+00> : vector<16x16xf32>
    %6 = tpu.matmul %3, %5, %cst {dimension_numbers = #tpu.dot_dimension_numbers<[1], [0], [0], [1], [0, 0, 1, 1], [], []>} : vector<16x64xbf16>, vector<64x16xbf16>, vector<16x16xf32> -> vector<16x16xf32>
    %7 = arith.addf %4, %6 : vector<16x16xf32>
    %c0_6 = arith.constant 0 : index
    %c0_7 = arith.constant 0 : index
    %8 = vector.load %arg7[%c0_6, %c0_7] : memref<16x16xf32, #tpu.memory_space<vmem>>, vector<16x16xf32>
    tpu.vector_store %arg7[%c0_6, %c0_7], %7 {strides = array<i32>} : memref<16x16xf32, #tpu.memory_space<vmem>>, vector<16x16xf32>,
    %c0_i32_8 = arith.constant 0 : i32
    %9 = arith.cmpi eq, %arg1, %c0_i32_8 : i32
    %10 = arith.extui %9 : i1 to i32
    %c0_i32_9 = arith.constant 0 : i32
    %11 = arith.cmpi ne, %10, %c0_i32_9 : i32
    scf.if %11 {
      %c0_10 = arith.constant 0 : index
      %c0_11 = arith.constant 0 : index
      %12 = vector.load %arg7[%c0_10, %c0_11] : memref<16x16xf32, #tpu.memory_space<vmem>>, vector<16x16xf32>
      %c0_12 = arith.constant 0 : index
      %c0_13 = arith.constant 0 : index
      %13 = vector.load %arg4[%c0_12, %c0_13] : memref<1x16xf32, #tpu.memory_space<vmem>>, vector<1x16xf32>
      %14 = vector.broadcast %13 : vector<1x16xf32> to vector<16x16xf32>
      %15 = arith.mulf %12, %14 : vector<16x16xf32>
      %c0_14 = arith.constant 0 : index
      %c0_15 = arith.constant 0 : index
      %16 = vector.load %arg5[%c0_14, %c0_15] : memref<1x16xf32, #tpu.memory_space<vmem>>, vector<1x16xf32>
      %17 = vector.broadcast %16 : vector<1x16xf32> to vector<16x16xf32>
      %18 = arith.addf %15, %17 : vector<16x16xf32>
      %cst_16 = arith.constant 0.000000e+00 : f32
      %19 = vector.broadcast %cst_16 : f32 to vector<16x16xf32>
      %20 = arith.maximumf %18, %19 : vector<16x16xf32>
      %21 = arith.truncf %20 : vector<16x16xf32> to vector<16x16xbf16>
      %c0_17 = arith.constant 0 : index
      %c0_18 = arith.constant 0 : index
      %22 = vector.load %arg6[%c0_17, %c0_18] : memref<16x16xbf16, #tpu.memory_space<vmem>>, vector<16x16xbf16>
      tpu.vector_store %arg6[%c0_17, %c0_18], %21 {strides = array<i32>} : memref<16x16xbf16, #tpu.memory_space<vmem>>, vector<16x16xbf16>,
    } else {
    }
    return
  }
  func.func @transform_0(%arg0: i32, %arg1: i32) -> (i32, i32) {
    %c0_i32 = arith.constant 0 : i32
    return %arg0, %arg1 : i32, i32
  }
  func.func @transform_1(%arg0: i32, %arg1: i32) -> (i32, i32) {
    %c0_i32 = arith.constant 0 : i32
    %c0_i32_0 = arith.constant 0 : i32
    return %arg1, %c0_i32 : i32, i32
  }
  func.func @transform_2(%arg0: i32, %arg1: i32) -> (i32, i32) {
    %c0_i32 = arith.constant 0 : i32
    %c0_i32_0 = arith.constant 0 : i32
    %c0_i32_1 = arith.constant 0 : i32
    return %c0_i32, %c0_i32_0 : i32, i32
  }
  func.func @transform_3(%arg0: i32, %arg1: i32) -> (i32, i32) {
    %c0_i32 = arith.constant 0 : i32
    %c0_i32_0 = arith.constant 0 : i32
    %c0_i32_1 = arith.constant 0 : i32
    return %c0_i32, %c0_i32_0 : i32, i32
  }
  func.func @transform_4(%arg0: i32, %arg1: i32) -> (i32, i32) {
    %c0_i32 = arith.constant 0 : i32
    %c0_i32_0 = arith.constant 0 : i32
    return %arg0, %c0_i32 : i32, i32
  }
}

module attributes {stable_mosaic.version = 11 : i64} {
  func.func @_linear_bn_kernel(%arg0: i32, %arg1: i32, %arg2: memref<16x16xbf16, #tpu.memory_space<vmem>>, %arg3: memref<16x48xbf16, #tpu.memory_space<vmem>>, %arg4: memref<16x48xbf16, #tpu.memory_space<vmem>>, %arg5: memref<16x48xf32, #tpu.memory_space<vmem>>) attributes {dimension_semantics = [#tpu.dimension_semantics<parallel>, #tpu.dimension_semantics<arbitrary>], iteration_bounds = array<i64: 2, 1>, scalar_prefetch = 0 : i64, scratch_operands = 1 : i64, tpu.core_type = #tpu.core_type<tc>, window_params = [{transform_indices = @transform_0, window_bounds = array<i64: 16, 16>}, {transform_indices = @transform_1, window_bounds = array<i64: 16, 48>}, {transform_indices = @transform_2, window_bounds = array<i64: 16, 48>}]} {
    %c0_i32 = arith.constant 0 : i32
    %0 = arith.cmpi eq, %arg1, %c0_i32 : i32
    %1 = arith.extui %0 : i1 to i32
    %c0_i32_0 = arith.constant 0 : i32
    %2 = arith.cmpi ne, %1, %c0_i32_0 : i32
    scf.if %2 {
      %cst_10 = arith.constant 0.000000e+00 : f32
      %12 = vector.broadcast %cst_10 : f32 to vector<16x48xf32>
      %c0_11 = arith.constant 0 : index
      %c0_12 = arith.constant 0 : index
      %13 = vector.load %arg5[%c0_11, %c0_12] : memref<16x48xf32, #tpu.memory_space<vmem>>, vector<16x48xf32>
      tpu.vector_store %arg5[%c0_11, %c0_12], %12 {strides = array<i32>} : memref<16x48xf32, #tpu.memory_space<vmem>>, vector<16x48xf32>,
    } else {
    }
    %c0 = arith.constant 0 : index
    %c0_1 = arith.constant 0 : index
    %3 = vector.load %arg2[%c0, %c0_1] : memref<16x16xbf16, #tpu.memory_space<vmem>>, vector<16x16xbf16>
    %c0_2 = arith.constant 0 : index
    %c0_3 = arith.constant 0 : index
    %4 = vector.load %arg5[%c0_2, %c0_3] : memref<16x48xf32, #tpu.memory_space<vmem>>, vector<16x48xf32>
    %c0_4 = arith.constant 0 : index
    %c0_5 = arith.constant 0 : index
    %5 = vector.load %arg3[%c0_4, %c0_5] : memref<16x48xbf16, #tpu.memory_space<vmem>>, vector<16x48xbf16>
    %cst = arith.constant dense<0.000000e+00> : vector<16x48xf32>
    %6 = tpu.matmul %3, %5, %cst {dimension_numbers = #tpu.dot_dimension_numbers<[1], [0], [0], [1], [0, 0, 1, 1], [], []>} : vector<16x16xbf16>, vector<16x48xbf16>, vector<16x48xf32> -> vector<16x48xf32>
    %7 = arith.addf %4, %6 : vector<16x48xf32>
    %c0_6 = arith.constant 0 : index
    %c0_7 = arith.constant 0 : index
    %8 = vector.load %arg5[%c0_6, %c0_7] : memref<16x48xf32, #tpu.memory_space<vmem>>, vector<16x48xf32>
    tpu.vector_store %arg5[%c0_6, %c0_7], %7 {strides = array<i32>} : memref<16x48xf32, #tpu.memory_space<vmem>>, vector<16x48xf32>,
    %c0_i32_8 = arith.constant 0 : i32
    %9 = arith.cmpi eq, %arg1, %c0_i32_8 : i32
    %10 = arith.extui %9 : i1 to i32
    %c0_i32_9 = arith.constant 0 : i32
    %11 = arith.cmpi ne, %10, %c0_i32_9 : i32
    scf.if %11 {
      %c0_10 = arith.constant 0 : index
      %c0_11 = arith.constant 0 : index
      %12 = vector.load %arg5[%c0_10, %c0_11] : memref<16x48xf32, #tpu.memory_space<vmem>>, vector<16x48xf32>
      %13 = arith.truncf %12 : vector<16x48xf32> to vector<16x48xbf16>
      %c0_12 = arith.constant 0 : index
      %c0_13 = arith.constant 0 : index
      %14 = vector.load %arg4[%c0_12, %c0_13] : memref<16x48xbf16, #tpu.memory_space<vmem>>, vector<16x48xbf16>
      tpu.vector_store %arg4[%c0_12, %c0_13], %13 {strides = array<i32>} : memref<16x48xbf16, #tpu.memory_space<vmem>>, vector<16x48xbf16>,
    } else {
    }
    return
  }
  func.func @transform_0(%arg0: i32, %arg1: i32) -> (i32, i32) {
    %c0_i32 = arith.constant 0 : i32
    return %arg0, %arg1 : i32, i32
  }
  func.func @transform_1(%arg0: i32, %arg1: i32) -> (i32, i32) {
    %c0_i32 = arith.constant 0 : i32
    %c0_i32_0 = arith.constant 0 : i32
    return %arg1, %c0_i32 : i32, i32
  }
  func.func @transform_2(%arg0: i32, %arg1: i32) -> (i32, i32) {
    %c0_i32 = arith.constant 0 : i32
    %c0_i32_0 = arith.constant 0 : i32
    return %arg0, %c0_i32 : i32, i32
  }
}

module attributes {stable_mosaic.version = 11 : i64} {
  func.func @_attention_kernel(%arg0: i32, %arg1: i32, %arg2: memref<1x1x16x8xbf16, #tpu.memory_space<vmem>>, %arg3: memref<1x1x16x8xbf16, #tpu.memory_space<vmem>>, %arg4: memref<1x1x16x8xbf16, #tpu.memory_space<vmem>>, %arg5: memref<1x1x16x16xbf16, #tpu.memory_space<vmem>>, %arg6: memref<1x1x16x8xbf16, #tpu.memory_space<vmem>>) attributes {dimension_semantics = [#tpu.dimension_semantics<parallel>, #tpu.dimension_semantics<parallel>], iteration_bounds = array<i64: 2, 2>, scalar_prefetch = 0 : i64, scratch_operands = 0 : i64, tpu.core_type = #tpu.core_type<tc>, window_params = [{transform_indices = @transform_0, window_bounds = array<i64: 1, 1, 16, 8>}, {transform_indices = @transform_1, window_bounds = array<i64: 1, 1, 16, 8>}, {transform_indices = @transform_2, window_bounds = array<i64: 1, 1, 16, 8>}, {transform_indices = @transform_3, window_bounds = array<i64: 1, 1, 16, 16>}, {transform_indices = @transform_4, window_bounds = array<i64: 1, 1, 16, 8>}]} {
    %c0 = arith.constant 0 : index
    %c0_0 = arith.constant 0 : index
    %c0_1 = arith.constant 0 : index
    %c0_2 = arith.constant 0 : index
    %0 = vector.load %arg2[%c0, %c0_0, %c0_1, %c0_2] : memref<1x1x16x8xbf16, #tpu.memory_space<vmem>>, vector<1x1x16x8xbf16>
    %1 = vector.shape_cast %0 : vector<1x1x16x8xbf16> to vector<16x8xbf16>
    %c0_3 = arith.constant 0 : index
    %c0_4 = arith.constant 0 : index
    %c0_5 = arith.constant 0 : index
    %c0_6 = arith.constant 0 : index
    %2 = vector.load %arg3[%c0_3, %c0_4, %c0_5, %c0_6] : memref<1x1x16x8xbf16, #tpu.memory_space<vmem>>, vector<1x1x16x8xbf16>
    %3 = vector.shape_cast %2 : vector<1x1x16x8xbf16> to vector<16x8xbf16>
    %c0_7 = arith.constant 0 : index
    %c0_8 = arith.constant 0 : index
    %c0_9 = arith.constant 0 : index
    %c0_10 = arith.constant 0 : index
    %4 = vector.load %arg4[%c0_7, %c0_8, %c0_9, %c0_10] : memref<1x1x16x8xbf16, #tpu.memory_space<vmem>>, vector<1x1x16x8xbf16>
    %5 = vector.shape_cast %4 : vector<1x1x16x8xbf16> to vector<16x8xbf16>
    %cst = arith.constant dense<0.000000e+00> : vector<16x16xf32>
    %6 = tpu.matmul %1, %3, %cst {dimension_numbers = #tpu.dot_dimension_numbers<[1], [1], [0], [0], [0, 0, 1, 0], [], []>} : vector<16x8xbf16>, vector<16x8xbf16>, vector<16x16xf32> -> vector<16x16xf32>
    %cst_11 = arith.constant 0.353553385 : f32
    %7 = vector.broadcast %cst_11 : f32 to vector<16x16xf32>
    %8 = arith.mulf %6, %7 : vector<16x16xf32>
    %c0_12 = arith.constant 0 : index
    %c0_13 = arith.constant 0 : index
    %c0_14 = arith.constant 0 : index
    %c0_15 = arith.constant 0 : index
    %9 = vector.load %arg5[%c0_12, %c0_13, %c0_14, %c0_15] : memref<1x1x16x16xbf16, #tpu.memory_space<vmem>>, vector<1x1x16x16xbf16>
    %10 = vector.shape_cast %9 : vector<1x1x16x16xbf16> to vector<16x16xbf16>
    %11 = arith.extf %10 : vector<16x16xbf16> to vector<16x16xf32>
    %12 = arith.addf %8, %11 : vector<16x16xf32>
    %cst_16 = arith.constant dense<0xFF800000> : vector<16xf32>
    %13 = vector.multi_reduction <maximumf>, %12, %cst_16 [1] : vector<16x16xf32> to vector<16xf32>
    %14 = vector.shape_cast %13 : vector<16xf32> to vector<16x1xf32>
    %15 = vector.broadcast %14 : vector<16x1xf32> to vector<16x16xf32>
    %16 = arith.subf %12, %15 : vector<16x16xf32>
    %17 = math.exp %16 : vector<16x16xf32>
    %cst_17 = arith.constant dense<0.000000e+00> : vector<16xf32>
    %18 = vector.multi_reduction <add>, %17, %cst_17 [1] : vector<16x16xf32> to vector<16xf32>
    %19 = vector.shape_cast %18 : vector<16xf32> to vector<16x1xf32>
    %20 = tpu.reciprocal %19 {approx = true} : vector<16x1xf32> -> vector<16x1xf32>
    %21 = vector.broadcast %20 : vector<16x1xf32> to vector<16x16xf32>
    %22 = arith.mulf %17, %21 : vector<16x16xf32>
    %23 = arith.truncf %22 : vector<16x16xf32> to vector<16x16xbf16>
    %cst_18 = arith.constant dense<0.000000e+00> : vector<16x8xf32>
    %24 = tpu.matmul %23, %5, %cst_18 {dimension_numbers = #tpu.dot_dimension_numbers<[1], [0], [0], [1], [0, 0, 1, 1], [], []>} : vector<16x16xbf16>, vector<16x8xbf16>, vector<16x8xf32> -> vector<16x8xf32>
    %25 = arith.truncf %24 : vector<16x8xf32> to vector<16x8xbf16>
    %c0_19 = arith.constant 0 : index
    %c0_20 = arith.constant 0 : index
    %c0_21 = arith.constant 0 : index
    %c0_22 = arith.constant 0 : index
    %26 = vector.load %arg6[%c0_19, %c0_20, %c0_21, %c0_22] : memref<1x1x16x8xbf16, #tpu.memory_space<vmem>>, vector<1x1x16x8xbf16>
    %27 = vector.shape_cast %26 : vector<1x1x16x8xbf16> to vector<16x8xbf16>
    %28 = vector.shape_cast %25 : vector<16x8xbf16> to vector<1x1x16x8xbf16>
    tpu.vector_store %arg6[%c0_19, %c0_20, %c0_21, %c0_22], %28 {strides = array<i32>} : memref<1x1x16x8xbf16, #tpu.memory_space<vmem>>, vector<1x1x16x8xbf16>,
    return
  }
  func.func @transform_0(%arg0: i32, %arg1: i32) -> (i32, i32, i32, i32) {
    %c0_i32 = arith.constant 0 : i32
    %c0_i32_0 = arith.constant 0 : i32
    %c0_i32_1 = arith.constant 0 : i32
    return %arg0, %arg1, %c0_i32, %c0_i32_0 : i32, i32, i32, i32
  }
  func.func @transform_1(%arg0: i32, %arg1: i32) -> (i32, i32, i32, i32) {
    %c0_i32 = arith.constant 0 : i32
    %c0_i32_0 = arith.constant 0 : i32
    %c0_i32_1 = arith.constant 0 : i32
    return %arg0, %arg1, %c0_i32, %c0_i32_0 : i32, i32, i32, i32
  }
  func.func @transform_2(%arg0: i32, %arg1: i32) -> (i32, i32, i32, i32) {
    %c0_i32 = arith.constant 0 : i32
    %c0_i32_0 = arith.constant 0 : i32
    %c0_i32_1 = arith.constant 0 : i32
    return %arg0, %arg1, %c0_i32, %c0_i32_0 : i32, i32, i32, i32
  }
  func.func @transform_3(%arg0: i32, %arg1: i32) -> (i32, i32, i32, i32) {
    %c0_i32 = arith.constant 0 : i32
    %c0_i32_0 = arith.constant 0 : i32
    %c0_i32_1 = arith.constant 0 : i32
    return %arg0, %arg1, %c0_i32, %c0_i32_0 : i32, i32, i32, i32
  }
  func.func @transform_4(%arg0: i32, %arg1: i32) -> (i32, i32, i32, i32) {
    %c0_i32 = arith.constant 0 : i32
    %c0_i32_0 = arith.constant 0 : i32
    %c0_i32_1 = arith.constant 0 : i32
    return %arg0, %arg1, %c0_i32, %c0_i32_0 : i32, i32, i32, i32
  }
}

</mosaic_0001>

<llo_original>
// kernel: bottle_stack_forward.16
$region0: #{bottle_stack_forward.16}
  #allocation0 [shape = 'u32[]', space=smem, size = 0x4, offset = 0x4, fixed_abs, tag = 'smem constant byte address 0x4 - core index']
  #allocation1 [shape = 'u32[144,128]{1,0:T(1,128)}', space=vmem, size = 0x12000, scoped, tag = 'internal scratch']
  #allocation2 [shape = 'f32[16,64]{1,0:T(8,128)}', space=vmem, size = 0x2000, scoped, tag = 'scratch operand']
  %s0 = inlined_call_operand.vmem [shape: bf16[32,72], index: 0, kind: input, shape index: {}]
  %s1 = inlined_call_operand.vmem [shape: bf16[72,64], index: 1, kind: input, shape index: {}]
  %s2 = inlined_call_operand.vmem [shape: f32[1,64], index: 2, kind: input, shape index: {}]
  %s3 = inlined_call_operand.vmem [shape: f32[1,64], index: 3, kind: input, shape index: {}]
  %s4 = inlined_call_operand.vmem [shape: bf16[32,64], index: 4, kind: output, shape index: {}]
  %s5 = sld [smem:[#allocation0]]
  $region57: #{bottle_stack_forward.16} parent=0
    _
  %s7 = ssub.s32 1, %s5
  %s8 = scalar_select 0, %s7, %s5
  loop: start=0, step=1, limit=4
  $region2: #{bottle_stack_forward.16} parent=0 // loop_pre_header
    _
  $region3: #{bottle_stack_forward.16} parent=0 // loop_header
    %s10 = sphi 0, %s14
    %p11 = scmp.ge.s32.totalorder %s10, 4
    %s17 = sphi 0, %s29
    %s18 = sphi 0, %s25
    %s19 = sphi 0, %s17
    %s20 = sphi 0, %s18
    %s21 = sphi 0, %s19
    %s22 = sphi 0, %s20
    %s34 = sphi 0, %s36
    %s37 = sphi 0, %s34
    %s38 = sphi 0, %s37
    %s54 = sphi 0, %s38
    %s60 = sphi 0, %s62
    %s63 = sphi 0, %s60
    %s64 = sphi 0, %s63
    %s80 = sphi 0, %s64
    %s84 = sphi 0, %s84
    %s86 = sphi 0, %s84
    %s87 = sphi 0, %s86
    %s101 = sphi 0, %s87
    %s105 = sphi 0, %s105
    %s107 = sphi 0, %s105
    %s108 = sphi 0, %s107
    %s122 = sphi 0, %s108
    %s128 = sphi 0, %s130
    %s131 = sphi 0, %s128
    %s132 = sphi 0, %s131
    %s148 = sphi 0, %s132
  $region4: #{bottle_stack_forward.16} parent=0 // loop_header_branch
    %13 = sbr.rel (%p11) target = $region8
  $region5: #{bottle_stack_forward.16} parent=0 // loop_body
    %s15 = ssub.s32 %s10, 1
    %s16 = ssub.s32 %s10, 2
    %s23 = sadd.s32 1, %s18
    %p24 = scmp.ge.s32.totalorder %s23, 1
    %s25 = scalar_select %p24, 0, %s23
    %s26 = sadd.s32 1, %s17
    %s27 = scalar_select %p24, %s26, %s17
    %p28 = scmp.ge.s32.totalorder %s27, 2
    %s29 = scalar_select %p28, 0, %s27
    %s30 = ssub.s32 %s17, %s29
    %s31 = ssub.s32 %s18, %s25
    %s32 = sor.u32 %s30, %s31
    %p33 = scmp.eq.s32.totalorder %s32, 0
    %s35 = sadd.s32 %s34, 1
    %s36 = scalar_select %p33, %s34, %s35
    %p39 = pneg %p33
    %p40 = scmp.eq.s32.totalorder %s10, 1
    %p41 = por %p39, %p40
    %p42 = scmp.ne.s32.totalorder %s34, %s37
    %p43 = scmp.eq.s32.totalorder %s10, 0
    %p44 = por %p42, %p43
    %p45 = scmp.ne.s32.totalorder %s34, %s37
    %p46 = scmp.eq.s32.totalorder %s15, 1
    %p47 = por %p45, %p46
    %p48 = scmp.ne.s32.totalorder %s37, %s38
    %p49 = scmp.eq.s32.totalorder %s15, 0
    %p50 = por %p48, %p49
    %p51 = scmp.ne.s32.totalorder %s37, %s38
    %p52 = scmp.eq.s32.totalorder %s16, 1
    %p53 = por %p51, %p52
    %p55 = scmp.ne.s32.totalorder %s38, %s54
    %p56 = scmp.eq.s32.totalorder %s16, 0
    %p57 = por %p55, %p56
    %s58 = ssub.s32 %s18, %s25
    %p59 = scmp.eq.s32.totalorder %s58, 0
    %s61 = sadd.s32 %s60, 1
    %s62 = scalar_select %p59, %s60, %s61
    %p65 = pneg %p59
    %p66 = scmp.eq.s32.totalorder %s10, 1
    %p67 = por %p65, %p66
    %p68 = scmp.ne.s32.totalorder %s60, %s63
    %p69 = scmp.eq.s32.totalorder %s10, 0
    %p70 = por %p68, %p69
    %p71 = scmp.ne.s32.totalorder %s60, %s63
    %p72 = scmp.eq.s32.totalorder %s15, 1
    %p73 = por %p71, %p72
    %p74 = scmp.ne.s32.totalorder %s63, %s64
    %p75 = scmp.eq.s32.totalorder %s15, 0
    %p76 = por %p74, %p75
    %p77 = scmp.ne.s32.totalorder %s63, %s64
    %p78 = scmp.eq.s32.totalorder %s16, 1
    %p79 = por %p77, %p78
    %p81 = scmp.ne.s32.totalorder %s64, %s80
    %p82 = scmp.eq.s32.totalorder %s16, 0
    %p83 = por %p81, %p82
    %s85 = sadd.s32 %s84, 1
    %p88 = scmp.eq.s32.totalorder %s10, 1
    %p89 = scmp.ne.s32.totalorder %s84, %s86
    %p90 = scmp.eq.s32.totalorder %s10, 0
    %p91 = por %p89, %p90
    %p92 = scmp.ne.s32.totalorder %s84, %s86
    %p93 = scmp.eq.s32.totalorder %s15, 1
    %p94 = por %p92, %p93
    %p95 = scmp.ne.s32.totalorder %s86, %s87
    %p96 = scmp.eq.s32.totalorder %s15, 0
    %p97 = por %p95, %p96
    %p98 = scmp.ne.s32.totalorder %s86, %s87
    %p99 = scmp.eq.s32.totalorder %s16, 1
    %p100 = por %p98, %p99
    %p102 = scmp.ne.s32.totalorder %s87, %s101
    %p103 = scmp.eq.s32.totalorder %s16, 0
    %p104 = por %p102, %p103
    %s106 = sadd.s32 %s105, 1
    %p109 = scmp.eq.s32.totalorder %s10, 1
    %p110 = scmp.ne.s32.totalorder %s105, %s107
    %p111 = scmp.eq.s32.totalorder %s10, 0
    %p112 = por %p110, %p111
    %p113 = scmp.ne.s32.totalorder %s105, %s107
    %p114 = scmp.eq.s32.totalorder %s15, 1
    %p115 = por %p113, %p114
    %p116 = scmp.ne.s32.totalorder %s107, %s108
    %p117 = scmp.eq.s32.totalorder %s15, 0
    %p118 = por %p116, %p117
    %p119 = scmp.ne.s32.totalorder %s107, %s108
    %p120 = scmp.eq.s32.totalorder %s16, 1
    %p121 = por %p119, %p120
    %p123 = scmp.ne.s32.totalorder %s108, %s122
    %p124 = scmp.eq.s32.totalorder %s16, 0
    %p125 = por %p123, %p124
    %s126 = ssub.s32 %s17, %s29
    %p127 = scmp.eq.s32.totalorder %s126, 0
    %s129 = sadd.s32 %s128, 1
    %s130 = scalar_select %p127, %s128, %s129
    %p133 = pneg %p127
    %p134 = scmp.eq.s32.totalorder %s10, 1
    %p135 = por %p133, %p134
    %p136 = scmp.ne.s32.totalorder %s128, %s131
    %p137 = scmp.eq.s32.totalorder %s10, 0
    %p138 = por %p136, %p137
    %p139 = scmp.ne.s32.totalorder %s128, %s131
    %p140 = scmp.eq.s32.totalorder %s15, 1
    %p141 = por %p139, %p140
    %p142 = scmp.ne.s32.totalorder %s131, %s132
    %p143 = scmp.eq.s32.totalorder %s15, 0
    %p144 = por %p142, %p143
    %p145 = scmp.ne.s32.totalorder %s131, %s132
    %p146 = scmp.eq.s32.totalorder %s16, 1
    %p147 = por %p145, %p146
    %p149 = scmp.ne.s32.totalorder %s132, %s148
    %p150 = scmp.eq.s32.totalorder %s16, 0
    %p151 = por %p149, %p150
    %p152 = scmp.le.s32.totalorder 1, %s10
    %p153 = scmp.lt.s32.totalorder %s10, 3
    %p154 = pnand %p152, %p153
    %p155 = pneg %p154
    // Predicated region
    $region9: #{bottle_stack_forward.16} parent=5 // pred_check
      _
    $region10: #{bottle_stack_forward.16} parent=5 // pred_check_branch
      %157 = sbr.rel (%p154) target = $region12
    $region11: #{bottle_stack_forward.16} parent=5 // pred_region
      %s158 = ssub.s32 %s10, 1
      // Predicated region
      $region13: #{bottle_stack_forward.16} parent=11 // pred_check
        %p159 = pneg %p76
      $region14: #{bottle_stack_forward.16} parent=11 // pred_check_branch
        %161 = sbr.rel (%p159) target = $region16
      $region15: #{bottle_stack_forward.16} parent=11 // pred_region
        %s162 = smul.u32 9, %s20
        %p163 = scmp.lt.s32.totalorder %s162, 8
        %s164 = scalar_select %p163, %s162, 8
        %s165 = smul.addr %s164, 4
        %s166 = scalar_lea.vmem %s1, %s165
        %s167 = smul.u32 9, %s20
      $region16: #{bottle_stack_forward.16} parent=11 // pred_fallthru
        _
      // Predicated region
      $region17: #{bottle_stack_forward.16} parent=11 // pred_check
        %p168 = pneg %p97
      $region18: #{bottle_stack_forward.16} parent=11 // pred_check_branch
        %170 = sbr.rel (%p168) target = $region20
      $region19: #{bottle_stack_forward.16} parent=11 // pred_region
        _
      $region20: #{bottle_stack_forward.16} parent=11 // pred_fallthru
        _
      // Predicated region
      $region21: #{bottle_stack_forward.16} parent=11 // pred_check
        %p171 = pneg %p118
      $region22: #{bottle_stack_forward.16} parent=11 // pred_check_branch
        %173 = sbr.rel (%p171) target = $region24
      $region23: #{bottle_stack_forward.16} parent=11 // pred_region
        _
      $region24: #{bottle_stack_forward.16} parent=11 // pred_fallthru
        _
    $region12: #{bottle_stack_forward.16} parent=5 // pred_fallthru
      _
    %p174 = scmp.lt.s32.totalorder %s10, 2
    // Predicated region
    $region25: #{bottle_stack_forward.16} parent=5 // pred_check
      %p175 = pneg %p174
    $region26: #{bottle_stack_forward.16} parent=5 // pred_check_branch
      %177 = sbr.rel (%p175) target = $region28
    $region27: #{bottle_stack_forward.16} parent=5 // pred_region
      // Predicated region
      $region29: #{bottle_stack_forward.16} parent=27 // pred_check
        %p178 = pneg %p44
      $region30: #{bottle_stack_forward.16} parent=27 // pred_check_branch
        %180 = sbr.rel (%p178) target = $region32
      $region31: #{bottle_stack_forward.16} parent=27 // pred_region
        %s181 = smul.u32 2, %s17
        %p182 = scmp.lt.s32.totalorder %s181, 3
        %s183 = scalar_select %p182, %s181, 3
        %p184 = scmp.lt.s32.totalorder %s18, 0
        %s185 = scalar_select %p184, %s18, 0
        %s186 = sadd.s32 %s185, %s183
        %s187 = smul.addr %s186, 4
        %s188 = scalar_lea.vmem %s0, %s187
        %s189 = smul.u32 2, %s17
      $region32: #{bottle_stack_forward.16} parent=27 // pred_fallthru
        _
    $region28: #{bottle_stack_forward.16} parent=5 // pred_fallthru
      _
    %p190 = scmp.le.s32.totalorder 1, %s10
    %p191 = scmp.lt.s32.totalorder %s10, 3
    %p192 = pnand %p190, %p191
    %p193 = pneg %p192
    // Predicated region
    $region33: #{bottle_stack_forward.16} parent=5 // pred_check
      _
    $region34: #{bottle_stack_forward.16} parent=5 // pred_check_branch
      %195 = sbr.rel (%p192) target = $region36
    $region35: #{bottle_stack_forward.16} parent=5 // pred_region
      %s196 = ssub.s32 %s10, 1
      %s197 = smul.u32 2, %s19
      %p198 = scmp.lt.s32.totalorder %s197, 3
      %s199 = scalar_select %p198, %s197, 3
      %p200 = scmp.lt.s32.totalorder %s20, 0
      %s201 = scalar_select %p200, %s20, 0
      %s202 = sadd.s32 %s201, %s199
      %s203 = smul.addr %s202, 4
      %s204 = scalar_lea.vmem %s0, %s203
      %p205 = pneg %p50
      %p206 = pneg %p47
      %s207 = smul.u32 9, %s20
      %p208 = scmp.lt.s32.totalorder %s207, 8
      %s209 = scalar_select %p208, %s207, 8
      %s210 = smul.addr %s209, 4
      %s211 = scalar_lea.vmem %s1, %s210
      %p212 = pneg %p76
      %p213 = pneg %p73
      %p214 = pneg %p97
      %p215 = pneg %p94
      %p216 = pneg %p118
      %p217 = pneg %p115
      %p218 = pneg %p144
      %p219 = pneg %p141
      %s220 = smul.u32 2, %s19
      %p221 = scmp.lt.s32.totalorder %s220, 3
      %s222 = scalar_select %p221, %s220, 3
      %s223 = smul.addr %s222, 4
      %s224 = scalar_lea.vmem %s4, %s223
      %s225 = smul.u32 2, %s19
      %p226 = scmp.lt.s32.totalorder %s225, 3
      %s227 = scalar_select %p226, %s225, 3
      %p228 = scmp.lt.s32.totalorder %s20, 0
      %s229 = scalar_select %p228, %s20, 0
      %s230 = sadd.s32 %s229, %s227
      %s231 = smul.addr %s230, 4
      %s232 = scalar_lea.vmem %s0, %s231
      %s233 = smul.u32 2, %s19
      %s234 = smul.u32 9, %s20
      %p235 = scmp.lt.s32.totalorder %s234, 8
      %s236 = scalar_select %p235, %s234, 8
      %s237 = smul.addr %s236, 4
      %s238 = scalar_lea.vmem %s1, %s237
      %s239 = smul.u32 9, %s20
      %s240 = smul.u32 2, %s19
      %p241 = scmp.lt.s32.totalorder %s240, 3
      %s242 = scalar_select %p241, %s240, 3
      %s243 = smul.addr %s242, 4
      %s244 = scalar_lea.vmem %s4, %s243
      %s245 = smul.u32 2, %s19
      %p247 = scmp.eq.s32.totalorder %s20, 0
      // Predicated region
      $region37: #{bottle_stack_forward.16} parent=35 // pred_check
        %p248 = pneg %p247
      $region38: #{bottle_stack_forward.16} parent=35 // pred_check_branch
        %250 = sbr.rel (%p248) target = $region40
      $region39: #{bottle_stack_forward.16} parent=35 // pred_region
        %vm251 = vcmask 523264
        %252 = vst.msk [vmem:[#allocation2] sm:$0xff] %vm251, 0.0
        %253 = vst.msk [vmem:[#allocation2 + $0x8] sm:$0xff] %vm251, 0.0
      $region40: #{bottle_stack_forward.16} parent=35 // pred_fallthru
        _
      %v254 = vld [vmem:[%s232] sm:$0xf]
      %v255 = vld [vmem:[%s232 + $0x4] sm:$0xf]
      %v256 = vld [vmem:[#allocation2] sm:$0xff]
      %v257 = vld [vmem:[#allocation2 + $0x8] sm:$0xff]
      %v258 = vld [vmem:[%s238] sm:$0xf]
      %v259 = vld [vmem:[%s238 + $0x4] sm:$0xf]
      %v260 = vld [vmem:[%s238 + $0x8] sm:$0xf]
      %v261 = vld [vmem:[%s238 + $0xc] sm:$0xf]
      %v262 = vld [vmem:[%s238 + $0x10] sm:$0xf]
      %v263 = vld [vmem:[%s238 + $0x14] sm:$0xf]
      %v264 = vld [vmem:[%s238 + $0x18] sm:$0xf]
      %v265 = vld [vmem:[%s238 + $0x1c] sm:$0xf]
      %v266 = vld [vmem:[%s238 + $0x20] sm:$0xf]
      %v269 = vunpack.c.l.b16 %v254
      %v270 = vunpack.c.l.b16 %v255
      %v271 = vpack.c.b16 %v270, %v269
      %v281 = vunpack.c.l.b16 %v258
      %v282 = vunpack.c.l.b16 %v259
      %v283 = vunpack.c.l.b16 %v260
      %v284 = vunpack.c.l.b16 %v261
      %v285 = vunpack.c.l.b16 %v262
      %v286 = vunpack.c.l.b16 %v263
      %v287 = vunpack.c.l.b16 %v264
      %v288 = vunpack.c.l.b16 %v265
      %v289 = vunpack.c.l.b16 %v266
      %v290 = vpack.c.b16 %v282, %v281
      %v291 = vpack.c.b16 %v284, %v283
      %v292 = vpack.c.b16 %v286, %v285
      %v293 = vpack.c.b16 %v288, %v287
      %v294 = vpack.c.b16 %v289, %v289
      %vm299 = vcmask 588800
      %v301 = vsel %vm299, %v271, 0
      %vm303 = vcmask 1043456
      %v305 = vsel %vm303, %v294, 0
      %307 = vmatprep.subr.bf16.mxu0 0
      %308 = vmatpush1.bf16.msra.mxu0 %v290
      %309 = vmatprep.subr.bf16.mxu0 0
      %310 = vmatpush1.bf16.msra.mxu0 %v291
      %311 = vmatprep.subr.bf16.mxu0 0
      %312 = vmatpush1.bf16.msra.mxu0 %v292
      %313 = vmatprep.subr.bf16.mxu0 0
      %314 = vmatpush1.bf16.msra.mxu0 %v293
      %315 = vmatprep.subr.bf16.mxu0 0
      %316 = vmatpush1.bf16.msra.mxu0 %v305
      %317 = vmatprep.subr.bf16.mxu0 0
      %318 = vmatpush1.bf16.msra.mxu0 0
      %319 = vmatprep.subr.bf16.mxu0 0
      %320 = vmatpush1.bf16.msra.mxu0 0
      %321 = vmatprep.subr.bf16.mxu0 0
      %322 = vmatpush1.bf16.msra.mxu0 0
      %323 = vmatprep.subr.bf16.mxu0 0
      %324 = vmatpush1.bf16.msra.mxu0 0
      %325 = vmatprep.subr.bf16.mxu0 0
      %326 = vmatpush1.bf16.msra.mxu0 0
      %327 = vmatprep.subr.bf16.mxu0 0
      %328 = vmatpush1.bf16.msra.mxu0 0
      %329 = vmatprep.subr.bf16.mxu0 0
      %330 = vmatpush1.bf16.msra.mxu0 0
      %331 = vmatprep.subr.bf16.mxu0 0
      %332 = vmatpush1.bf16.msra.mxu0 0
      %333 = vmatprep.subr.bf16.mxu0 0
      %334 = vmatpush1.bf16.msra.mxu0 0
      %335 = vmatprep.subr.bf16.mxu0 0
      %336 = vmatpush1.bf16.msra.mxu0 0
      %337 = vmatprep.subr.bf16.mxu0 0
      %338 = vmatpush1.bf16.msra.mxu0 0
      %339 = vmatprep.mubr.bf16.mxu0 0
      %340 = vmatmul.mubr.bf16.gmra.mrb[0].mxu0 %v301
      %v341 = vpop.f32.mrb[0].mxu0
      %v342 = vadd.f32 0.0, %v341
      %v343 = vpop.f32.mrb[0].mxu0
      %v344 = vpop.f32.mrb[0].mxu0
      %v345 = vadd.f32 0.0, %v344
      %v346 = vpop.f32.mrb[0].mxu0
      %347 = vdwg.mxu0
      %v348 = vadd.f32 %v256, %v342
      %v349 = vadd.f32 %v257, %v345
      %vm350 = vcmask 523264
      %351 = vst.msk [vmem:[#allocation2] sm:$0xff] %vm350, %v348
      %352 = vst.msk [vmem:[#allocation2 + $0x8] sm:$0xff] %vm350, %v349
      // Predicated region
      $region41: #{bottle_stack_forward.16} parent=35 // pred_check
        %p353 = pneg %p247
      $region42: #{bottle_stack_forward.16} parent=35 // pred_check_branch
        %355 = sbr.rel (%p353) target = $region44
      $region43: #{bottle_stack_forward.16} parent=35 // pred_region
        %v356 = vld [vmem:[#allocation2] sm:$0xff]
        %v357 = vld [vmem:[#allocation2 + $0x8] sm:$0xff]
        %v358 = vld [vmem:[%s2] sm:$0x1]
        %v360 = vlaneseq
        %v361 = vshrl.u32 %v360, 7
        %v362 = vsub.s32 0, %v361
        %v363 = vrot.slane %v358, %v362
        %v365 = vmul.f32 %v356, %v363
        %v366 = vmul.f32 %v357, %v363
        %v367 = vld [vmem:[%s3] sm:$0x1]
        %v369 = vlaneseq
        %v370 = vshrl.u32 %v369, 7
        %v371 = vsub.s32 0, %v370
        %v372 = vrot.slane %v367, %v371
        %v374 = vadd.f32 %v365, %v372
        %v375 = vadd.f32 %v366, %v372
        %v376 = vpack.c.bf16 %v375, %v374
        %v378 = vunpack.c.l.b16 %v376
        %v379 = vunpack.c.h.b16 %v376
        %v380 = vpack.c.b16 %v378, %v378
        %v381 = vpack.c.b16 %v379, %v379
        %vm384 = vcmask 519168
        %385 = vst.msk [vmem:[%s244] sm:$0xf] %vm384, %v380
        %386 = vst.msk [vmem:[%s244 + $0x4] sm:$0xf] %vm384, %v381
      $region44: #{bottle_stack_forward.16} parent=35 // pred_fallthru
        _
      %s387 = smul.u32 2, %s19
      %p388 = scmp.lt.s32.totalorder %s387, 3
      %s389 = scalar_select %p388, %s387, 3
      %s390 = smul.addr %s389, 4
      %s391 = scalar_lea.vmem %s4, %s390
      // Predicated region
      $region45: #{bottle_stack_forward.16} parent=35 // pred_check
        %p392 = pneg %p141
      $region46: #{bottle_stack_forward.16} parent=35 // pred_check_branch
        %394 = sbr.rel (%p392) target = $region48
      $region47: #{bottle_stack_forward.16} parent=35 // pred_region
        %s395 = smul.u32 2, %s19
      $region48: #{bottle_stack_forward.16} parent=35 // pred_fallthru
        _
    $region36: #{bottle_stack_forward.16} parent=5 // pred_fallthru
      _
    %p396 = scmp.le.s32.totalorder 2, %s10
    // Predicated region
    $region49: #{bottle_stack_forward.16} parent=5 // pred_check
      %p397 = pneg %p396
    $region50: #{bottle_stack_forward.16} parent=5 // pred_check_branch
      %399 = sbr.rel (%p397) target = $region52
    $region51: #{bottle_stack_forward.16} parent=5 // pred_region
      %s400 = ssub.s32 %s10, 2
      // Predicated region
      $region53: #{bottle_stack_forward.16} parent=51 // pred_check
        %p401 = pneg %p147
      $region54: #{bottle_stack_forward.16} parent=51 // pred_check_branch
        %403 = sbr.rel (%p401) target = $region56
      $region55: #{bottle_stack_forward.16} parent=51 // pred_region
        %s404 = smul.u32 2, %s21
        %p405 = scmp.lt.s32.totalorder %s404, 3
        %s406 = scalar_select %p405, %s404, 3
        %s407 = smul.addr %s406, 4
        %s408 = scalar_lea.vmem %s4, %s407
      $region56: #{bottle_stack_forward.16} parent=51 // pred_fallthru
        _
    $region52: #{bottle_stack_forward.16} parent=5 // pred_fallthru
      _
  $region6: #{bottle_stack_forward.16} parent=0 // loop_footer
    %s14 = sadd.s32 1, %s10
  $region7: #{bottle_stack_forward.16} parent=0 // loop_footer_branch
    %9 = sbr.rel target = $region3
  $region8: #{bottle_stack_forward.16} parent=0 // loop_exit
    _

// kernel: bottle_stack_forward.18
$region0: #{bottle_stack_forward.18}
  #allocation0 [shape = 'u32[]', space=smem, size = 0x4, offset = 0x4, fixed_abs, tag = 'smem constant byte address 0x4 - core index']
  #allocation1 [shape = 'u32[144,128]{1,0:T(1,128)}', space=vmem, size = 0x12000, scoped, tag = 'internal scratch']
  #allocation2 [shape = 'f32[64,48]{1,0:T(8,128)}', space=vmem, size = 0x8000, scoped, tag = 'scratch operand']
  %s0 = inlined_call_operand.vmem [shape: bf16[128,16], index: 0, kind: input, shape index: {}]
  %s1 = inlined_call_operand.vmem [shape: bf16[16,48], index: 1, kind: input, shape index: {}]
  %s2 = inlined_call_operand.vmem [shape: bf16[128,48], index: 2, kind: output, shape index: {}]
  %s3 = sld [smem:[#allocation0]]
  $region49: #{bottle_stack_forward.18} parent=0
    _
  %s5 = ssub.s32 1, %s3
  %s6 = scalar_select 0, %s5, %s3
  loop: start=0, step=1, limit=4
  $region2: #{bottle_stack_forward.18} parent=0 // loop_pre_header
    _
  $region3: #{bottle_stack_forward.18} parent=0 // loop_header
    %s8 = sphi 0, %s12
    %p9 = scmp.ge.s32.totalorder %s8, 4
    %s15 = sphi 0, %s27
    %s16 = sphi 0, %s23
    %s17 = sphi 0, %s15
    %s18 = sphi 0, %s16
    %s19 = sphi 0, %s17
    %s20 = sphi 0, %s18
    %s32 = sphi 0, %s34
    %s35 = sphi 0, %s32
    %s36 = sphi 0, %s35
    %s52 = sphi 0, %s36
    %s58 = sphi 0, %s60
    %s61 = sphi 0, %s58
    %s62 = sphi 0, %s61
    %s78 = sphi 0, %s62
    %s84 = sphi 0, %s86
    %s87 = sphi 0, %s84
    %s88 = sphi 0, %s87
    %s104 = sphi 0, %s88
  $region4: #{bottle_stack_forward.18} parent=0 // loop_header_branch
    %11 = sbr.rel (%p9) target = $region8
  $region5: #{bottle_stack_forward.18} parent=0 // loop_body
    %s13 = ssub.s32 %s8, 1
    %s14 = ssub.s32 %s8, 2
    %s21 = sadd.s32 1, %s16
    %p22 = scmp.ge.s32.totalorder %s21, 1
    %s23 = scalar_select %p22, 0, %s21
    %s24 = sadd.s32 1, %s15
    %s25 = scalar_select %p22, %s24, %s15
    %p26 = scmp.ge.s32.totalorder %s25, 2
    %s27 = scalar_select %p26, 0, %s25
    %s28 = ssub.s32 %s15, %s27
    %s29 = ssub.s32 %s16, %s23
    %s30 = sor.u32 %s28, %s29
    %p31 = scmp.eq.s32.totalorder %s30, 0
    %s33 = sadd.s32 %s32, 1
    %s34 = scalar_select %p31, %s32, %s33
    %p37 = pneg %p31
    %p38 = scmp.eq.s32.totalorder %s8, 1
    %p39 = por %p37, %p38
    %p40 = scmp.ne.s32.totalorder %s32, %s35
    %p41 = scmp.eq.s32.totalorder %s8, 0
    %p42 = por %p40, %p41
    %p43 = scmp.ne.s32.totalorder %s32, %s35
    %p44 = scmp.eq.s32.totalorder %s13, 1
    %p45 = por %p43, %p44
    %p46 = scmp.ne.s32.totalorder %s35, %s36
    %p47 = scmp.eq.s32.totalorder %s13, 0
    %p48 = por %p46, %p47
    %p49 = scmp.ne.s32.totalorder %s35, %s36
    %p50 = scmp.eq.s32.totalorder %s14, 1
    %p51 = por %p49, %p50
    %p53 = scmp.ne.s32.totalorder %s36, %s52
    %p54 = scmp.eq.s32.totalorder %s14, 0
    %p55 = por %p53, %p54
    %s56 = ssub.s32 %s16, %s23
    %p57 = scmp.eq.s32.totalorder %s56, 0
    %s59 = sadd.s32 %s58, 1
    %s60 = scalar_select %p57, %s58, %s59
    %p63 = pneg %p57
    %p64 = scmp.eq.s32.totalorder %s8, 1
    %p65 = por %p63, %p64
    %p66 = scmp.ne.s32.totalorder %s58, %s61
    %p67 = scmp.eq.s32.totalorder %s8, 0
    %p68 = por %p66, %p67
    %p69 = scmp.ne.s32.totalorder %s58, %s61
    %p70 = scmp.eq.s32.totalorder %s13, 1
    %p71 = por %p69, %p70
    %p72 = scmp.ne.s32.totalorder %s61, %s62
    %p73 = scmp.eq.s32.totalorder %s13, 0
    %p74 = por %p72, %p73
    %p75 = scmp.ne.s32.totalorder %s61, %s62
    %p76 = scmp.eq.s32.totalorder %s14, 1
    %p77 = por %p75, %p76
    %p79 = scmp.ne.s32.totalorder %s62, %s78
    %p80 = scmp.eq.s32.totalorder %s14, 0
    %p81 = por %p79, %p80
    %s82 = ssub.s32 %s15, %s27
    %p83 = scmp.eq.s32.totalorder %s82, 0
    %s85 = sadd.s32 %s84, 1
    %s86 = scalar_select %p83, %s84, %s85
    %p89 = pneg %p83
    %p90 = scmp.eq.s32.totalorder %s8, 1
    %p91 = por %p89, %p90
    %p92 = scmp.ne.s32.totalorder %s84, %s87
    %p93 = scmp.eq.s32.totalorder %s8, 0
    %p94 = por %p92, %p93
    %p95 = scmp.ne.s32.totalorder %s84, %s87
    %p96 = scmp.eq.s32.totalorder %s13, 1
    %p97 = por %p95, %p96
    %p98 = scmp.ne.s32.totalorder %s87, %s88
    %p99 = scmp.eq.s32.totalorder %s13, 0
    %p100 = por %p98, %p99
    %p101 = scmp.ne.s32.totalorder %s87, %s88
    %p102 = scmp.eq.s32.totalorder %s14, 1
    %p103 = por %p101, %p102
    %p105 = scmp.ne.s32.totalorder %s88, %s104
    %p106 = scmp.eq.s32.totalorder %s14, 0
    %p107 = por %p105, %p106
    %p108 = scmp.le.s32.totalorder 1, %s8
    %p109 = scmp.lt.s32.totalorder %s8, 3
    %p110 = pnand %p108, %p109
    %p111 = pneg %p110
    // Predicated region
    $region9: #{bottle_stack_forward.18} parent=5 // pred_check
      _
    $region10: #{bottle_stack_forward.18} parent=5 // pred_check_branch
      %113 = sbr.rel (%p110) target = $region12
    $region11: #{bottle_stack_forward.18} parent=5 // pred_region
      %s114 = ssub.s32 %s8, 1
      // Predicated region
      $region13: #{bottle_stack_forward.18} parent=11 // pred_check
        %p115 = pneg %p74
      $region14: #{bottle_stack_forward.18} parent=11 // pred_check_branch
        %117 = sbr.rel (%p115) target = $region16
      $region15: #{bottle_stack_forward.18} parent=11 // pred_region
        %s118 = smul.u32 2, %s18
        %p119 = scmp.lt.s32.totalorder %s118, 1
        %s120 = scalar_select %p119, %s118, 1
        %s121 = smul.addr %s120, 4
        %s122 = scalar_lea.vmem %s1, %s121
        %s123 = smul.u32 2, %s18
      $region16: #{bottle_stack_forward.18} parent=11 // pred_fallthru
        _
    $region12: #{bottle_stack_forward.18} parent=5 // pred_fallthru
      _
    %p124 = scmp.lt.s32.totalorder %s8, 2
    // Predicated region
    $region17: #{bottle_stack_forward.18} parent=5 // pred_check
      %p125 = pneg %p124
    $region18: #{bottle_stack_forward.18} parent=5 // pred_check_branch
      %127 = sbr.rel (%p125) target = $region20
    $region19: #{bottle_stack_forward.18} parent=5 // pred_region
      // Predicated region
      $region21: #{bottle_stack_forward.18} parent=19 // pred_check
        %p128 = pneg %p42
      $region22: #{bottle_stack_forward.18} parent=19 // pred_check_branch
        %130 = sbr.rel (%p128) target = $region24
      $region23: #{bottle_stack_forward.18} parent=19 // pred_region
        %s131 = smul.u32 8, %s15
        %p132 = scmp.lt.s32.totalorder %s131, 15
        %s133 = scalar_select %p132, %s131, 15
        %p134 = scmp.lt.s32.totalorder %s16, 0
        %s135 = scalar_select %p134, %s16, 0
        %s136 = sadd.s32 %s135, %s133
        %s137 = smul.addr %s136, 4
        %s138 = scalar_lea.vmem %s0, %s137
        %s139 = smul.u32 8, %s15
      $region24: #{bottle_stack_forward.18} parent=19 // pred_fallthru
        _
    $region20: #{bottle_stack_forward.18} parent=5 // pred_fallthru
      _
    %p140 = scmp.le.s32.totalorder 1, %s8
    %p141 = scmp.lt.s32.totalorder %s8, 3
    %p142 = pnand %p140, %p141
    %p143 = pneg %p142
    // Predicated region
    $region25: #{bottle_stack_forward.18} parent=5 // pred_check
      _
    $region26: #{bottle_stack_forward.18} parent=5 // pred_check_branch
      %145 = sbr.rel (%p142) target = $region28
    $region27: #{bottle_stack_forward.18} parent=5 // pred_region
      %s146 = ssub.s32 %s8, 1
      %s147 = smul.u32 8, %s17
      %p148 = scmp.lt.s32.totalorder %s147, 15
      %s149 = scalar_select %p148, %s147, 15
      %p150 = scmp.lt.s32.totalorder %s18, 0
      %s151 = scalar_select %p150, %s18, 0
      %s152 = sadd.s32 %s151, %s149
      %s153 = smul.addr %s152, 4
      %s154 = scalar_lea.vmem %s0, %s153
      %p155 = pneg %p48
      %p156 = pneg %p45
      %s157 = smul.u32 2, %s18
      %p158 = scmp.lt.s32.totalorder %s157, 1
      %s159 = scalar_select %p158, %s157, 1
      %s160 = smul.addr %s159, 4
      %s161 = scalar_lea.vmem %s1, %s160
      %p162 = pneg %p74
      %p163 = pneg %p71
      %p164 = pneg %p100
      %p165 = pneg %p97
      %s166 = smul.u32 8, %s17
      %p167 = scmp.lt.s32.totalorder %s166, 15
      %s168 = scalar_select %p167, %s166, 15
      %s169 = smul.addr %s168, 4
      %s170 = scalar_lea.vmem %s2, %s169
      %s171 = smul.u32 8, %s17
      %p172 = scmp.lt.s32.totalorder %s171, 15
      %s173 = scalar_select %p172, %s171, 15
      %p174 = scmp.lt.s32.totalorder %s18, 0
      %s175 = scalar_select %p174, %s18, 0
      %s176 = sadd.s32 %s175, %s173
      %s177 = smul.addr %s176, 4
      %s178 = scalar_lea.vmem %s0, %s177
      %s179 = smul.u32 8, %s17
      %s180 = smul.u32 2, %s18
      %p181 = scmp.lt.s32.totalorder %s180, 1
      %s182 = scalar_select %p181, %s180, 1
      %s183 = smul.addr %s182, 4
      %s184 = scalar_lea.vmem %s1, %s183
      %s185 = smul.u32 2, %s18
      %s186 = smul.u32 8, %s17
      %p187 = scmp.lt.s32.totalorder %s186, 15
      %s188 = scalar_select %p187, %s186, 15
      %s189 = smul.addr %s188, 4
      %s190 = scalar_lea.vmem %s2, %s189
      %s191 = smul.u32 8, %s17
      %p193 = scmp.eq.s32.totalorder %s18, 0
      // Predicated region
      $region29: #{bottle_stack_forward.18} parent=27 // pred_check
        %p194 = pneg %p193
      $region30: #{bottle_stack_forward.18} parent=27 // pred_check_branch
        %196 = sbr.rel (%p194) target = $region32
      $region31: #{bottle_stack_forward.18} parent=27 // pred_region
        %vm197 = vcmask 392192
        %198 = vst.msk [vmem:[#allocation2] sm:$0xff] %vm197, 0.0
        %199 = vst.msk [vmem:[#allocation2 + $0x8] sm:$0xff] %vm197, 0.0
        %200 = vst.msk [vmem:[#allocation2 + $0x10] sm:$0xff] %vm197, 0.0
        %201 = vst.msk [vmem:[#allocation2 + $0x18] sm:$0xff] %vm197, 0.0
        %202 = vst.msk [vmem:[#allocation2 + $0x20] sm:$0xff] %vm197, 0.0
        %203 = vst.msk [vmem:[#allocation2 + $0x28] sm:$0xff] %vm197, 0.0
        %204 = vst.msk [vmem:[#allocation2 + $0x30] sm:$0xff] %vm197, 0.0
        %205 = vst.msk [vmem:[#allocation2 + $0x38] sm:$0xff] %vm197, 0.0
      $region32: #{bottle_stack_forward.18} parent=27 // pred_fallthru
        _
      %v206 = vld [vmem:[%s178] sm:$0xf]
      %v207 = vld [vmem:[%s178 + $0x4] sm:$0xf]
      %v208 = vld [vmem:[%s178 + $0x8] sm:$0xf]
      %v209 = vld [vmem:[%s178 + $0xc] sm:$0xf]
      %v210 = vld [vmem:[%s178 + $0x10] sm:$0xf]
      %v211 = vld [vmem:[%s178 + $0x14] sm:$0xf]
      %v212 = vld [vmem:[%s178 + $0x18] sm:$0xf]
      %v213 = vld [vmem:[%s178 + $0x1c] sm:$0xf]
      %v214 = vld [vmem:[#allocation2] sm:$0xff]
      %v215 = vld [vmem:[#allocation2 + $0x8] sm:$0xff]
      %v216 = vld [vmem:[#allocation2 + $0x10] sm:$0xff]
      %v217 = vld [vmem:[#allocation2 + $0x18] sm:$0xff]
      %v218 = vld [vmem:[#allocation2 + $0x20] sm:$0xff]
      %v219 = vld [vmem:[#allocation2 + $0x28] sm:$0xff]
      %v220 = vld [vmem:[#allocation2 + $0x30] sm:$0xff]
      %v221 = vld [vmem:[#allocation2 + $0x38] sm:$0xff]
      %v222 = vld [vmem:[%s184] sm:$0xf]
      %v223 = vld [vmem:[%s184 + $0x4] sm:$0xf]
      %v232 = vunpack.c.l.b16 %v206
      %v233 = vunpack.c.l.b16 %v207
      %v234 = vunpack.c.l.b16 %v208
      %v235 = vunpack.c.l.b16 %v209
      %v236 = vunpack.c.l.b16 %v210
      %v237 = vunpack.c.l.b16 %v211
      %v238 = vunpack.c.l.b16 %v212
      %v239 = vunpack.c.l.b16 %v213
      %v240 = vpack.c.b16 %v233, %v232
      %v241 = vpack.c.b16 %v235, %v234
      %v242 = vpack.c.b16 %v237, %v236
      %v243 = vpack.c.b16 %v239, %v238
      %v246 = vunpack.c.l.b16 %v222
      %v247 = vunpack.c.l.b16 %v223
      %v248 = vpack.c.b16 %v247, %v246
      %vm250 = vcmask 130048
      %v252 = vsel %vm250, %v240, 0
      %v255 = vsel %vm250, %v241, 0
      %v258 = vsel %vm250, %v242, 0
      %v261 = vsel %vm250, %v243, 0
      %263 = vmatprep.subr.bf16.mxu0 0
      %264 = vmatpush1.bf16.msra.mxu0 %v248
      %265 = vmatprep.subr.bf16.mxu0 0
      %266 = vmatpush1.bf16.msra.mxu0 0
      %267 = vmatprep.subr.bf16.mxu0 0
      %268 = vmatpush1.bf16.msra.mxu0 0
      %269 = vmatprep.subr.bf16.mxu0 0
      %270 = vmatpush1.bf16.msra.mxu0 0
      %271 = vmatprep.subr.bf16.mxu0 0
      %272 = vmatpush1.bf16.msra.mxu0 0
      %273 = vmatprep.subr.bf16.mxu0 0
      %274 = vmatpush1.bf16.msra.mxu0 0
      %275 = vmatprep.subr.bf16.mxu0 0
      %276 = vmatpush1.bf16.msra.mxu0 0
      %277 = vmatprep.subr.bf16.mxu0 0
      %278 = vmatpush1.bf16.msra.mxu0 0
      %279 = vmatprep.subr.bf16.mxu0 0
      %280 = vmatpush1.bf16.msra.mxu0 0
      %281 = vmatprep.subr.bf16.mxu0 0
      %282 = vmatpush1.bf16.msra.mxu0 0
      %283 = vmatprep.subr.bf16.mxu0 0
      %284 = vmatpush1.bf16.msra.mxu0 0
      %285 = vmatprep.subr.bf16.mxu0 0
      %286 = vmatpush1.bf16.msra.mxu0 0
      %287 = vmatprep.subr.bf16.mxu0 0
      %288 = vmatpush1.bf16.msra.mxu0 0
      %289 = vmatprep.subr.bf16.mxu0 0
      %290 = vmatpush1.bf16.msra.mxu0 0
      %291 = vmatprep.subr.bf16.mxu0 0
      %292 = vmatpush1.bf16.msra.mxu0 0
      %293 = vmatprep.subr.bf16.mxu0 0
      %294 = vmatpush1.bf16.msra.mxu0 0
      %295 = vmatprep.mubr.bf16.mxu0 0
      %296 = vmatmul.mubr.bf16.gmra.mrb[0].mxu0 %v252
      %v297 = vpop.f32.mrb[0].mxu0
      %v298 = vadd.f32 0.0, %v297
      %v299 = vpop.f32.mrb[0].mxu0
      %v300 = vpop.f32.mrb[0].mxu0
      %v301 = vadd.f32 0.0, %v300
      %v302 = vpop.f32.mrb[0].mxu0
      %303 = vmatprep.mubr.bf16.mxu0 0
      %304 = vmatmul.mubr.bf16.gmra.mrb[0].mxu0 %v255
      %v305 = vpop.f32.mrb[0].mxu0
      %v306 = vadd.f32 0.0, %v305
      %v307 = vpop.f32.mrb[0].mxu0
      %v308 = vpop.f32.mrb[0].mxu0
      %v309 = vadd.f32 0.0, %v308
      %v310 = vpop.f32.mrb[0].mxu0
      %311 = vmatprep.mubr.bf16.mxu0 0
      %312 = vmatmul.mubr.bf16.gmra.mrb[0].mxu0 %v258
      %v313 = vpop.f32.mrb[0].mxu0
      %v314 = vadd.f32 0.0, %v313
      %v315 = vpop.f32.mrb[0].mxu0
      %v316 = vpop.f32.mrb[0].mxu0
      %v317 = vadd.f32 0.0, %v316
      %v318 = vpop.f32.mrb[0].mxu0
      %319 = vmatprep.mubr.bf16.mxu0 0
      %320 = vmatmul.mubr.bf16.gmra.mrb[0].mxu0 %v261
      %v321 = vpop.f32.mrb[0].mxu0
      %v322 = vadd.f32 0.0, %v321
      %v323 = vpop.f32.mrb[0].mxu0
      %v324 = vpop.f32.mrb[0].mxu0
      %v325 = vadd.f32 0.0, %v324
      %v326 = vpop.f32.mrb[0].mxu0
      %327 = vdwg.mxu0
      %v328 = vadd.f32 %v214, %v298
      %v329 = vadd.f32 %v215, %v301
      %v330 = vadd.f32 %v216, %v306
      %v331 = vadd.f32 %v217, %v309
      %v332 = vadd.f32 %v218, %v314
      %v333 = vadd.f32 %v219, %v317
      %v334 = vadd.f32 %v220, %v322
      %v335 = vadd.f32 %v221, %v325
      %vm336 = vcmask 392192
      %337 = vst.msk [vmem:[#allocation2] sm:$0xff] %vm336, %v328
      %338 = vst.msk [vmem:[#allocation2 + $0x8] sm:$0xff] %vm336, %v329
      %339 = vst.msk [vmem:[#allocation2 + $0x10] sm:$0xff] %vm336, %v330
      %340 = vst.msk [vmem:[#allocation2 + $0x18] sm:$0xff] %vm336, %v331
      %341 = vst.msk [vmem:[#allocation2 + $0x20] sm:$0xff] %vm336, %v332
      %342 = vst.msk [vmem:[#allocation2 + $0x28] sm:$0xff] %vm336, %v333
      %343 = vst.msk [vmem:[#allocation2 + $0x30] sm:$0xff] %vm336, %v334
      %344 = vst.msk [vmem:[#allocation2 + $0x38] sm:$0xff] %vm336, %v335
      // Predicated region
      $region33: #{bottle_stack_forward.18} parent=27 // pred_check
        %p345 = pneg %p193
      $region34: #{bottle_stack_forward.18} parent=27 // pred_check_branch
        %347 = sbr.rel (%p345) target = $region36
      $region35: #{bottle_stack_forward.18} parent=27 // pred_region
        %v348 = vld [vmem:[#allocation2] sm:$0xff]
        %v349 = vld [vmem:[#allocation2 + $0x8] sm:$0xff]
        %v350 = vld [vmem:[#allocation2 + $0x10] sm:$0xff]
        %v351 = vld [vmem:[#allocation2 + $0x18] sm:$0xff]
        %v352 = vld [vmem:[#allocation2 + $0x20] sm:$0xff]
        %v353 = vld [vmem:[#allocation2 + $0x28] sm:$0xff]
        %v354 = vld [vmem:[#allocation2 + $0x30] sm:$0xff]
        %v355 = vld [vmem:[#allocation2 + $0x38] sm:$0xff]
        %v356 = vpack.c.bf16 %v349, %v348
        %v357 = vpack.c.bf16 %v351, %v350
        %v358 = vpack.c.bf16 %v353, %v352
        %v359 = vpack.c.bf16 %v355, %v354
        %v364 = vunpack.c.l.b16 %v356
        %v365 = vunpack.c.h.b16 %v356
        %v366 = vunpack.c.l.b16 %v357
        %v367 = vunpack.c.h.b16 %v357
        %v368 = vunpack.c.l.b16 %v358
        %v369 = vunpack.c.h.b16 %v358
        %v370 = vunpack.c.l.b16 %v359
        %v371 = vunpack.c.h.b16 %v359
        %v372 = vpack.c.b16 %v364, %v364
        %v373 = vpack.c.b16 %v365, %v365
        %v374 = vpack.c.b16 %v366, %v366
        %v375 = vpack.c.b16 %v367, %v367
        %v376 = vpack.c.b16 %v368, %v368
        %v377 = vpack.c.b16 %v369, %v369
        %v378 = vpack.c.b16 %v370, %v370
        %v379 = vpack.c.b16 %v371, %v371
        %vm388 = vcmask 388096
        %389 = vst.msk [vmem:[%s190] sm:$0xf] %vm388, %v372
        %390 = vst.msk [vmem:[%s190 + $0x4] sm:$0xf] %vm388, %v373
        %391 = vst.msk [vmem:[%s190 + $0x8] sm:$0xf] %vm388, %v374
        %392 = vst.msk [vmem:[%s190 + $0xc] sm:$0xf] %vm388, %v375
        %393 = vst.msk [vmem:[%s190 + $0x10] sm:$0xf] %vm388, %v376
        %394 = vst.msk [vmem:[%s190 + $0x14] sm:$0xf] %vm388, %v377
        %395 = vst.msk [vmem:[%s190 + $0x18] sm:$0xf] %vm388, %v378
        %396 = vst.msk [vmem:[%s190 + $0x1c] sm:$0xf] %vm388, %v379
      $region36: #{bottle_stack_forward.18} parent=27 // pred_fallthru
        _
      %s397 = smul.u32 8, %s17
      %p398 = scmp.lt.s32.totalorder %s397, 15
      %s399 = scalar_select %p398, %s397, 15
      %s400 = smul.addr %s399, 4
      %s401 = scalar_lea.vmem %s2, %s400
      // Predicated region
      $region37: #{bottle_stack_forward.18} parent=27 // pred_check
        %p402 = pneg %p97
      $region38: #{bottle_stack_forward.18} parent=27 // pred_check_branch
        %404 = sbr.rel (%p402) target = $region40
      $region39: #{bottle_stack_forward.18} parent=27 // pred_region
        %s405 = smul.u32 8, %s17
      $region40: #{bottle_stack_forward.18} parent=27 // pred_fallthru
        _
    $region28: #{bottle_stack_forward.18} parent=5 // pred_fallthru
      _
    %p406 = scmp.le.s32.totalorder 2, %s8
    // Predicated region
    $region41: #{bottle_stack_forward.18} parent=5 // pred_check
      %p407 = pneg %p406
    $region42: #{bottle_stack_forward.18} parent=5 // pred_check_branch
      %409 = sbr.rel (%p407) target = $region44
    $region43: #{bottle_stack_forward.18} parent=5 // pred_region
      %s410 = ssub.s32 %s8, 2
      // Predicated region
      $region45: #{bottle_stack_forward.18} parent=43 // pred_check
        %p411 = pneg %p103
      $region46: #{bottle_stack_forward.18} parent=43 // pred_check_branch
        %413 = sbr.rel (%p411) target = $region48
      $region47: #{bottle_stack_forward.18} parent=43 // pred_region
        %s414 = smul.u32 8, %s19
        %p415 = scmp.lt.s32.totalorder %s414, 15
        %s416 = scalar_select %p415, %s414, 15
        %s417 = smul.addr %s416, 4
        %s418 = scalar_lea.vmem %s2, %s417
      $region48: #{bottle_stack_forward.18} parent=43 // pred_fallthru
        _
    $region44: #{bottle_stack_forward.18} parent=5 // pred_fallthru
      _
  $region6: #{bottle_stack_forward.18} parent=0 // loop_footer
    %s12 = sadd.s32 1, %s8
  $region7: #{bottle_stack_forward.18} parent=0 // loop_footer_branch
    %7 = sbr.rel target = $region3
  $region8: #{bottle_stack_forward.18} parent=0 // loop_exit
    _

// kernel: bottle_stack_forward.17
$region0: #{bottle_stack_forward.17}
  #allocation0 [shape = 'u32[]', space=smem, size = 0x4, offset = 0x4, fixed_abs, tag = 'smem constant byte address 0x4 - core index']
  #allocation1 [shape = 'u32[144,128]{1,0:T(1,128)}', space=vmem, size = 0x12000, scoped, tag = 'internal scratch']
  #allocation2 [shape = 'f32[64,16]{1,0:T(8,128)}', space=vmem, size = 0x8000, scoped, tag = 'scratch operand']
  %s0 = inlined_call_operand.vmem [shape: bf16[128,8], index: 0, kind: input, shape index: {}]
  %s1 = inlined_call_operand.vmem [shape: bf16[8,16], index: 1, kind: input, shape index: {}]
  %s2 = inlined_call_operand.vmem [shape: f32[1,16], index: 2, kind: input, shape index: {}]
  %s3 = inlined_call_operand.vmem [shape: f32[1,16], index: 3, kind: input, shape index: {}]
  %s4 = inlined_call_operand.vmem [shape: bf16[128,16], index: 4, kind: output, shape index: {}]
  %s5 = sld [smem:[#allocation0]]
  $region57: #{bottle_stack_forward.17} parent=0
    _
  %s7 = ssub.s32 1, %s5
  %s8 = scalar_select 0, %s7, %s5
  loop: start=0, step=1, limit=4
  $region2: #{bottle_stack_forward.17} parent=0 // loop_pre_header
    _
  $region3: #{bottle_stack_forward.17} parent=0 // loop_header
    %s10 = sphi 0, %s14
    %p11 = scmp.ge.s32.totalorder %s10, 4
    %s17 = sphi 0, %s29
    %s18 = sphi 0, %s25
    %s19 = sphi 0, %s17
    %s20 = sphi 0, %s18
    %s21 = sphi 0, %s19
    %s22 = sphi 0, %s20
    %s34 = sphi 0, %s36
    %s37 = sphi 0, %s34
    %s38 = sphi 0, %s37
    %s54 = sphi 0, %s38
    %s60 = sphi 0, %s62
    %s63 = sphi 0, %s60
    %s64 = sphi 0, %s63
    %s80 = sphi 0, %s64
    %s84 = sphi 0, %s84
    %s86 = sphi 0, %s84
    %s87 = sphi 0, %s86
    %s101 = sphi 0, %s87
    %s105 = sphi 0, %s105
    %s107 = sphi 0, %s105
    %s108 = sphi 0, %s107
    %s122 = sphi 0, %s108
    %s128 = sphi 0, %s130
    %s131 = sphi 0, %s128
    %s132 = sphi 0, %s131
    %s148 = sphi 0, %s132
  $region4: #{bottle_stack_forward.17} parent=0 // loop_header_branch
    %13 = sbr.rel (%p11) target = $region8
  $region5: #{bottle_stack_forward.17} parent=0 // loop_body
    %s15 = ssub.s32 %s10, 1
    %s16 = ssub.s32 %s10, 2
    %s23 = sadd.s32 1, %s18
    %p24 = scmp.ge.s32.totalorder %s23, 1
    %s25 = scalar_select %p24, 0, %s23
    %s26 = sadd.s32 1, %s17
    %s27 = scalar_select %p24, %s26, %s17
    %p28 = scmp.ge.s32.totalorder %s27, 2
    %s29 = scalar_select %p28, 0, %s27
    %s30 = ssub.s32 %s17, %s29
    %s31 = ssub.s32 %s18, %s25
    %s32 = sor.u32 %s30, %s31
    %p33 = scmp.eq.s32.totalorder %s32, 0
    %s35 = sadd.s32 %s34, 1
    %s36 = scalar_select %p33, %s34, %s35
    %p39 = pneg %p33
    %p40 = scmp.eq.s32.totalorder %s10, 1
    %p41 = por %p39, %p40
    %p42 = scmp.ne.s32.totalorder %s34, %s37
    %p43 = scmp.eq.s32.totalorder %s10, 0
    %p44 = por %p42, %p43
    %p45 = scmp.ne.s32.totalorder %s34, %s37
    %p46 = scmp.eq.s32.totalorder %s15, 1
    %p47 = por %p45, %p46
    %p48 = scmp.ne.s32.totalorder %s37, %s38
    %p49 = scmp.eq.s32.totalorder %s15, 0
    %p50 = por %p48, %p49
    %p51 = scmp.ne.s32.totalorder %s37, %s38
    %p52 = scmp.eq.s32.totalorder %s16, 1
    %p53 = por %p51, %p52
    %p55 = scmp.ne.s32.totalorder %s38, %s54
    %p56 = scmp.eq.s32.totalorder %s16, 0
    %p57 = por %p55, %p56
    %s58 = ssub.s32 %s18, %s25
    %p59 = scmp.eq.s32.totalorder %s58, 0
    %s61 = sadd.s32 %s60, 1
    %s62 = scalar_select %p59, %s60, %s61
    %p65 = pneg %p59
    %p66 = scmp.eq.s32.totalorder %s10, 1
    %p67 = por %p65, %p66
    %p68 = scmp.ne.s32.totalorder %s60, %s63
    %p69 = scmp.eq.s32.totalorder %s10, 0
    %p70 = por %p68, %p69
    %p71 = scmp.ne.s32.totalorder %s60, %s63
    %p72 = scmp.eq.s32.totalorder %s15, 1
    %p73 = por %p71, %p72
    %p74 = scmp.ne.s32.totalorder %s63, %s64
    %p75 = scmp.eq.s32.totalorder %s15, 0
    %p76 = por %p74, %p75
    %p77 = scmp.ne.s32.totalorder %s63, %s64
    %p78 = scmp.eq.s32.totalorder %s16, 1
    %p79 = por %p77, %p78
    %p81 = scmp.ne.s32.totalorder %s64, %s80
    %p82 = scmp.eq.s32.totalorder %s16, 0
    %p83 = por %p81, %p82
    %s85 = sadd.s32 %s84, 1
    %p88 = scmp.eq.s32.totalorder %s10, 1
    %p89 = scmp.ne.s32.totalorder %s84, %s86
    %p90 = scmp.eq.s32.totalorder %s10, 0
    %p91 = por %p89, %p90
    %p92 = scmp.ne.s32.totalorder %s84, %s86
    %p93 = scmp.eq.s32.totalorder %s15, 1
    %p94 = por %p92, %p93
    %p95 = scmp.ne.s32.totalorder %s86, %s87
    %p96 = scmp.eq.s32.totalorder %s15, 0
    %p97 = por %p95, %p96
    %p98 = scmp.ne.s32.totalorder %s86, %s87
    %p99 = scmp.eq.s32.totalorder %s16, 1
    %p100 = por %p98, %p99
    %p102 = scmp.ne.s32.totalorder %s87, %s101
    %p103 = scmp.eq.s32.totalorder %s16, 0
    %p104 = por %p102, %p103
    %s106 = sadd.s32 %s105, 1
    %p109 = scmp.eq.s32.totalorder %s10, 1
    %p110 = scmp.ne.s32.totalorder %s105, %s107
    %p111 = scmp.eq.s32.totalorder %s10, 0
    %p112 = por %p110, %p111
    %p113 = scmp.ne.s32.totalorder %s105, %s107
    %p114 = scmp.eq.s32.totalorder %s15, 1
    %p115 = por %p113, %p114
    %p116 = scmp.ne.s32.totalorder %s107, %s108
    %p117 = scmp.eq.s32.totalorder %s15, 0
    %p118 = por %p116, %p117
    %p119 = scmp.ne.s32.totalorder %s107, %s108
    %p120 = scmp.eq.s32.totalorder %s16, 1
    %p121 = por %p119, %p120
    %p123 = scmp.ne.s32.totalorder %s108, %s122
    %p124 = scmp.eq.s32.totalorder %s16, 0
    %p125 = por %p123, %p124
    %s126 = ssub.s32 %s17, %s29
    %p127 = scmp.eq.s32.totalorder %s126, 0
    %s129 = sadd.s32 %s128, 1
    %s130 = scalar_select %p127, %s128, %s129
    %p133 = pneg %p127
    %p134 = scmp.eq.s32.totalorder %s10, 1
    %p135 = por %p133, %p134
    %p136 = scmp.ne.s32.totalorder %s128, %s131
    %p137 = scmp.eq.s32.totalorder %s10, 0
    %p138 = por %p136, %p137
    %p139 = scmp.ne.s32.totalorder %s128, %s131
    %p140 = scmp.eq.s32.totalorder %s15, 1
    %p141 = por %p139, %p140
    %p142 = scmp.ne.s32.totalorder %s131, %s132
    %p143 = scmp.eq.s32.totalorder %s15, 0
    %p144 = por %p142, %p143
    %p145 = scmp.ne.s32.totalorder %s131, %s132
    %p146 = scmp.eq.s32.totalorder %s16, 1
    %p147 = por %p145, %p146
    %p149 = scmp.ne.s32.totalorder %s132, %s148
    %p150 = scmp.eq.s32.totalorder %s16, 0
    %p151 = por %p149, %p150
    %p152 = scmp.le.s32.totalorder 1, %s10
    %p153 = scmp.lt.s32.totalorder %s10, 3
    %p154 = pnand %p152, %p153
    %p155 = pneg %p154
    // Predicated region
    $region9: #{bottle_stack_forward.17} parent=5 // pred_check
      _
    $region10: #{bottle_stack_forward.17} parent=5 // pred_check_branch
      %157 = sbr.rel (%p154) target = $region12
    $region11: #{bottle_stack_forward.17} parent=5 // pred_region
      %s158 = ssub.s32 %s10, 1
      // Predicated region
      $region13: #{bottle_stack_forward.17} parent=11 // pred_check
        %p159 = pneg %p76
      $region14: #{bottle_stack_forward.17} parent=11 // pred_check_branch
        %161 = sbr.rel (%p159) target = $region16
      $region15: #{bottle_stack_forward.17} parent=11 // pred_region
        %p162 = scmp.lt.s32.totalorder %s20, 0
        %s163 = scalar_select %p162, %s20, 0
        %s164 = smul.addr %s163, 4
        %s165 = scalar_lea.vmem %s1, %s164
      $region16: #{bottle_stack_forward.17} parent=11 // pred_fallthru
        _
      // Predicated region
      $region17: #{bottle_stack_forward.17} parent=11 // pred_check
        %p166 = pneg %p97
      $region18: #{bottle_stack_forward.17} parent=11 // pred_check_branch
        %168 = sbr.rel (%p166) target = $region20
      $region19: #{bottle_stack_forward.17} parent=11 // pred_region
        _
      $region20: #{bottle_stack_forward.17} parent=11 // pred_fallthru
        _
      // Predicated region
      $region21: #{bottle_stack_forward.17} parent=11 // pred_check
        %p169 = pneg %p118
      $region22: #{bottle_stack_forward.17} parent=11 // pred_check_branch
        %171 = sbr.rel (%p169) target = $region24
      $region23: #{bottle_stack_forward.17} parent=11 // pred_region
        _
      $region24: #{bottle_stack_forward.17} parent=11 // pred_fallthru
        _
    $region12: #{bottle_stack_forward.17} parent=5 // pred_fallthru
      _
    %p172 = scmp.lt.s32.totalorder %s10, 2
    // Predicated region
    $region25: #{bottle_stack_forward.17} parent=5 // pred_check
      %p173 = pneg %p172
    $region26: #{bottle_stack_forward.17} parent=5 // pred_check_branch
      %175 = sbr.rel (%p173) target = $region28
    $region27: #{bottle_stack_forward.17} parent=5 // pred_region
      // Predicated region
      $region29: #{bottle_stack_forward.17} parent=27 // pred_check
        %p176 = pneg %p44
      $region30: #{bottle_stack_forward.17} parent=27 // pred_check_branch
        %178 = sbr.rel (%p176) target = $region32
      $region31: #{bottle_stack_forward.17} parent=27 // pred_region
        %s179 = smul.u32 8, %s17
        %p180 = scmp.lt.s32.totalorder %s179, 15
        %s181 = scalar_select %p180, %s179, 15
        %p182 = scmp.lt.s32.totalorder %s18, 0
        %s183 = scalar_select %p182, %s18, 0
        %s184 = sadd.s32 %s183, %s181
        %s185 = smul.addr %s184, 4
        %s186 = scalar_lea.vmem %s0, %s185
        %s187 = smul.u32 8, %s17
      $region32: #{bottle_stack_forward.17} parent=27 // pred_fallthru
        _
    $region28: #{bottle_stack_forward.17} parent=5 // pred_fallthru
      _
    %p188 = scmp.le.s32.totalorder 1, %s10
    %p189 = scmp.lt.s32.totalorder %s10, 3
    %p190 = pnand %p188, %p189
    %p191 = pneg %p190
    // Predicated region
    $region33: #{bottle_stack_forward.17} parent=5 // pred_check
      _
    $region34: #{bottle_stack_forward.17} parent=5 // pred_check_branch
      %193 = sbr.rel (%p190) target = $region36
    $region35: #{bottle_stack_forward.17} parent=5 // pred_region
      %s194 = ssub.s32 %s10, 1
      %s195 = smul.u32 8, %s19
      %p196 = scmp.lt.s32.totalorder %s195, 15
      %s197 = scalar_select %p196, %s195, 15
      %p198 = scmp.lt.s32.totalorder %s20, 0
      %s199 = scalar_select %p198, %s20, 0
      %s200 = sadd.s32 %s199, %s197
      %s201 = smul.addr %s200, 4
      %s202 = scalar_lea.vmem %s0, %s201
      %p203 = pneg %p50
      %p204 = pneg %p47
      %p205 = scmp.lt.s32.totalorder %s20, 0
      %s206 = scalar_select %p205, %s20, 0
      %s207 = smul.addr %s206, 4
      %s208 = scalar_lea.vmem %s1, %s207
      %p209 = pneg %p76
      %p210 = pneg %p73
      %p211 = pneg %p97
      %p212 = pneg %p94
      %p213 = pneg %p118
      %p214 = pneg %p115
      %p215 = pneg %p144
      %p216 = pneg %p141
      %s217 = smul.u32 8, %s19
      %p218 = scmp.lt.s32.totalorder %s217, 15
      %s219 = scalar_select %p218, %s217, 15
      %s220 = smul.addr %s219, 4
      %s221 = scalar_lea.vmem %s4, %s220
      %s222 = smul.u32 8, %s19
      %p223 = scmp.lt.s32.totalorder %s222, 15
      %s224 = scalar_select %p223, %s222, 15
      %p225 = scmp.lt.s32.totalorder %s20, 0
      %s226 = scalar_select %p225, %s20, 0
      %s227 = sadd.s32 %s226, %s224
      %s228 = smul.addr %s227, 4
      %s229 = scalar_lea.vmem %s0, %s228
      %s230 = smul.u32 8, %s19
      %p231 = scmp.lt.s32.totalorder %s20, 0
      %s232 = scalar_select %p231, %s20, 0
      %s233 = smul.addr %s232, 4
      %s234 = scalar_lea.vmem %s1, %s233
      %s235 = smul.u32 8, %s19
      %p236 = scmp.lt.s32.totalorder %s235, 15
      %s237 = scalar_select %p236, %s235, 15
      %s238 = smul.addr %s237, 4
      %s239 = scalar_lea.vmem %s4, %s238
      %s240 = smul.u32 8, %s19
      %p242 = scmp.eq.s32.totalorder %s20, 0
      // Predicated region
      $region37: #{bottle_stack_forward.17} parent=35 // pred_check
        %p243 = pneg %p242
      $region38: #{bottle_stack_forward.17} parent=35 // pred_check_branch
        %245 = sbr.rel (%p243) target = $region40
      $region39: #{bottle_stack_forward.17} parent=35 // pred_region
        %vm246 = vcmask 130048
        %247 = vst.msk [vmem:[#allocation2] sm:$0xff] %vm246, 0.0
        %248 = vst.msk [vmem:[#allocation2 + $0x8] sm:$0xff] %vm246, 0.0
        %249 = vst.msk [vmem:[#allocation2 + $0x10] sm:$0xff] %vm246, 0.0
        %250 = vst.msk [vmem:[#allocation2 + $0x18] sm:$0xff] %vm246, 0.0
        %251 = vst.msk [vmem:[#allocation2 + $0x20] sm:$0xff] %vm246, 0.0
        %252 = vst.msk [vmem:[#allocation2 + $0x28] sm:$0xff] %vm246, 0.0
        %253 = vst.msk [vmem:[#allocation2 + $0x30] sm:$0xff] %vm246, 0.0
        %254 = vst.msk [vmem:[#allocation2 + $0x38] sm:$0xff] %vm246, 0.0
      $region40: #{bottle_stack_forward.17} parent=35 // pred_fallthru
        _
      %v255 = vld [vmem:[%s229] sm:$0xf]
      %v256 = vld [vmem:[%s229 + $0x4] sm:$0xf]
      %v257 = vld [vmem:[%s229 + $0x8] sm:$0xf]
      %v258 = vld [vmem:[%s229 + $0xc] sm:$0xf]
      %v259 = vld [vmem:[%s229 + $0x10] sm:$0xf]
      %v260 = vld [vmem:[%s229 + $0x14] sm:$0xf]
      %v261 = vld [vmem:[%s229 + $0x18] sm:$0xf]
      %v262 = vld [vmem:[%s229 + $0x1c] sm:$0xf]
      %v263 = vld [vmem:[#allocation2] sm:$0xff]
      %v264 = vld [vmem:[#allocation2 + $0x8] sm:$0xff]
      %v265 = vld [vmem:[#allocation2 + $0x10] sm:$0xff]
      %v266 = vld [vmem:[#allocation2 + $0x18] sm:$0xff]
      %v267 = vld [vmem:[#allocation2 + $0x20] sm:$0xff]
      %v268 = vld [vmem:[#allocation2 + $0x28] sm:$0xff]
      %v269 = vld [vmem:[#allocation2 + $0x30] sm:$0xff]
      %v270 = vld [vmem:[#allocation2 + $0x38] sm:$0xff]
      %v271 = vld [vmem:[%s234] sm:$0xf]
      %v280 = vunpack.c.l.b16 %v255
      %v281 = vunpack.c.l.b16 %v256
      %v282 = vunpack.c.l.b16 %v257
      %v283 = vunpack.c.l.b16 %v258
      %v284 = vunpack.c.l.b16 %v259
      %v285 = vunpack.c.l.b16 %v260
      %v286 = vunpack.c.l.b16 %v261
      %v287 = vunpack.c.l.b16 %v262
      %v288 = vpack.c.b16 %v281, %v280
      %v289 = vpack.c.b16 %v283, %v282
      %v290 = vpack.c.b16 %v285, %v284
      %v291 = vpack.c.b16 %v287, %v286
      %vm292 = vcmask 64512
      %v294 = vsel %vm292, %v288, 0
      %v297 = vsel %vm292, %v289, 0
      %v300 = vsel %vm292, %v290, 0
      %v303 = vsel %vm292, %v291, 0
      %vm305 = vcmask 1043456
      %v307 = vsel %vm305, %v271, 0
      %309 = vmatprep.subr.bf16.mxu0 0
      %310 = vmatpush1.bf16.msra.mxu0 %v307
      %311 = vmatprep.subr.bf16.mxu0 0
      %312 = vmatpush1.bf16.msra.mxu0 0
      %313 = vmatprep.subr.bf16.mxu0 0
      %314 = vmatpush1.bf16.msra.mxu0 0
      %315 = vmatprep.subr.bf16.mxu0 0
      %316 = vmatpush1.bf16.msra.mxu0 0
      %317 = vmatprep.subr.bf16.mxu0 0
      %318 = vmatpush1.bf16.msra.mxu0 0
      %319 = vmatprep.subr.bf16.mxu0 0
      %320 = vmatpush1.bf16.msra.mxu0 0
      %321 = vmatprep.subr.bf16.mxu0 0
      %322 = vmatpush1.bf16.msra.mxu0 0
      %323 = vmatprep.subr.bf16.mxu0 0
      %324 = vmatpush1.bf16.msra.mxu0 0
      %325 = vmatprep.subr.bf16.mxu0 0
      %326 = vmatpush1.bf16.msra.mxu0 0
      %327 = vmatprep.subr.bf16.mxu0 0
      %328 = vmatpush1.bf16.msra.mxu0 0
      %329 = vmatprep.subr.bf16.mxu0 0
      %330 = vmatpush1.bf16.msra.mxu0 0
      %331 = vmatprep.subr.bf16.mxu0 0
      %332 = vmatpush1.bf16.msra.mxu0 0
      %333 = vmatprep.subr.bf16.mxu0 0
      %334 = vmatpush1.bf16.msra.mxu0 0
      %335 = vmatprep.subr.bf16.mxu0 0
      %336 = vmatpush1.bf16.msra.mxu0 0
      %337 = vmatprep.subr.bf16.mxu0 0
      %338 = vmatpush1.bf16.msra.mxu0 0
      %339 = vmatprep.subr.bf16.mxu0 0
      %340 = vmatpush1.bf16.msra.mxu0 0
      %341 = vmatprep.mubr.bf16.mxu0 0
      %342 = vmatmul.mubr.bf16.gmra.mrb[0].mxu0 %v294
      %v343 = vpop.f32.mrb[0].mxu0
      %v344 = vadd.f32 0.0, %v343
      %v345 = vpop.f32.mrb[0].mxu0
      %v346 = vpop.f32.mrb[0].mxu0
      %v347 = vadd.f32 0.0, %v346
      %v348 = vpop.f32.mrb[0].mxu0
      %349 = vmatprep.mubr.bf16.mxu0 0
      %350 = vmatmul.mubr.bf16.gmra.mrb[0].mxu0 %v297
      %v351 = vpop.f32.mrb[0].mxu0
      %v352 = vadd.f32 0.0, %v351
      %v353 = vpop.f32.mrb[0].mxu0
      %v354 = vpop.f32.mrb[0].mxu0
      %v355 = vadd.f32 0.0, %v354
      %v356 = vpop.f32.mrb[0].mxu0
      %357 = vmatprep.mubr.bf16.mxu0 0
      %358 = vmatmul.mubr.bf16.gmra.mrb[0].mxu0 %v300
      %v359 = vpop.f32.mrb[0].mxu0
      %v360 = vadd.f32 0.0, %v359
      %v361 = vpop.f32.mrb[0].mxu0
      %v362 = vpop.f32.mrb[0].mxu0
      %v363 = vadd.f32 0.0, %v362
      %v364 = vpop.f32.mrb[0].mxu0
      %365 = vmatprep.mubr.bf16.mxu0 0
      %366 = vmatmul.mubr.bf16.gmra.mrb[0].mxu0 %v303
      %v367 = vpop.f32.mrb[0].mxu0
      %v368 = vadd.f32 0.0, %v367
      %v369 = vpop.f32.mrb[0].mxu0
      %v370 = vpop.f32.mrb[0].mxu0
      %v371 = vadd.f32 0.0, %v370
      %v372 = vpop.f32.mrb[0].mxu0
      %373 = vdwg.mxu0
      %v374 = vadd.f32 %v263, %v344
      %v375 = vadd.f32 %v264, %v347
      %v376 = vadd.f32 %v265, %v352
      %v377 = vadd.f32 %v266, %v355
      %v378 = vadd.f32 %v267, %v360
      %v379 = vadd.f32 %v268, %v363
      %v380 = vadd.f32 %v269, %v368
      %v381 = vadd.f32 %v270, %v371
      %vm382 = vcmask 130048
      %383 = vst.msk [vmem:[#allocation2] sm:$0xff] %vm382, %v374
      %384 = vst.msk [vmem:[#allocation2 + $0x8] sm:$0xff] %vm382, %v375
      %385 = vst.msk [vmem:[#allocation2 + $0x10] sm:$0xff] %vm382, %v376
      %386 = vst.msk [vmem:[#allocation2 + $0x18] sm:$0xff] %vm382, %v377
      %387 = vst.msk [vmem:[#allocation2 + $0x20] sm:$0xff] %vm382, %v378
      %388 = vst.msk [vmem:[#allocation2 + $0x28] sm:$0xff] %vm382, %v379
      %389 = vst.msk [vmem:[#allocation2 + $0x30] sm:$0xff] %vm382, %v380
      %390 = vst.msk [vmem:[#allocation2 + $0x38] sm:$0xff] %vm382, %v381
      // Predicated region
      $region41: #{bottle_stack_forward.17} parent=35 // pred_check
        %p391 = pneg %p242
      $region42: #{bottle_stack_forward.17} parent=35 // pred_check_branch
        %393 = sbr.rel (%p391) target = $region44
      $region43: #{bottle_stack_forward.17} parent=35 // pred_region
        %v394 = vld [vmem:[#allocation2] sm:$0xff]
        %v395 = vld [vmem:[#allocation2 + $0x8] sm:$0xff]
        %v396 = vld [vmem:[#allocation2 + $0x10] sm:$0xff]
        %v397 = vld [vmem:[#allocation2 + $0x18] sm:$0xff]
        %v398 = vld [vmem:[#allocation2 + $0x20] sm:$0xff]
        %v399 = vld [vmem:[#allocation2 + $0x28] sm:$0xff]
        %v400 = vld [vmem:[#allocation2 + $0x30] sm:$0xff]
        %v401 = vld [vmem:[#allocation2 + $0x38] sm:$0xff]
        %v402 = vld [vmem:[%s2] sm:$0x1]
        %v404 = vlaneseq
        %v405 = vshrl.u32 %v404, 7
        %v406 = vsub.s32 0, %v405
        %v407 = vrot.slane %v402, %v406
        %v409 = vmul.f32 %v394, %v407
        %v410 = vmul.f32 %v395, %v407
        %v411 = vmul.f32 %v396, %v407
        %v412 = vmul.f32 %v397, %v407
        %v413 = vmul.f32 %v398, %v407
        %v414 = vmul.f32 %v399, %v407
        %v415 = vmul.f32 %v400, %v407
        %v416 = vmul.f32 %v401, %v407
        %v417 = vld [vmem:[%s3] sm:$0x1]
        %v419 = vlaneseq
        %v420 = vshrl.u32 %v419, 7
        %v421 = vsub.s32 0, %v420
        %v422 = vrot.slane %v417, %v421
        %v424 = vadd.f32 %v409, %v422
        %v425 = vadd.f32 %v410, %v422
        %v426 = vadd.f32 %v411, %v422
        %v427 = vadd.f32 %v412, %v422
        %v428 = vadd.f32 %v413, %v422
        %v429 = vadd.f32 %v414, %v422
        %v430 = vadd.f32 %v415, %v422
        %v431 = vadd.f32 %v416, %v422
        %v432 = vmax.f32 %v424, 0.0
        %v433 = vmax.f32 %v425, 0.0
        %v434 = vmax.f32 %v426, 0.0
        %v435 = vmax.f32 %v427, 0.0
        %v436 = vmax.f32 %v428, 0.0
        %v437 = vmax.f32 %v429, 0.0
        %v438 = vmax.f32 %v430, 0.0
        %v439 = vmax.f32 %v431, 0.0
        %v440 = vpack.c.bf16 %v433, %v432
        %v441 = vpack.c.bf16 %v435, %v434
        %v442 = vpack.c.bf16 %v437, %v436
        %v443 = vpack.c.bf16 %v439, %v438
        %v448 = vunpack.c.l.b16 %v440
        %v449 = vunpack.c.h.b16 %v440
        %v450 = vunpack.c.l.b16 %v441
        %v451 = vunpack.c.h.b16 %v441
        %v452 = vunpack.c.l.b16 %v442
        %v453 = vunpack.c.h.b16 %v442
        %v454 = vunpack.c.l.b16 %v443
        %v455 = vunpack.c.h.b16 %v443
        %v456 = vpack.c.b16 %v448, %v448
        %v457 = vpack.c.b16 %v449, %v449
        %v458 = vpack.c.b16 %v450, %v450
        %v459 = vpack.c.b16 %v451, %v451
        %v460 = vpack.c.b16 %v452, %v452
        %v461 = vpack.c.b16 %v453, %v453
        %v462 = vpack.c.b16 %v454, %v454
        %v463 = vpack.c.b16 %v455, %v455
        %vm472 = vcmask 125952
        %473 = vst.msk [vmem:[%s239] sm:$0xf] %vm472, %v456
        %474 = vst.msk [vmem:[%s239 + $0x4] sm:$0xf] %vm472, %v457
        %475 = vst.msk [vmem:[%s239 + $0x8] sm:$0xf] %vm472, %v458
        %476 = vst.msk [vmem:[%s239 + $0xc] sm:$0xf] %vm472, %v459
        %477 = vst.msk [vmem:[%s239 + $0x10] sm:$0xf] %vm472, %v460
        %478 = vst.msk [vmem:[%s239 + $0x14] sm:$0xf] %vm472, %v461
        %479 = vst.msk [vmem:[%s239 + $0x18] sm:$0xf] %vm472, %v462
        %480 = vst.msk [vmem:[%s239 + $0x1c] sm:$0xf] %vm472, %v463
      $region44: #{bottle_stack_forward.17} parent=35 // pred_fallthru
        _
      %s481 = smul.u32 8, %s19
      %p482 = scmp.lt.s32.totalorder %s481, 15
      %s483 = scalar_select %p482, %s481, 15
      %s484 = smul.addr %s483, 4
      %s485 = scalar_lea.vmem %s4, %s484
      // Predicated region
      $region45: #{bottle_stack_forward.17} parent=35 // pred_check
        %p486 = pneg %p141
      $region46: #{bottle_stack_forward.17} parent=35 // pred_check_branch
        %488 = sbr.rel (%p486) target = $region48
      $region47: #{bottle_stack_forward.17} parent=35 // pred_region
        %s489 = smul.u32 8, %s19
      $region48: #{bottle_stack_forward.17} parent=35 // pred_fallthru
        _
    $region36: #{bottle_stack_forward.17} parent=5 // pred_fallthru
      _
    %p490 = scmp.le.s32.totalorder 2, %s10
    // Predicated region
    $region49: #{bottle_stack_forward.17} parent=5 // pred_check
      %p491 = pneg %p490
    $region50: #{bottle_stack_forward.17} parent=5 // pred_check_branch
      %493 = sbr.rel (%p491) target = $region52
    $region51: #{bottle_stack_forward.17} parent=5 // pred_region
      %s494 = ssub.s32 %s10, 2
      // Predicated region
      $region53: #{bottle_stack_forward.17} parent=51 // pred_check
        %p495 = pneg %p147
      $region54: #{bottle_stack_forward.17} parent=51 // pred_check_branch
        %497 = sbr.rel (%p495) target = $region56
      $region55: #{bottle_stack_forward.17} parent=51 // pred_region
        %s498 = smul.u32 8, %s21
        %p499 = scmp.lt.s32.totalorder %s498, 15
        %s500 = scalar_select %p499, %s498, 15
        %s501 = smul.addr %s500, 4
        %s502 = scalar_lea.vmem %s4, %s501
      $region56: #{bottle_stack_forward.17} parent=51 // pred_fallthru
        _
    $region52: #{bottle_stack_forward.17} parent=5 // pred_fallthru
      _
  $region6: #{bottle_stack_forward.17} parent=0 // loop_footer
    %s14 = sadd.s32 1, %s10
  $region7: #{bottle_stack_forward.17} parent=0 // loop_footer_branch
    %9 = sbr.rel target = $region3
  $region8: #{bottle_stack_forward.17} parent=0 // loop_exit
    _

// kernel: bottle_stack_forward.19
$region0: #{bottle_stack_forward.19}
  #allocation0 [shape = 'u32[]', space=smem, size = 0x4, offset = 0x4, fixed_abs, tag = 'smem constant byte address 0x4 - core index']
  #allocation1 [shape = 'u32[144,128]{1,0:T(1,128)}', space=vmem, size = 0x12000, scoped, tag = 'internal scratch']
  %s0 = inlined_call_operand.vmem [shape: bf16[2,2,64,8], index: 0, kind: input, shape index: {}]
  %s1 = inlined_call_operand.vmem [shape: bf16[2,2,64,8], index: 1, kind: input, shape index: {}]
  %s2 = inlined_call_operand.vmem [shape: bf16[2,2,64,8], index: 2, kind: input, shape index: {}]
  %s3 = inlined_call_operand.vmem [shape: bf16[2,2,64,64], index: 3, kind: input, shape index: {}]
  %s4 = inlined_call_operand.vmem [shape: bf16[2,2,64,8], index: 4, kind: output, shape index: {}]
  %s5 = sld [smem:[#allocation0]]
  $region49: #{bottle_stack_forward.19} parent=0
    _
  %s7 = ssub.s32 1, %s5
  %s8 = scalar_select 0, %s7, %s5
  loop: start=0, step=1, limit=6
  $region2: #{bottle_stack_forward.19} parent=0 // loop_pre_header
    _
  $region3: #{bottle_stack_forward.19} parent=0 // loop_header
    %s10 = sphi 0, %s14
    %p11 = scmp.ge.s32.totalorder %s10, 6
    %s17 = sphi 0, %s29
    %s18 = sphi 0, %s25
    %s19 = sphi 0, %s17
    %s20 = sphi 0, %s18
    %s21 = sphi 0, %s19
    %s22 = sphi 0, %s20
    %s34 = sphi 0, %s36
    %s37 = sphi 0, %s34
    %s38 = sphi 0, %s37
    %s54 = sphi 0, %s38
    %s62 = sphi 0, %s64
    %s65 = sphi 0, %s62
    %s66 = sphi 0, %s65
    %s82 = sphi 0, %s66
    %s90 = sphi 0, %s92
    %s93 = sphi 0, %s90
    %s94 = sphi 0, %s93
    %s110 = sphi 0, %s94
    %s118 = sphi 0, %s120
    %s121 = sphi 0, %s118
    %s122 = sphi 0, %s121
    %s138 = sphi 0, %s122
    %s146 = sphi 0, %s148
    %s149 = sphi 0, %s146
    %s150 = sphi 0, %s149
    %s166 = sphi 0, %s150
  $region4: #{bottle_stack_forward.19} parent=0 // loop_header_branch
    %13 = sbr.rel (%p11) target = $region8
  $region5: #{bottle_stack_forward.19} parent=0 // loop_body
    %s15 = ssub.s32 %s10, 1
    %s16 = ssub.s32 %s10, 2
    %s23 = sadd.s32 1, %s18
    %p24 = scmp.ge.s32.totalorder %s23, 2
    %s25 = scalar_select %p24, 0, %s23
    %s26 = sadd.s32 1, %s17
    %s27 = scalar_select %p24, %s26, %s17
    %p28 = scmp.ge.s32.totalorder %s27, 2
    %s29 = scalar_select %p28, 0, %s27
    %s30 = ssub.s32 %s17, %s29
    %s31 = ssub.s32 %s18, %s25
    %s32 = sor.u32 %s30, %s31
    %p33 = scmp.eq.s32.totalorder %s32, 0
    %s35 = sadd.s32 %s34, 1
    %s36 = scalar_select %p33, %s34, %s35
    %p39 = pneg %p33
    %p40 = scmp.eq.s32.totalorder %s10, 3
    %p41 = por %p39, %p40
    %p42 = scmp.ne.s32.totalorder %s34, %s37
    %p43 = scmp.eq.s32.totalorder %s10, 0
    %p44 = por %p42, %p43
    %p45 = scmp.ne.s32.totalorder %s34, %s37
    %p46 = scmp.eq.s32.totalorder %s15, 3
    %p47 = por %p45, %p46
    %p48 = scmp.ne.s32.totalorder %s37, %s38
    %p49 = scmp.eq.s32.totalorder %s15, 0
    %p50 = por %p48, %p49
    %p51 = scmp.ne.s32.totalorder %s37, %s38
    %p52 = scmp.eq.s32.totalorder %s16, 3
    %p53 = por %p51, %p52
    %p55 = scmp.ne.s32.totalorder %s38, %s54
    %p56 = scmp.eq.s32.totalorder %s16, 0
    %p57 = por %p55, %p56
    %s58 = ssub.s32 %s17, %s29
    %s59 = ssub.s32 %s18, %s25
    %s60 = sor.u32 %s58, %s59
    %p61 = scmp.eq.s32.totalorder %s60, 0
    %s63 = sadd.s32 %s62, 1
    %s64 = scalar_select %p61, %s62, %s63
    %p67 = pneg %p61
    %p68 = scmp.eq.s32.totalorder %s10, 3
    %p69 = por %p67, %p68
    %p70 = scmp.ne.s32.totalorder %s62, %s65
    %p71 = scmp.eq.s32.totalorder %s10, 0
    %p72 = por %p70, %p71
    %p73 = scmp.ne.s32.totalorder %s62, %s65
    %p74 = scmp.eq.s32.totalorder %s15, 3
    %p75 = por %p73, %p74
    %p76 = scmp.ne.s32.totalorder %s65, %s66
    %p77 = scmp.eq.s32.totalorder %s15, 0
    %p78 = por %p76, %p77
    %p79 = scmp.ne.s32.totalorder %s65, %s66
    %p80 = scmp.eq.s32.totalorder %s16, 3
    %p81 = por %p79, %p80
    %p83 = scmp.ne.s32.totalorder %s66, %s82
    %p84 = scmp.eq.s32.totalorder %s16, 0
    %p85 = por %p83, %p84
    %s86 = ssub.s32 %s17, %s29
    %s87 = ssub.s32 %s18, %s25
    %s88 = sor.u32 %s86, %s87
    %p89 = scmp.eq.s32.totalorder %s88, 0
    %s91 = sadd.s32 %s90, 1
    %s92 = scalar_select %p89, %s90, %s91
    %p95 = pneg %p89
    %p96 = scmp.eq.s32.totalorder %s10, 3
    %p97 = por %p95, %p96
    %p98 = scmp.ne.s32.totalorder %s90, %s93
    %p99 = scmp.eq.s32.totalorder %s10, 0
    %p100 = por %p98, %p99
    %p101 = scmp.ne.s32.totalorder %s90, %s93
    %p102 = scmp.eq.s32.totalorder %s15, 3
    %p103 = por %p101, %p102
    %p104 = scmp.ne.s32.totalorder %s93, %s94
    %p105 = scmp.eq.s32.totalorder %s15, 0
    %p106 = por %p104, %p105
    %p107 = scmp.ne.s32.totalorder %s93, %s94
    %p108 = scmp.eq.s32.totalorder %s16, 3
    %p109 = por %p107, %p108
    %p111 = scmp.ne.s32.totalorder %s94, %s110
    %p112 = scmp.eq.s32.totalorder %s16, 0
    %p113 = por %p111, %p112
    %s114 = ssub.s32 %s17, %s29
    %s115 = ssub.s32 %s18, %s25
    %s116 = sor.u32 %s114, %s115
    %p117 = scmp.eq.s32.totalorder %s116, 0
    %s119 = sadd.s32 %s118, 1
    %s120 = scalar_select %p117, %s118, %s119
    %p123 = pneg %p117
    %p124 = scmp.eq.s32.totalorder %s10, 3
    %p125 = por %p123, %p124
    %p126 = scmp.ne.s32.totalorder %s118, %s121
    %p127 = scmp.eq.s32.totalorder %s10, 0
    %p128 = por %p126, %p127
    %p129 = scmp.ne.s32.totalorder %s118, %s121
    %p130 = scmp.eq.s32.totalorder %s15, 3
    %p131 = por %p129, %p130
    %p132 = scmp.ne.s32.totalorder %s121, %s122
    %p133 = scmp.eq.s32.totalorder %s15, 0
    %p134 = por %p132, %p133
    %p135 = scmp.ne.s32.totalorder %s121, %s122
    %p136 = scmp.eq.s32.totalorder %s16, 3
    %p137 = por %p135, %p136
    %p139 = scmp.ne.s32.totalorder %s122, %s138
    %p140 = scmp.eq.s32.totalorder %s16, 0
    %p141 = por %p139, %p140
    %s142 = ssub.s32 %s17, %s29
    %s143 = ssub.s32 %s18, %s25
    %s144 = sor.u32 %s142, %s143
    %p145 = scmp.eq.s32.totalorder %s144, 0
    %s147 = sadd.s32 %s146, 1
    %s148 = scalar_select %p145, %s146, %s147
    %p151 = pneg %p145
    %p152 = scmp.eq.s32.totalorder %s10, 3
    %p153 = por %p151, %p152
    %p154 = scmp.ne.s32.totalorder %s146, %s149
    %p155 = scmp.eq.s32.totalorder %s10, 0
    %p156 = por %p154, %p155
    %p157 = scmp.ne.s32.totalorder %s146, %s149
    %p158 = scmp.eq.s32.totalorder %s15, 3
    %p159 = por %p157, %p158
    %p160 = scmp.ne.s32.totalorder %s149, %s150
    %p161 = scmp.eq.s32.totalorder %s15, 0
    %p162 = por %p160, %p161
    %p163 = scmp.ne.s32.totalorder %s149, %s150
    %p164 = scmp.eq.s32.totalorder %s16, 3
    %p165 = por %p163, %p164
    %p167 = scmp.ne.s32.totalorder %s150, %s166
    %p168 = scmp.eq.s32.totalorder %s16, 0
    %p169 = por %p167, %p168
    %p170 = scmp.le.s32.totalorder 1, %s10
    %p171 = scmp.lt.s32.totalorder %s10, 5
    %p172 = pnand %p170, %p171
    %p173 = pneg %p172
    // Predicated region
    $region9: #{bottle_stack_forward.19} parent=5 // pred_check
      _
    $region10: #{bottle_stack_forward.19} parent=5 // pred_check_branch
      %175 = sbr.rel (%p172) target = $region12
    $region11: #{bottle_stack_forward.19} parent=5 // pred_region
      %s176 = ssub.s32 %s10, 1
    $region12: #{bottle_stack_forward.19} parent=5 // pred_fallthru
      _
    %p177 = scmp.lt.s32.totalorder %s10, 4
    // Predicated region
    $region13: #{bottle_stack_forward.19} parent=5 // pred_check
      %p178 = pneg %p177
    $region14: #{bottle_stack_forward.19} parent=5 // pred_check_branch
      %180 = sbr.rel (%p178) target = $region16
    $region15: #{bottle_stack_forward.19} parent=5 // pred_region
      // Predicated region
      $region17: #{bottle_stack_forward.19} parent=15 // pred_check
        %p181 = pneg %p44
      $region18: #{bottle_stack_forward.19} parent=15 // pred_check_branch
        %183 = sbr.rel (%p181) target = $region20
      $region19: #{bottle_stack_forward.19} parent=15 // pred_region
        %p184 = scmp.lt.s32.totalorder %s17, 1
        %s185 = scalar_select %p184, %s17, 1
        %p186 = scmp.lt.s32.totalorder %s18, 1
        %s187 = scalar_select %p186, %s18, 1
        %s188 = smul.addr %s187, 8
        %s189 = smul.addr %s185, 16
        %s190 = sadd.s32 %s188, %s189
        %s191 = smul.addr %s190, 4
        %s192 = scalar_lea.vmem %s0, %s191
      $region20: #{bottle_stack_forward.19} parent=15 // pred_fallthru
        _
      // Predicated region
      $region21: #{bottle_stack_forward.19} parent=15 // pred_check
        %p193 = pneg %p72
      $region22: #{bottle_stack_forward.19} parent=15 // pred_check_branch
        %195 = sbr.rel (%p193) target = $region24
      $region23: #{bottle_stack_forward.19} parent=15 // pred_region
        %p196 = scmp.lt.s32.totalorder %s17, 1
        %s197 = scalar_select %p196, %s17, 1
        %p198 = scmp.lt.s32.totalorder %s18, 1
        %s199 = scalar_select %p198, %s18, 1
        %s200 = smul.addr %s199, 8
        %s201 = smul.addr %s197, 16
        %s202 = sadd.s32 %s200, %s201
        %s203 = smul.addr %s202, 4
        %s204 = scalar_lea.vmem %s1, %s203
      $region24: #{bottle_stack_forward.19} parent=15 // pred_fallthru
        _
      // Predicated region
      $region25: #{bottle_stack_forward.19} parent=15 // pred_check
        %p205 = pneg %p100
      $region26: #{bottle_stack_forward.19} parent=15 // pred_check_branch
        %207 = sbr.rel (%p205) target = $region28
      $region27: #{bottle_stack_forward.19} parent=15 // pred_region
        %p208 = scmp.lt.s32.totalorder %s17, 1
        %s209 = scalar_select %p208, %s17, 1
        %p210 = scmp.lt.s32.totalorder %s18, 1
        %s211 = scalar_select %p210, %s18, 1
        %s212 = smul.addr %s211, 8
        %s213 = smul.addr %s209, 16
        %s214 = sadd.s32 %s212, %s213
        %s215 = smul.addr %s214, 4
        %s216 = scalar_lea.vmem %s2, %s215
      $region28: #{bottle_stack_forward.19} parent=15 // pred_fallthru
        _
      // Predicated region
      $region29: #{bottle_stack_forward.19} parent=15 // pred_check
        %p217 = pneg %p128
      $region30: #{bottle_stack_forward.19} parent=15 // pred_check_branch
        %219 = sbr.rel (%p217) target = $region32
      $region31: #{bottle_stack_forward.19} parent=15 // pred_region
        %p220 = scmp.lt.s32.totalorder %s17, 1
        %s221 = scalar_select %p220, %s17, 1
        %p222 = scmp.lt.s32.totalorder %s18, 1
        %s223 = scalar_select %p222, %s18, 1
        %s224 = smul.addr %s223, 8
        %s225 = smul.addr %s221, 16
        %s226 = sadd.s32 %s224, %s225
        %s227 = smul.addr %s226, 4
        %s228 = scalar_lea.vmem %s3, %s227
      $region32: #{bottle_stack_forward.19} parent=15 // pred_fallthru
        _
    $region16: #{bottle_stack_forward.19} parent=5 // pred_fallthru
      _
    %p229 = scmp.le.s32.totalorder 1, %s10
    %p230 = scmp.lt.s32.totalorder %s10, 5
    %p231 = pnand %p229, %p230
    %p232 = pneg %p231
    // Predicated region
    $region33: #{bottle_stack_forward.19} parent=5 // pred_check
      _
    $region34: #{bottle_stack_forward.19} parent=5 // pred_check_branch
      %234 = sbr.rel (%p231) target = $region36
    $region35: #{bottle_stack_forward.19} parent=5 // pred_region
      %s235 = ssub.s32 %s10, 1
      %p236 = scmp.lt.s32.totalorder %s19, 1
      %s237 = scalar_select %p236, %s19, 1
      %p238 = scmp.lt.s32.totalorder %s20, 1
      %s239 = scalar_select %p238, %s20, 1
      %s240 = smul.addr %s239, 8
      %s241 = smul.addr %s237, 16
      %s242 = sadd.s32 %s240, %s241
      %s243 = smul.addr %s242, 4
      %s244 = scalar_lea.vmem %s0, %s243
      %p245 = pneg %p50
      %p246 = pneg %p47
      %p247 = scmp.lt.s32.totalorder %s19, 1
      %s248 = scalar_select %p247, %s19, 1
      %p249 = scmp.lt.s32.totalorder %s20, 1
      %s250 = scalar_select %p249, %s20, 1
      %s251 = smul.addr %s250, 8
      %s252 = smul.addr %s248, 16
      %s253 = sadd.s32 %s251, %s252
      %s254 = smul.addr %s253, 4
      %s255 = scalar_lea.vmem %s1, %s254
      %p256 = pneg %p78
      %p257 = pneg %p75
      %p258 = scmp.lt.s32.totalorder %s19, 1
      %s259 = scalar_select %p258, %s19, 1
      %p260 = scmp.lt.s32.totalorder %s20, 1
      %s261 = scalar_select %p260, %s20, 1
      %s262 = smul.addr %s261, 8
      %s263 = smul.addr %s259, 16
      %s264 = sadd.s32 %s262, %s263
      %s265 = smul.addr %s264, 4
      %s266 = scalar_lea.vmem %s2, %s265
      %p267 = pneg %p106
      %p268 = pneg %p103
      %p269 = scmp.lt.s32.totalorder %s19, 1
      %s270 = scalar_select %p269, %s19, 1
      %p271 = scmp.lt.s32.totalorder %s20, 1
      %s272 = scalar_select %p271, %s20, 1
      %s273 = smul.addr %s272, 8
      %s274 = smul.addr %s270, 16
      %s275 = sadd.s32 %s273, %s274
      %s276 = smul.addr %s275, 4
      %s277 = scalar_lea.vmem %s3, %s276
      %p278 = pneg %p134
      %p279 = pneg %p131
      %p280 = pneg %p162
      %p281 = pneg %p159
      %p282 = scmp.lt.s32.totalorder %s19, 1
      %s283 = scalar_select %p282, %s19, 1
      %p284 = scmp.lt.s32.totalorder %s20, 1
      %s285 = scalar_select %p284, %s20, 1
      %s286 = smul.addr %s285, 8
      %s287 = smul.addr %s283, 16
      %s288 = sadd.s32 %s286, %s287
      %s289 = smul.addr %s288, 4
      %s290 = scalar_lea.vmem %s4, %s289
      %p291 = scmp.lt.s32.totalorder %s19, 1
      %s292 = scalar_select %p291, %s19, 1
      %p293 = scmp.lt.s32.totalorder %s20, 1
      %s294 = scalar_select %p293, %s20, 1
      %s295 = smul.addr %s294, 8
      %s296 = smul.addr %s292, 16
      %s297 = sadd.s32 %s295, %s296
      %s298 = smul.addr %s297, 4
      %s299 = scalar_lea.vmem %s0, %s298
      %p300 = scmp.lt.s32.totalorder %s19, 1
      %s301 = scalar_select %p300, %s19, 1
      %p302 = scmp.lt.s32.totalorder %s20, 1
      %s303 = scalar_select %p302, %s20, 1
      %s304 = smul.addr %s303, 8
      %s305 = smul.addr %s301, 16
      %s306 = sadd.s32 %s304, %s305
      %s307 = smul.addr %s306, 4
      %s308 = scalar_lea.vmem %s1, %s307
      %p309 = scmp.lt.s32.totalorder %s19, 1
      %s310 = scalar_select %p309, %s19, 1
      %p311 = scmp.lt.s32.totalorder %s20, 1
      %s312 = scalar_select %p311, %s20, 1
      %s313 = smul.addr %s312, 8
      %s314 = smul.addr %s310, 16
      %s315 = sadd.s32 %s313, %s314
      %s316 = smul.addr %s315, 4
      %s317 = scalar_lea.vmem %s2, %s316
      %p318 = scmp.lt.s32.totalorder %s19, 1
      %s319 = scalar_select %p318, %s19, 1
      %p320 = scmp.lt.s32.totalorder %s20, 1
      %s321 = scalar_select %p320, %s20, 1
      %s322 = smul.addr %s321, 8
      %s323 = smul.addr %s319, 16
      %s324 = sadd.s32 %s322, %s323
      %s325 = smul.addr %s324, 4
      %s326 = scalar_lea.vmem %s3, %s325
      %p327 = scmp.lt.s32.totalorder %s19, 1
      %s328 = scalar_select %p327, %s19, 1
      %p329 = scmp.lt.s32.totalorder %s20, 1
      %s330 = scalar_select %p329, %s20, 1
      %s331 = smul.addr %s330, 8
      %s332 = smul.addr %s328, 16
      %s333 = sadd.s32 %s331, %s332
      %s334 = smul.addr %s333, 4
      %s335 = scalar_lea.vmem %s4, %s334
      %v337 = vld [vmem:[%s299] sm:$0xf]
      %v338 = vld [vmem:[%s299 + $0x4] sm:$0xf]
      %v339 = vld [vmem:[%s299 + $0x8] sm:$0xf]
      %v340 = vld [vmem:[%s299 + $0xc] sm:$0xf]
      %v341 = vld [vmem:[%s299 + $0x10] sm:$0xf]
      %v342 = vld [vmem:[%s299 + $0x14] sm:$0xf]
      %v343 = vld [vmem:[%s299 + $0x18] sm:$0xf]
      %v344 = vld [vmem:[%s299 + $0x1c] sm:$0xf]
      %v345 = vld [vmem:[%s308] sm:$0xf]
      %v346 = vld [vmem:[%s308 + $0x4] sm:$0xf]
      %v347 = vld [vmem:[%s308 + $0x8] sm:$0xf]
      %v348 = vld [vmem:[%s308 + $0xc] sm:$0xf]
      %v349 = vld [vmem:[%s308 + $0x10] sm:$0xf]
      %v350 = vld [vmem:[%s308 + $0x14] sm:$0xf]
      %v351 = vld [vmem:[%s308 + $0x18] sm:$0xf]
      %v352 = vld [vmem:[%s308 + $0x1c] sm:$0xf]
      %v353 = vld [vmem:[%s317] sm:$0xf]
      %v354 = vld [vmem:[%s317 + $0x4] sm:$0xf]
      %v355 = vld [vmem:[%s317 + $0x8] sm:$0xf]
      %v356 = vld [vmem:[%s317 + $0xc] sm:$0xf]
      %v357 = vld [vmem:[%s317 + $0x10] sm:$0xf]
      %v358 = vld [vmem:[%s317 + $0x14] sm:$0xf]
      %v359 = vld [vmem:[%s317 + $0x18] sm:$0xf]
      %v360 = vld [vmem:[%s317 + $0x1c] sm:$0xf]
      %v369 = vunpack.c.l.b16 %v337
      %v370 = vunpack.c.l.b16 %v338
      %v371 = vunpack.c.l.b16 %v339
      %v372 = vunpack.c.l.b16 %v340
      %v373 = vunpack.c.l.b16 %v341
      %v374 = vunpack.c.l.b16 %v342
      %v375 = vunpack.c.l.b16 %v343
      %v376 = vunpack.c.l.b16 %v344
      %v377 = vpack.c.b16 %v370, %v369
      %v378 = vpack.c.b16 %v372, %v371
      %v379 = vpack.c.b16 %v374, %v373
      %v380 = vpack.c.b16 %v376, %v375
      %v389 = vunpack.c.l.b16 %v345
      %v390 = vunpack.c.l.b16 %v346
      %v391 = vunpack.c.l.b16 %v347
      %v392 = vunpack.c.l.b16 %v348
      %v393 = vunpack.c.l.b16 %v349
      %v394 = vunpack.c.l.b16 %v350
      %v395 = vunpack.c.l.b16 %v351
      %v396 = vunpack.c.l.b16 %v352
      %v397 = vpack.c.b16 %v390, %v389
      %v398 = vpack.c.b16 %v392, %v391
      %v399 = vpack.c.b16 %v394, %v393
      %v400 = vpack.c.b16 %v396, %v395
      %vm401 = vcmask 64512
      %v403 = vsel %vm401, %v377, 0
      %v406 = vsel %vm401, %v378, 0
      %v409 = vsel %vm401, %v379, 0
      %v412 = vsel %vm401, %v380, 0
      %v415 = vsel %vm401, %v397, 0
      %v418 = vsel %vm401, %v398, 0
      %v421 = vsel %vm401, %v399, 0
      %v424 = vsel %vm401, %v400, 0
      %426 = vmatprep.subr.bf16.mxu0 0
      %427 = vmatpush1.bf16.xpose.msra.mxu0 %v415
      %428 = vmatprep.subr.bf16.mxu0 0
      %429 = vmatpush1.bf16.xpose.msra.mxu0 %v418
      %430 = vmatprep.subr.bf16.mxu0 0
      %431 = vmatpush1.bf16.xpose.msra.mxu0 %v421
      %432 = vmatprep.subr.bf16.mxu0 0
      %433 = vmatpush1.bf16.xpose.msra.mxu0 %v424
      %434 = vmatprep.subr.bf16.mxu0 0
      %435 = vmatpush1.bf16.xpose.msra.mxu0 0
      %436 = vmatprep.subr.bf16.mxu0 0
      %437 = vmatpush1.bf16.xpose.msra.mxu0 0
      %438 = vmatprep.subr.bf16.mxu0 0
      %439 = vmatpush1.bf16.xpose.msra.mxu0 0
      %440 = vmatprep.subr.bf16.mxu0 0
      %441 = vmatpush1.bf16.xpose.msra.mxu0 0
      %442 = vmatprep.subr.bf16.mxu0 0
      %443 = vmatpush1.bf16.xpose.msra.mxu0 0
      %444 = vmatprep.subr.bf16.mxu0 0
      %445 = vmatpush1.bf16.xpose.msra.mxu0 0
      %446 = vmatprep.subr.bf16.mxu0 0
      %447 = vmatpush1.bf16.xpose.msra.mxu0 0
      %448 = vmatprep.subr.bf16.mxu0 0
      %449 = vmatpush1.bf16.xpose.msra.mxu0 0
      %450 = vmatprep.subr.bf16.mxu0 0
      %451 = vmatpush1.bf16.xpose.msra.mxu0 0
      %452 = vmatprep.subr.bf16.mxu0 0
      %453 = vmatpush1.bf16.xpose.msra.mxu0 0
      %454 = vmatprep.subr.bf16.mxu0 0
      %455 = vmatpush1.bf16.xpose.msra.mxu0 0
      %456 = vmatprep.subr.bf16.mxu0 0
      %457 = vmatpush1.bf16.xpose.msra.mxu0 0
      %458 = vmatprep.mubr.bf16.mxu0 0
      %459 = vmatmul.mubr.bf16.gmra.mrb[0].mxu0 %v403
      %v460 = vpop.f32.mrb[0].mxu0
      %v461 = vadd.f32 0.0, %v460
      %v462 = vpop.f32.mrb[0].mxu0
      %v463 = vpop.f32.mrb[0].mxu0
      %v464 = vadd.f32 0.0, %v463
      %v465 = vpop.f32.mrb[0].mxu0
      %466 = vmatprep.mubr.bf16.mxu0 0
      %467 = vmatmul.mubr.bf16.gmra.mrb[0].mxu0 %v406
      %v468 = vpop.f32.mrb[0].mxu0
      %v469 = vadd.f32 0.0, %v468
      %v470 = vpop.f32.mrb[0].mxu0
      %v471 = vpop.f32.mrb[0].mxu0
      %v472 = vadd.f32 0.0, %v471
      %v473 = vpop.f32.mrb[0].mxu0
      %474 = vmatprep.mubr.bf16.mxu0 0
      %475 = vmatmul.mubr.bf16.gmra.mrb[0].mxu0 %v409
      %v476 = vpop.f32.mrb[0].mxu0
      %v477 = vadd.f32 0.0, %v476
      %v478 = vpop.f32.mrb[0].mxu0
      %v479 = vpop.f32.mrb[0].mxu0
      %v480 = vadd.f32 0.0, %v479
      %v481 = vpop.f32.mrb[0].mxu0
      %482 = vmatprep.mubr.bf16.mxu0 0
      %483 = vmatmul.mubr.bf16.gmra.mrb[0].mxu0 %v412
      %v484 = vpop.f32.mrb[0].mxu0
      %v485 = vadd.f32 0.0, %v484
      %v486 = vpop.f32.mrb[0].mxu0
      %v487 = vpop.f32.mrb[0].mxu0
      %v488 = vadd.f32 0.0, %v487
      %v489 = vpop.f32.mrb[0].mxu0
      %490 = vdwg.mxu0
      %v491 = vmul.f32 %v461, 0.35355338
      %v492 = vmul.f32 %v464, 0.35355338
      %v493 = vmul.f32 %v469, 0.35355338
      %v494 = vmul.f32 %v472, 0.35355338
      %v495 = vmul.f32 %v477, 0.35355338
      %v496 = vmul.f32 %v480, 0.35355338
      %v497 = vmul.f32 %v485, 0.35355338
      %v498 = vmul.f32 %v488, 0.35355338
      %v499 = vld [vmem:[%s326] sm:$0xf]
      %v500 = vld [vmem:[%s326 + $0x4] sm:$0xf]
      %v501 = vld [vmem:[%s326 + $0x8] sm:$0xf]
      %v502 = vld [vmem:[%s326 + $0xc] sm:$0xf]
      %v503 = vld [vmem:[%s326 + $0x10] sm:$0xf]
      %v504 = vld [vmem:[%s326 + $0x14] sm:$0xf]
      %v505 = vld [vmem:[%s326 + $0x18] sm:$0xf]
      %v506 = vld [vmem:[%s326 + $0x1c] sm:$0xf]
      %v507 = vunpack.c.l.bf16 %v499
      %v508 = vunpack.c.l.bf16 %v500
      %v509 = vunpack.c.l.bf16 %v501
      %v510 = vunpack.c.l.bf16 %v502
      %v511 = vunpack.c.l.bf16 %v503
      %v512 = vunpack.c.l.bf16 %v504
      %v513 = vunpack.c.l.bf16 %v505
      %v514 = vunpack.c.l.bf16 %v506
      %v515 = vadd.f32 %v491, %v507
      %v516 = vadd.f32 %v492, %v508
      %v517 = vadd.f32 %v493, %v509
      %v518 = vadd.f32 %v494, %v510
      %v519 = vadd.f32 %v495, %v511
      %v520 = vadd.f32 %v496, %v512
      %v521 = vadd.f32 %v497, %v513
      %v522 = vadd.f32 %v498, %v514
      %vm523 = vcmask 523264
      %v524 = vsel %vm523, %v515, -inf
      %525 = vmax.xlane.f32.xlu0 %v524
      %v526 = vpop.xlane.xlu0 %525
      %v527 = vsel %vm523, %v516, -inf
      %528 = vmax.xlane.f32.xlu0 %v527
      %v529 = vpop.xlane.xlu0 %528
      %v530 = vsel %vm523, %v517, -inf
      %531 = vmax.xlane.f32.xlu0 %v530
      %v532 = vpop.xlane.xlu0 %531
      %v533 = vsel %vm523, %v518, -inf
      %534 = vmax.xlane.f32.xlu0 %v533
      %v535 = vpop.xlane.xlu0 %534
      %v536 = vsel %vm523, %v519, -inf
      %537 = vmax.xlane.f32.xlu0 %v536
      %v538 = vpop.xlane.xlu0 %537
      %v539 = vsel %vm523, %v520, -inf
      %540 = vmax.xlane.f32.xlu0 %v539
      %v541 = vpop.xlane.xlu0 %540
      %v542 = vsel %vm523, %v521, -inf
      %543 = vmax.xlane.f32.xlu0 %v542
      %v544 = vpop.xlane.xlu0 %543
      %v545 = vsel %vm523, %v522, -inf
      %546 = vmax.xlane.f32.xlu0 %v545
      %v547 = vpop.xlane.xlu0 %546
      %v548 = vsub.f32 %v515, %v526
      %v549 = vsub.f32 %v516, %v529
      %v550 = vsub.f32 %v517, %v532
      %v551 = vsub.f32 %v518, %v535
      %v552 = vsub.f32 %v519, %v538
      %v553 = vsub.f32 %v520, %v541
      %v554 = vsub.f32 %v521, %v544
      %v555 = vsub.f32 %v522, %v547
      %v556 = vmul.f32 %v548, 1.442695
      %v557 = vpow.pop %v556
      %v558 = vmul.f32 %v549, 1.442695
      %v559 = vpow.pop %v558
      %v560 = vmul.f32 %v550, 1.442695
      %v561 = vpow.pop %v560
      %v562 = vmul.f32 %v551, 1.442695
      %v563 = vpow.pop %v562
      %v564 = vmul.f32 %v552, 1.442695
      %v565 = vpow.pop %v564
      %v566 = vmul.f32 %v553, 1.442695
      %v567 = vpow.pop %v566
      %v568 = vmul.f32 %v554, 1.442695
      %v569 = vpow.pop %v568
      %v570 = vmul.f32 %v555, 1.442695
      %v571 = vpow.pop %v570
      %v572 = vsel %vm523, %v557, 0.0
      %573 = vadd.xlane.f32.xlu0 %v572
      %v574 = vpop.xlane.xlu0 %573
      %v575 = vsel %vm523, %v559, 0.0
      %576 = vadd.xlane.f32.xlu0 %v575
      %v577 = vpop.xlane.xlu0 %576
      %v578 = vsel %vm523, %v561, 0.0
      %579 = vadd.xlane.f32.xlu0 %v578
      %v580 = vpop.xlane.xlu0 %579
      %v581 = vsel %vm523, %v563, 0.0
      %582 = vadd.xlane.f32.xlu0 %v581
      %v583 = vpop.xlane.xlu0 %582
      %v584 = vsel %vm523, %v565, 0.0
      %585 = vadd.xlane.f32.xlu0 %v584
      %v586 = vpop.xlane.xlu0 %585
      %v587 = vsel %vm523, %v567, 0.0
      %588 = vadd.xlane.f32.xlu0 %v587
      %v589 = vpop.xlane.xlu0 %588
      %v590 = vsel %vm523, %v569, 0.0
      %591 = vadd.xlane.f32.xlu0 %v590
      %v592 = vpop.xlane.xlu0 %591
      %v593 = vsel %vm523, %v571, 0.0
      %594 = vadd.xlane.f32.xlu0 %v593
      %v595 = vpop.xlane.xlu0 %594
      %v596 = vrcp.pop %v574
      %v597 = vrcp.pop %v577
      %v598 = vrcp.pop %v580
      %v599 = vrcp.pop %v583
      %v600 = vrcp.pop %v586
      %v601 = vrcp.pop %v589
      %v602 = vrcp.pop %v592
      %v603 = vrcp.pop %v595
      %v604 = vmul.f32 %v557, %v596
      %v605 = vmul.f32 %v559, %v597
      %v606 = vmul.f32 %v561, %v598
      %v607 = vmul.f32 %v563, %v599
      %v608 = vmul.f32 %v565, %v600
      %v609 = vmul.f32 %v567, %v601
      %v610 = vmul.f32 %v569, %v602
      %v611 = vmul.f32 %v571, %v603
      %v612 = vpack.c.bf16 %v605, %v604
      %v613 = vpack.c.bf16 %v607, %v606
      %v614 = vpack.c.bf16 %v609, %v608
      %v615 = vpack.c.bf16 %v611, %v610
      %v624 = vunpack.c.l.b16 %v353
      %v625 = vunpack.c.l.b16 %v354
      %v626 = vunpack.c.l.b16 %v355
      %v627 = vunpack.c.l.b16 %v356
      %v628 = vunpack.c.l.b16 %v357
      %v629 = vunpack.c.l.b16 %v358
      %v630 = vunpack.c.l.b16 %v359
      %v631 = vunpack.c.l.b16 %v360
      %v632 = vpack.c.b16 %v625, %v624
      %v633 = vpack.c.b16 %v627, %v626
      %v634 = vpack.c.b16 %v629, %v628
      %v635 = vpack.c.b16 %v631, %v630
      %v641 = vsel %vm523, %v612, 0
      %v644 = vsel %vm523, %v613, 0
      %v647 = vsel %vm523, %v614, 0
      %v650 = vsel %vm523, %v615, 0
      %652 = vmatprep.subr.bf16.mxu0 0
      %653 = vmatpush1.bf16.msra.mxu0 %v632
      %654 = vmatprep.subr.bf16.mxu0 0
      %655 = vmatpush1.bf16.msra.mxu0 %v633
      %656 = vmatprep.subr.bf16.mxu0 0
      %657 = vmatpush1.bf16.msra.mxu0 %v634
      %658 = vmatprep.subr.bf16.mxu0 0
      %659 = vmatpush1.bf16.msra.mxu0 %v635
      %660 = vmatprep.subr.bf16.mxu0 0
      %661 = vmatpush1.bf16.msra.mxu0 0
      %662 = vmatprep.subr.bf16.mxu0 0
      %663 = vmatpush1.bf16.msra.mxu0 0
      %664 = vmatprep.subr.bf16.mxu0 0
      %665 = vmatpush1.bf16.msra.mxu0 0
      %666 = vmatprep.subr.bf16.mxu0 0
      %667 = vmatpush1.bf16.msra.mxu0 0
      %668 = vmatprep.subr.bf16.mxu0 0
      %669 = vmatpush1.bf16.msra.mxu0 0
      %670 = vmatprep.subr.bf16.mxu0 0
      %671 = vmatpush1.bf16.msra.mxu0 0
      %672 = vmatprep.subr.bf16.mxu0 0
      %673 = vmatpush1.bf16.msra.mxu0 0
      %674 = vmatprep.subr.bf16.mxu0 0
      %675 = vmatpush1.bf16.msra.mxu0 0
      %676 = vmatprep.subr.bf16.mxu0 0
      %677 = vmatpush1.bf16.msra.mxu0 0
      %678 = vmatprep.subr.bf16.mxu0 0
      %679 = vmatpush1.bf16.msra.mxu0 0
      %680 = vmatprep.subr.bf16.mxu0 0
      %681 = vmatpush1.bf16.msra.mxu0 0
      %682 = vmatprep.subr.bf16.mxu0 0
      %683 = vmatpush1.bf16.msra.mxu0 0
      %684 = vmatprep.mubr.bf16.mxu0 0
      %685 = vmatmul.mubr.bf16.gmra.mrb[0].mxu0 %v641
      %v686 = vpop.f32.mrb[0].mxu0
      %v687 = vadd.f32 0.0, %v686
      %v688 = vpop.f32.mrb[0].mxu0
      %v689 = vpop.f32.mrb[0].mxu0
      %v690 = vadd.f32 0.0, %v689
      %v691 = vpop.f32.mrb[0].mxu0
      %692 = vmatprep.mubr.bf16.mxu0 0
      %693 = vmatmul.mubr.bf16.gmra.mrb[0].mxu0 %v644
      %v694 = vpop.f32.mrb[0].mxu0
      %v695 = vadd.f32 0.0, %v694
      %v696 = vpop.f32.mrb[0].mxu0
      %v697 = vpop.f32.mrb[0].mxu0
      %v698 = vadd.f32 0.0, %v697
      %v699 = vpop.f32.mrb[0].mxu0
      %700 = vmatprep.mubr.bf16.mxu0 0
      %701 = vmatmul.mubr.bf16.gmra.mrb[0].mxu0 %v647
      %v702 = vpop.f32.mrb[0].mxu0
      %v703 = vadd.f32 0.0, %v702
      %v704 = vpop.f32.mrb[0].mxu0
      %v705 = vpop.f32.mrb[0].mxu0
      %v706 = vadd.f32 0.0, %v705
      %v707 = vpop.f32.mrb[0].mxu0
      %708 = vmatprep.mubr.bf16.mxu0 0
      %709 = vmatmul.mubr.bf16.gmra.mrb[0].mxu0 %v650
      %v710 = vpop.f32.mrb[0].mxu0
      %v711 = vadd.f32 0.0, %v710
      %v712 = vpop.f32.mrb[0].mxu0
      %v713 = vpop.f32.mrb[0].mxu0
      %v714 = vadd.f32 0.0, %v713
      %v715 = vpop.f32.mrb[0].mxu0
      %716 = vdwg.mxu0
      %v717 = vpack.c.bf16 %v690, %v687
      %v718 = vpack.c.bf16 %v698, %v695
      %v719 = vpack.c.bf16 %v706, %v703
      %v720 = vpack.c.bf16 %v714, %v711
      %v725 = vunpack.c.l.b16 %v717
      %v726 = vunpack.c.h.b16 %v717
      %v727 = vunpack.c.l.b16 %v718
      %v728 = vunpack.c.h.b16 %v718
      %v729 = vunpack.c.l.b16 %v719
      %v730 = vunpack.c.h.b16 %v719
      %v731 = vunpack.c.l.b16 %v720
      %v732 = vunpack.c.h.b16 %v720
      %v733 = vpack.c.b16 %v725, %v725
      %v734 = vpack.c.b16 %v726, %v726
      %v735 = vpack.c.b16 %v727, %v727
      %v736 = vpack.c.b16 %v728, %v728
      %v737 = vpack.c.b16 %v729, %v729
      %v738 = vpack.c.b16 %v730, %v730
      %v739 = vpack.c.b16 %v731, %v731
      %v740 = vpack.c.b16 %v732, %v732
      %vm749 = vcmask 60416
      %750 = vst.msk [vmem:[%s335] sm:$0xf] %vm749, %v733
      %751 = vst.msk [vmem:[%s335 + $0x4] sm:$0xf] %vm749, %v734
      %752 = vst.msk [vmem:[%s335 + $0x8] sm:$0xf] %vm749, %v735
      %753 = vst.msk [vmem:[%s335 + $0xc] sm:$0xf] %vm749, %v736
      %754 = vst.msk [vmem:[%s335 + $0x10] sm:$0xf] %vm749, %v737
      %755 = vst.msk [vmem:[%s335 + $0x14] sm:$0xf] %vm749, %v738
      %756 = vst.msk [vmem:[%s335 + $0x18] sm:$0xf] %vm749, %v739
      %757 = vst.msk [vmem:[%s335 + $0x1c] sm:$0xf] %vm749, %v740
      %p758 = scmp.lt.s32.totalorder %s19, 1
      %s759 = scalar_select %p758, %s19, 1
      %p760 = scmp.lt.s32.totalorder %s20, 1
      %s761 = scalar_select %p760, %s20, 1
      %s762 = smul.addr %s761, 8
      %s763 = smul.addr %s759, 16
      %s764 = sadd.s32 %s762, %s763
      %s765 = smul.addr %s764, 4
      %s766 = scalar_lea.vmem %s4, %s765
      // Predicated region
      $region37: #{bottle_stack_forward.19} parent=35 // pred_check
        %p767 = pneg %p159
      $region38: #{bottle_stack_forward.19} parent=35 // pred_check_branch
        %769 = sbr.rel (%p767) target = $region40
      $region39: #{bottle_stack_forward.19} parent=35 // pred_region
        _
      $region40: #{bottle_stack_forward.19} parent=35 // pred_fallthru
        _
    $region36: #{bottle_stack_forward.19} parent=5 // pred_fallthru
      _
    %p770 = scmp.le.s32.totalorder 2, %s10
    // Predicated region
    $region41: #{bottle_stack_forward.19} parent=5 // pred_check
      %p771 = pneg %p770
    $region42: #{bottle_stack_forward.19} parent=5 // pred_check_branch
      %773 = sbr.rel (%p771) target = $region44
    $region43: #{bottle_stack_forward.19} parent=5 // pred_region
      %s774 = ssub.s32 %s10, 2
      // Predicated region
      $region45: #{bottle_stack_forward.19} parent=43 // pred_check
        %p775 = pneg %p165
      $region46: #{bottle_stack_forward.19} parent=43 // pred_check_branch
        %777 = sbr.rel (%p775) target = $region48
      $region47: #{bottle_stack_forward.19} parent=43 // pred_region
        %p778 = scmp.lt.s32.totalorder %s21, 1
        %s779 = scalar_select %p778, %s21, 1
        %p780 = scmp.lt.s32.totalorder %s22, 1
        %s781 = scalar_select %p780, %s22, 1
        %s782 = smul.addr %s781, 8
        %s783 = smul.addr %s779, 16
        %s784 = sadd.s32 %s782, %s783
        %s785 = smul.addr %s784, 4
        %s786 = scalar_lea.vmem %s4, %s785
      $region48: #{bottle_stack_forward.19} parent=43 // pred_fallthru
        _
    $region44: #{bottle_stack_forward.19} parent=5 // pred_fallthru
      _
  $region6: #{bottle_stack_forward.19} parent=0 // loop_footer
    %s14 = sadd.s32 1, %s10
  $region7: #{bottle_stack_forward.19} parent=0 // loop_footer_branch
    %9 = sbr.rel target = $region3
  $region8: #{bottle_stack_forward.19} parent=0 // loop_exit
    _

// kernel: bottle_stack_forward.20
$region0: #{bottle_stack_forward.20}
  #allocation0 [shape = 'u32[]', space=smem, size = 0x4, offset = 0x4, fixed_abs, tag = 'smem constant byte address 0x4 - core index']
  #allocation1 [shape = 'u32[144,128]{1,0:T(1,128)}', space=vmem, size = 0x12000, scoped, tag = 'internal scratch']
  #allocation2 [shape = 'f32[16,64]{1,0:T(8,128)}', space=vmem, size = 0x2000, scoped, tag = 'scratch operand']
  %s0 = inlined_call_operand.vmem [shape: bf16[32,16], index: 0, kind: input, shape index: {}]
  %s1 = inlined_call_operand.vmem [shape: bf16[16,64], index: 1, kind: input, shape index: {}]
  %s2 = inlined_call_operand.vmem [shape: f32[1,16], index: 2, kind: input, shape index: {}]
  %s3 = inlined_call_operand.vmem [shape: f32[1,16], index: 3, kind: input, shape index: {}]
  %s4 = inlined_call_operand.vmem [shape: f32[1,64], index: 4, kind: input, shape index: {}]
  %s5 = inlined_call_operand.vmem [shape: f32[1,64], index: 5, kind: input, shape index: {}]
  %s6 = inlined_call_operand.vmem [shape: bf16[32,64], index: 6, kind: output, shape index: {}]
  %s7 = sld [smem:[#allocation0]]
  $region65: #{bottle_stack_forward.20} parent=0
    _
  %s9 = ssub.s32 1, %s7
  %s10 = scalar_select 0, %s9, %s7
  loop: start=0, step=1, limit=4
  $region2: #{bottle_stack_forward.20} parent=0 // loop_pre_header
    _
  $region3: #{bottle_stack_forward.20} parent=0 // loop_header
    %s12 = sphi 0, %s16
    %p13 = scmp.ge.s32.totalorder %s12, 4
    %s19 = sphi 0, %s31
    %s20 = sphi 0, %s27
    %s21 = sphi 0, %s19
    %s22 = sphi 0, %s20
    %s23 = sphi 0, %s21
    %s24 = sphi 0, %s22
    %s36 = sphi 0, %s38
    %s39 = sphi 0, %s36
    %s40 = sphi 0, %s39
    %s56 = sphi 0, %s40
    %s62 = sphi 0, %s64
    %s65 = sphi 0, %s62
    %s66 = sphi 0, %s65
    %s82 = sphi 0, %s66
    %s88 = sphi 0, %s90
    %s91 = sphi 0, %s88
    %s92 = sphi 0, %s91
    %s108 = sphi 0, %s92
    %s114 = sphi 0, %s116
    %s117 = sphi 0, %s114
    %s118 = sphi 0, %s117
    %s134 = sphi 0, %s118
    %s138 = sphi 0, %s138
    %s140 = sphi 0, %s138
    %s141 = sphi 0, %s140
    %s155 = sphi 0, %s141
    %s159 = sphi 0, %s159
    %s161 = sphi 0, %s159
    %s162 = sphi 0, %s161
    %s176 = sphi 0, %s162
    %s182 = sphi 0, %s184
    %s185 = sphi 0, %s182
    %s186 = sphi 0, %s185
    %s202 = sphi 0, %s186
  $region4: #{bottle_stack_forward.20} parent=0 // loop_header_branch
    %15 = sbr.rel (%p13) target = $region8
  $region5: #{bottle_stack_forward.20} parent=0 // loop_body
    %s17 = ssub.s32 %s12, 1
    %s18 = ssub.s32 %s12, 2
    %s25 = sadd.s32 1, %s20
    %p26 = scmp.ge.s32.totalorder %s25, 1
    %s27 = scalar_select %p26, 0, %s25
    %s28 = sadd.s32 1, %s19
    %s29 = scalar_select %p26, %s28, %s19
    %p30 = scmp.ge.s32.totalorder %s29, 2
    %s31 = scalar_select %p30, 0, %s29
    %s32 = ssub.s32 %s19, %s31
    %s33 = ssub.s32 %s20, %s27
    %s34 = sor.u32 %s32, %s33
    %p35 = scmp.eq.s32.totalorder %s34, 0
    %s37 = sadd.s32 %s36, 1
    %s38 = scalar_select %p35, %s36, %s37
    %p41 = pneg %p35
    %p42 = scmp.eq.s32.totalorder %s12, 1
    %p43 = por %p41, %p42
    %p44 = scmp.ne.s32.totalorder %s36, %s39
    %p45 = scmp.eq.s32.totalorder %s12, 0
    %p46 = por %p44, %p45
    %p47 = scmp.ne.s32.totalorder %s36, %s39
    %p48 = scmp.eq.s32.totalorder %s17, 1
    %p49 = por %p47, %p48
    %p50 = scmp.ne.s32.totalorder %s39, %s40
    %p51 = scmp.eq.s32.totalorder %s17, 0
    %p52 = por %p50, %p51
    %p53 = scmp.ne.s32.totalorder %s39, %s40
    %p54 = scmp.eq.s32.totalorder %s18, 1
    %p55 = por %p53, %p54
    %p57 = scmp.ne.s32.totalorder %s40, %s56
    %p58 = scmp.eq.s32.totalorder %s18, 0
    %p59 = por %p57, %p58
    %s60 = ssub.s32 %s20, %s27
    %p61 = scmp.eq.s32.totalorder %s60, 0
    %s63 = sadd.s32 %s62, 1
    %s64 = scalar_select %p61, %s62, %s63
    %p67 = pneg %p61
    %p68 = scmp.eq.s32.totalorder %s12, 1
    %p69 = por %p67, %p68
    %p70 = scmp.ne.s32.totalorder %s62, %s65
    %p71 = scmp.eq.s32.totalorder %s12, 0
    %p72 = por %p70, %p71
    %p73 = scmp.ne.s32.totalorder %s62, %s65
    %p74 = scmp.eq.s32.totalorder %s17, 1
    %p75 = por %p73, %p74
    %p76 = scmp.ne.s32.totalorder %s65, %s66
    %p77 = scmp.eq.s32.totalorder %s17, 0
    %p78 = por %p76, %p77
    %p79 = scmp.ne.s32.totalorder %s65, %s66
    %p80 = scmp.eq.s32.totalorder %s18, 1
    %p81 = por %p79, %p80
    %p83 = scmp.ne.s32.totalorder %s66, %s82
    %p84 = scmp.eq.s32.totalorder %s18, 0
    %p85 = por %p83, %p84
    %s86 = ssub.s32 %s20, %s27
    %p87 = scmp.eq.s32.totalorder %s86, 0
    %s89 = sadd.s32 %s88, 1
    %s90 = scalar_select %p87, %s88, %s89
    %p93 = pneg %p87
    %p94 = scmp.eq.s32.totalorder %s12, 1
    %p95 = por %p93, %p94
    %p96 = scmp.ne.s32.totalorder %s88, %s91
    %p97 = scmp.eq.s32.totalorder %s12, 0
    %p98 = por %p96, %p97
    %p99 = scmp.ne.s32.totalorder %s88, %s91
    %p100 = scmp.eq.s32.totalorder %s17, 1
    %p101 = por %p99, %p100
    %p102 = scmp.ne.s32.totalorder %s91, %s92
    %p103 = scmp.eq.s32.totalorder %s17, 0
    %p104 = por %p102, %p103
    %p105 = scmp.ne.s32.totalorder %s91, %s92
    %p106 = scmp.eq.s32.totalorder %s18, 1
    %p107 = por %p105, %p106
    %p109 = scmp.ne.s32.totalorder %s92, %s108
    %p110 = scmp.eq.s32.totalorder %s18, 0
    %p111 = por %p109, %p110
    %s112 = ssub.s32 %s20, %s27
    %p113 = scmp.eq.s32.totalorder %s112, 0
    %s115 = sadd.s32 %s114, 1
    %s116 = scalar_select %p113, %s114, %s115
    %p119 = pneg %p113
    %p120 = scmp.eq.s32.totalorder %s12, 1
    %p121 = por %p119, %p120
    %p122 = scmp.ne.s32.totalorder %s114, %s117
    %p123 = scmp.eq.s32.totalorder %s12, 0
    %p124 = por %p122, %p123
    %p125 = scmp.ne.s32.totalorder %s114, %s117
    %p126 = scmp.eq.s32.totalorder %s17, 1
    %p127 = por %p125, %p126
    %p128 = scmp.ne.s32.totalorder %s117, %s118
    %p129 = scmp.eq.s32.totalorder %s17, 0
    %p130 = por %p128, %p129
    %p131 = scmp.ne.s32.totalorder %s117, %s118
    %p132 = scmp.eq.s32.totalorder %s18, 1
    %p133 = por %p131, %p132
    %p135 = scmp.ne.s32.totalorder %s118, %s134
    %p136 = scmp.eq.s32.totalorder %s18, 0
    %p137 = por %p135, %p136
    %s139 = sadd.s32 %s138, 1
    %p142 = scmp.eq.s32.totalorder %s12, 1
    %p143 = scmp.ne.s32.totalorder %s138, %s140
    %p144 = scmp.eq.s32.totalorder %s12, 0
    %p145 = por %p143, %p144
    %p146 = scmp.ne.s32.totalorder %s138, %s140
    %p147 = scmp.eq.s32.totalorder %s17, 1
    %p148 = por %p146, %p147
    %p149 = scmp.ne.s32.totalorder %s140, %s141
    %p150 = scmp.eq.s32.totalorder %s17, 0
    %p151 = por %p149, %p150
    %p152 = scmp.ne.s32.totalorder %s140, %s141
    %p153 = scmp.eq.s32.totalorder %s18, 1
    %p154 = por %p152, %p153
    %p156 = scmp.ne.s32.totalorder %s141, %s155
    %p157 = scmp.eq.s32.totalorder %s18, 0
    %p158 = por %p156, %p157
    %s160 = sadd.s32 %s159, 1
    %p163 = scmp.eq.s32.totalorder %s12, 1
    %p164 = scmp.ne.s32.totalorder %s159, %s161
    %p165 = scmp.eq.s32.totalorder %s12, 0
    %p166 = por %p164, %p165
    %p167 = scmp.ne.s32.totalorder %s159, %s161
    %p168 = scmp.eq.s32.totalorder %s17, 1
    %p169 = por %p167, %p168
    %p170 = scmp.ne.s32.totalorder %s161, %s162
    %p171 = scmp.eq.s32.totalorder %s17, 0
    %p172 = por %p170, %p171
    %p173 = scmp.ne.s32.totalorder %s161, %s162
    %p174 = scmp.eq.s32.totalorder %s18, 1
    %p175 = por %p173, %p174
    %p177 = scmp.ne.s32.totalorder %s162, %s176
    %p178 = scmp.eq.s32.totalorder %s18, 0
    %p179 = por %p177, %p178
    %s180 = ssub.s32 %s19, %s31
    %p181 = scmp.eq.s32.totalorder %s180, 0
    %s183 = sadd.s32 %s182, 1
    %s184 = scalar_select %p181, %s182, %s183
    %p187 = pneg %p181
    %p188 = scmp.eq.s32.totalorder %s12, 1
    %p189 = por %p187, %p188
    %p190 = scmp.ne.s32.totalorder %s182, %s185
    %p191 = scmp.eq.s32.totalorder %s12, 0
    %p192 = por %p190, %p191
    %p193 = scmp.ne.s32.totalorder %s182, %s185
    %p194 = scmp.eq.s32.totalorder %s17, 1
    %p195 = por %p193, %p194
    %p196 = scmp.ne.s32.totalorder %s185, %s186
    %p197 = scmp.eq.s32.totalorder %s17, 0
    %p198 = por %p196, %p197
    %p199 = scmp.ne.s32.totalorder %s185, %s186
    %p200 = scmp.eq.s32.totalorder %s18, 1
    %p201 = por %p199, %p200
    %p203 = scmp.ne.s32.totalorder %s186, %s202
    %p204 = scmp.eq.s32.totalorder %s18, 0
    %p205 = por %p203, %p204
    %p206 = scmp.le.s32.totalorder 1, %s12
    %p207 = scmp.lt.s32.totalorder %s12, 3
    %p208 = pnand %p206, %p207
    %p209 = pneg %p208
    // Predicated region
    $region9: #{bottle_stack_forward.20} parent=5 // pred_check
      _
    $region10: #{bottle_stack_forward.20} parent=5 // pred_check_branch
      %211 = sbr.rel (%p208) target = $region12
    $region11: #{bottle_stack_forward.20} parent=5 // pred_region
      %s212 = ssub.s32 %s12, 1
      // Predicated region
      $region13: #{bottle_stack_forward.20} parent=11 // pred_check
        %p213 = pneg %p78
      $region14: #{bottle_stack_forward.20} parent=11 // pred_check_branch
        %215 = sbr.rel (%p213) target = $region16
      $region15: #{bottle_stack_forward.20} parent=11 // pred_region
        %s216 = smul.u32 2, %s22
        %p217 = scmp.lt.s32.totalorder %s216, 1
        %s218 = scalar_select %p217, %s216, 1
        %s219 = smul.addr %s218, 4
        %s220 = scalar_lea.vmem %s1, %s219
        %s221 = smul.u32 2, %s22
      $region16: #{bottle_stack_forward.20} parent=11 // pred_fallthru
        _
      // Predicated region
      $region17: #{bottle_stack_forward.20} parent=11 // pred_check
        %p222 = pneg %p104
      $region18: #{bottle_stack_forward.20} parent=11 // pred_check_branch
        %224 = sbr.rel (%p222) target = $region20
      $region19: #{bottle_stack_forward.20} parent=11 // pred_region
        %p225 = scmp.lt.s32.totalorder %s22, 0
        %s226 = scalar_select %p225, %s22, 0
        %s227 = scalar_lea.vmem %s2, %s226
      $region20: #{bottle_stack_forward.20} parent=11 // pred_fallthru
        _
      // Predicated region
      $region21: #{bottle_stack_forward.20} parent=11 // pred_check
        %p228 = pneg %p130
      $region22: #{bottle_stack_forward.20} parent=11 // pred_check_branch
        %230 = sbr.rel (%p228) target = $region24
      $region23: #{bottle_stack_forward.20} parent=11 // pred_region
        %p231 = scmp.lt.s32.totalorder %s22, 0
        %s232 = scalar_select %p231, %s22, 0
        %s233 = scalar_lea.vmem %s3, %s232
      $region24: #{bottle_stack_forward.20} parent=11 // pred_fallthru
        _
      // Predicated region
      $region25: #{bottle_stack_forward.20} parent=11 // pred_check
        %p234 = pneg %p151
      $region26: #{bottle_stack_forward.20} parent=11 // pred_check_branch
        %236 = sbr.rel (%p234) target = $region28
      $region27: #{bottle_stack_forward.20} parent=11 // pred_region
        _
      $region28: #{bottle_stack_forward.20} parent=11 // pred_fallthru
        _
      // Predicated region
      $region29: #{bottle_stack_forward.20} parent=11 // pred_check
        %p237 = pneg %p172
      $region30: #{bottle_stack_forward.20} parent=11 // pred_check_branch
        %239 = sbr.rel (%p237) target = $region32
      $region31: #{bottle_stack_forward.20} parent=11 // pred_region
        _
      $region32: #{bottle_stack_forward.20} parent=11 // pred_fallthru
        _
    $region12: #{bottle_stack_forward.20} parent=5 // pred_fallthru
      _
    %p240 = scmp.lt.s32.totalorder %s12, 2
    // Predicated region
    $region33: #{bottle_stack_forward.20} parent=5 // pred_check
      %p241 = pneg %p240
    $region34: #{bottle_stack_forward.20} parent=5 // pred_check_branch
      %243 = sbr.rel (%p241) target = $region36
    $region35: #{bottle_stack_forward.20} parent=5 // pred_region
      // Predicated region
      $region37: #{bottle_stack_forward.20} parent=35 // pred_check
        %p244 = pneg %p46
      $region38: #{bottle_stack_forward.20} parent=35 // pred_check_branch
        %246 = sbr.rel (%p244) target = $region40
      $region39: #{bottle_stack_forward.20} parent=35 // pred_region
        %s247 = smul.u32 2, %s19
        %p248 = scmp.lt.s32.totalorder %s247, 3
        %s249 = scalar_select %p248, %s247, 3
        %p250 = scmp.lt.s32.totalorder %s20, 0
        %s251 = scalar_select %p250, %s20, 0
        %s252 = sadd.s32 %s251, %s249
        %s253 = smul.addr %s252, 4
        %s254 = scalar_lea.vmem %s0, %s253
        %s255 = smul.u32 2, %s19
      $region40: #{bottle_stack_forward.20} parent=35 // pred_fallthru
        _
    $region36: #{bottle_stack_forward.20} parent=5 // pred_fallthru
      _
    %p256 = scmp.le.s32.totalorder 1, %s12
    %p257 = scmp.lt.s32.totalorder %s12, 3
    %p258 = pnand %p256, %p257
    %p259 = pneg %p258
    // Predicated region
    $region41: #{bottle_stack_forward.20} parent=5 // pred_check
      _
    $region42: #{bottle_stack_forward.20} parent=5 // pred_check_branch
      %261 = sbr.rel (%p258) target = $region44
    $region43: #{bottle_stack_forward.20} parent=5 // pred_region
      %s262 = ssub.s32 %s12, 1
      %s263 = smul.u32 2, %s21
      %p264 = scmp.lt.s32.totalorder %s263, 3
      %s265 = scalar_select %p264, %s263, 3
      %p266 = scmp.lt.s32.totalorder %s22, 0
      %s267 = scalar_select %p266, %s22, 0
      %s268 = sadd.s32 %s267, %s265
      %s269 = smul.addr %s268, 4
      %s270 = scalar_lea.vmem %s0, %s269
      %p271 = pneg %p52
      %p272 = pneg %p49
      %s273 = smul.u32 2, %s22
      %p274 = scmp.lt.s32.totalorder %s273, 1
      %s275 = scalar_select %p274, %s273, 1
      %s276 = smul.addr %s275, 4
      %s277 = scalar_lea.vmem %s1, %s276
      %p278 = pneg %p78
      %p279 = pneg %p75
      %p280 = scmp.lt.s32.totalorder %s22, 0
      %s281 = scalar_select %p280, %s22, 0
      %s282 = scalar_lea.vmem %s2, %s281
      %p283 = pneg %p104
      %p284 = pneg %p101
      %p285 = scmp.lt.s32.totalorder %s22, 0
      %s286 = scalar_select %p285, %s22, 0
      %s287 = scalar_lea.vmem %s3, %s286
      %p288 = pneg %p130
      %p289 = pneg %p127
      %p290 = pneg %p151
      %p291 = pneg %p148
      %p292 = pneg %p172
      %p293 = pneg %p169
      %p294 = pneg %p198
      %p295 = pneg %p195
      %s296 = smul.u32 2, %s21
      %p297 = scmp.lt.s32.totalorder %s296, 3
      %s298 = scalar_select %p297, %s296, 3
      %s299 = smul.addr %s298, 4
      %s300 = scalar_lea.vmem %s6, %s299
      %s301 = smul.u32 2, %s21
      %p302 = scmp.lt.s32.totalorder %s301, 3
      %s303 = scalar_select %p302, %s301, 3
      %p304 = scmp.lt.s32.totalorder %s22, 0
      %s305 = scalar_select %p304, %s22, 0
      %s306 = sadd.s32 %s305, %s303
      %s307 = smul.addr %s306, 4
      %s308 = scalar_lea.vmem %s0, %s307
      %s309 = smul.u32 2, %s21
      %s310 = smul.u32 2, %s22
      %p311 = scmp.lt.s32.totalorder %s310, 1
      %s312 = scalar_select %p311, %s310, 1
      %s313 = smul.addr %s312, 4
      %s314 = scalar_lea.vmem %s1, %s313
      %s315 = smul.u32 2, %s22
      %p316 = scmp.lt.s32.totalorder %s22, 0
      %s317 = scalar_select %p316, %s22, 0
      %s318 = scalar_lea.vmem %s2, %s317
      %p319 = scmp.lt.s32.totalorder %s22, 0
      %s320 = scalar_select %p319, %s22, 0
      %s321 = scalar_lea.vmem %s3, %s320
      %s322 = smul.u32 2, %s21
      %p323 = scmp.lt.s32.totalorder %s322, 3
      %s324 = scalar_select %p323, %s322, 3
      %s325 = smul.addr %s324, 4
      %s326 = scalar_lea.vmem %s6, %s325
      %s327 = smul.u32 2, %s21
      %p329 = scmp.eq.s32.totalorder %s22, 0
      // Predicated region
      $region45: #{bottle_stack_forward.20} parent=43 // pred_check
        %p330 = pneg %p329
      $region46: #{bottle_stack_forward.20} parent=43 // pred_check_branch
        %332 = sbr.rel (%p330) target = $region48
      $region47: #{bottle_stack_forward.20} parent=43 // pred_region
        %vm333 = vcmask 523264
        %334 = vst.msk [vmem:[#allocation2] sm:$0xff] %vm333, 0.0
        %335 = vst.msk [vmem:[#allocation2 + $0x8] sm:$0xff] %vm333, 0.0
      $region48: #{bottle_stack_forward.20} parent=43 // pred_fallthru
        _
      %v336 = vld [vmem:[%s308] sm:$0xf]
      %v337 = vld [vmem:[%s308 + $0x4] sm:$0xf]
      %v338 = vunpack.c.l.bf16 %v336
      %v339 = vunpack.c.l.bf16 %v337
      %v340 = vld [vmem:[%s318] sm:$0x1]
      %v342 = vlaneseq
      %v343 = vshrl.u32 %v342, 7
      %v344 = vsub.s32 0, %v343
      %v345 = vrot.slane %v340, %v344
      %v347 = vmul.f32 %v338, %v345
      %v348 = vmul.f32 %v339, %v345
      %v349 = vld [vmem:[%s321] sm:$0x1]
      %v351 = vlaneseq
      %v352 = vshrl.u32 %v351, 7
      %v353 = vsub.s32 0, %v352
      %v354 = vrot.slane %v349, %v353
      %v356 = vadd.f32 %v347, %v354
      %v357 = vadd.f32 %v348, %v354
      %v358 = vmax.f32 %v356, 0.0
      %v359 = vmax.f32 %v357, 0.0
      %v360 = vpack.c.bf16 %v359, %v358
      %v361 = vld [vmem:[#allocation2] sm:$0xff]
      %v362 = vld [vmem:[#allocation2 + $0x8] sm:$0xff]
      %v363 = vld [vmem:[%s314] sm:$0xf]
      %v364 = vld [vmem:[%s314 + $0x4] sm:$0xf]
      %v367 = vunpack.c.l.b16 %v363
      %v368 = vunpack.c.l.b16 %v364
      %v369 = vpack.c.b16 %v368, %v367
      %vm371 = vcmask 130048
      %v373 = vsel %vm371, %v360, 0
      %375 = vmatprep.subr.bf16.mxu0 0
      %376 = vmatpush1.bf16.msra.mxu0 %v369
      %377 = vmatprep.subr.bf16.mxu0 0
      %378 = vmatpush1.bf16.msra.mxu0 0
      %379 = vmatprep.subr.bf16.mxu0 0
      %380 = vmatpush1.bf16.msra.mxu0 0
      %381 = vmatprep.subr.bf16.mxu0 0
      %382 = vmatpush1.bf16.msra.mxu0 0
      %383 = vmatprep.subr.bf16.mxu0 0
      %384 = vmatpush1.bf16.msra.mxu0 0
      %385 = vmatprep.subr.bf16.mxu0 0
      %386 = vmatpush1.bf16.msra.mxu0 0
      %387 = vmatprep.subr.bf16.mxu0 0
      %388 = vmatpush1.bf16.msra.mxu0 0
      %389 = vmatprep.subr.bf16.mxu0 0
      %390 = vmatpush1.bf16.msra.mxu0 0
      %391 = vmatprep.subr.bf16.mxu0 0
      %392 = vmatpush1.bf16.msra.mxu0 0
      %393 = vmatprep.subr.bf16.mxu0 0
      %394 = vmatpush1.bf16.msra.mxu0 0
      %395 = vmatprep.subr.bf16.mxu0 0
      %396 = vmatpush1.bf16.msra.mxu0 0
      %397 = vmatprep.subr.bf16.mxu0 0
      %398 = vmatpush1.bf16.msra.mxu0 0
      %399 = vmatprep.subr.bf16.mxu0 0
      %400 = vmatpush1.bf16.msra.mxu0 0
      %401 = vmatprep.subr.bf16.mxu0 0
      %402 = vmatpush1.bf16.msra.mxu0 0
      %403 = vmatprep.subr.bf16.mxu0 0
      %404 = vmatpush1.bf16.msra.mxu0 0
      %405 = vmatprep.subr.bf16.mxu0 0
      %406 = vmatpush1.bf16.msra.mxu0 0
      %407 = vmatprep.mubr.bf16.mxu0 0
      %408 = vmatmul.mubr.bf16.gmra.mrb[0].mxu0 %v373
      %v409 = vpop.f32.mrb[0].mxu0
      %v410 = vadd.f32 0.0, %v409
      %v411 = vpop.f32.mrb[0].mxu0
      %v412 = vpop.f32.mrb[0].mxu0
      %v413 = vadd.f32 0.0, %v412
      %v414 = vpop.f32.mrb[0].mxu0
      %415 = vdwg.mxu0
      %v416 = vadd.f32 %v361, %v410
      %v417 = vadd.f32 %v362, %v413
      %vm418 = vcmask 523264
      %419 = vst.msk [vmem:[#allocation2] sm:$0xff] %vm418, %v416
      %420 = vst.msk [vmem:[#allocation2 + $0x8] sm:$0xff] %vm418, %v417
      // Predicated region
      $region49: #{bottle_stack_forward.20} parent=43 // pred_check
        %p421 = pneg %p329
      $region50: #{bottle_stack_forward.20} parent=43 // pred_check_branch
        %423 = sbr.rel (%p421) target = $region52
      $region51: #{bottle_stack_forward.20} parent=43 // pred_region
        %v424 = vld [vmem:[#allocation2] sm:$0xff]
        %v425 = vld [vmem:[#allocation2 + $0x8] sm:$0xff]
        %v426 = vld [vmem:[%s4] sm:$0x1]
        %v428 = vlaneseq
        %v429 = vshrl.u32 %v428, 7
        %v430 = vsub.s32 0, %v429
        %v431 = vrot.slane %v426, %v430
        %v433 = vmul.f32 %v424, %v431
        %v434 = vmul.f32 %v425, %v431
        %v435 = vld [vmem:[%s5] sm:$0x1]
        %v437 = vlaneseq
        %v438 = vshrl.u32 %v437, 7
        %v439 = vsub.s32 0, %v438
        %v440 = vrot.slane %v435, %v439
        %v442 = vadd.f32 %v433, %v440
        %v443 = vadd.f32 %v434, %v440
        %v444 = vpack.c.bf16 %v443, %v442
        %v446 = vunpack.c.l.b16 %v444
        %v447 = vunpack.c.h.b16 %v444
        %v448 = vpack.c.b16 %v446, %v446
        %v449 = vpack.c.b16 %v447, %v447
        %vm452 = vcmask 519168
        %453 = vst.msk [vmem:[%s326] sm:$0xf] %vm452, %v448
        %454 = vst.msk [vmem:[%s326 + $0x4] sm:$0xf] %vm452, %v449
      $region52: #{bottle_stack_forward.20} parent=43 // pred_fallthru
        _
      %s455 = smul.u32 2, %s21
      %p456 = scmp.lt.s32.totalorder %s455, 3
      %s457 = scalar_select %p456, %s455, 3
      %s458 = smul.addr %s457, 4
      %s459 = scalar_lea.vmem %s6, %s458
      // Predicated region
      $region53: #{bottle_stack_forward.20} parent=43 // pred_check
        %p460 = pneg %p195
      $region54: #{bottle_stack_forward.20} parent=43 // pred_check_branch
        %462 = sbr.rel (%p460) target = $region56
      $region55: #{bottle_stack_forward.20} parent=43 // pred_region
        %s463 = smul.u32 2, %s21
      $region56: #{bottle_stack_forward.20} parent=43 // pred_fallthru
        _
    $region44: #{bottle_stack_forward.20} parent=5 // pred_fallthru
      _
    %p464 = scmp.le.s32.totalorder 2, %s12
    // Predicated region
    $region57: #{bottle_stack_forward.20} parent=5 // pred_check
      %p465 = pneg %p464
    $region58: #{bottle_stack_forward.20} parent=5 // pred_check_branch
      %467 = sbr.rel (%p465) target = $region60
    $region59: #{bottle_stack_forward.20} parent=5 // pred_region
      %s468 = ssub.s32 %s12, 2
      // Predicated region
      $region61: #{bottle_stack_forward.20} parent=59 // pred_check
        %p469 = pneg %p201
      $region62: #{bottle_stack_forward.20} parent=59 // pred_check_branch
        %471 = sbr.rel (%p469) target = $region64
      $region63: #{bottle_stack_forward.20} parent=59 // pred_region
        %s472 = smul.u32 2, %s23
        %p473 = scmp.lt.s32.totalorder %s472, 3
        %s474 = scalar_select %p473, %s472, 3
        %s475 = smul.addr %s474, 4
        %s476 = scalar_lea.vmem %s6, %s475
      $region64: #{bottle_stack_forward.20} parent=59 // pred_fallthru
        _
    $region60: #{bottle_stack_forward.20} parent=5 // pred_fallthru
      _
  $region6: #{bottle_stack_forward.20} parent=0 // loop_footer
    %s16 = sadd.s32 1, %s12
  $region7: #{bottle_stack_forward.20} parent=0 // loop_footer_branch
    %11 = sbr.rel target = $region3
  $region8: #{bottle_stack_forward.20} parent=0 // loop_exit
    _

// kernel: bottle_stack_forward.21
$region0: #{bottle_stack_forward.21}
  #allocation0 [shape = 'u32[]', space=smem, size = 0x4, offset = 0x4, fixed_abs, tag = 'smem constant byte address 0x4 - core index']
  #allocation1 [shape = 'u32[144,128]{1,0:T(1,128)}', space=vmem, size = 0x12000, scoped, tag = 'internal scratch']
  %s0 = inlined_call_operand.vmem [shape: bf16[2,16,64], index: 0, kind: input, shape index: {}]
  %s1 = inlined_call_operand.vmem [shape: bf16[2,16,64], index: 1, kind: input, shape index: {}]
  %s2 = inlined_call_operand.vmem [shape: f32[2,1,64], index: 2, kind: input, shape index: {}]
  %s3 = inlined_call_operand.vmem [shape: bf16[2,16,64], index: 3, kind: output, shape index: {}]
  %s4 = sld [smem:[#allocation0]]
  $region45: #{bottle_stack_forward.21} parent=0
    _
  %s6 = ssub.s32 1, %s4
  %s7 = scalar_select 0, %s6, %s4
  loop: start=0, step=1, limit=4
  $region2: #{bottle_stack_forward.21} parent=0 // loop_pre_header
    _
  $region3: #{bottle_stack_forward.21} parent=0 // loop_header
    %s9 = sphi 0, %s13
    %p10 = scmp.ge.s32.totalorder %s9, 4
    %s16 = sphi 0, %s28
    %s17 = sphi 0, %s24
    %s18 = sphi 0, %s16
    %s19 = sphi 0, %s17
    %s20 = sphi 0, %s18
    %s21 = sphi 0, %s19
    %s33 = sphi 0, %s35
    %s36 = sphi 0, %s33
    %s37 = sphi 0, %s36
    %s53 = sphi 0, %s37
    %s61 = sphi 0, %s63
    %s64 = sphi 0, %s61
    %s65 = sphi 0, %s64
    %s81 = sphi 0, %s65
    %s87 = sphi 0, %s89
    %s90 = sphi 0, %s87
    %s91 = sphi 0, %s90
    %s107 = sphi 0, %s91
    %s115 = sphi 0, %s117
    %s118 = sphi 0, %s115
    %s119 = sphi 0, %s118
    %s135 = sphi 0, %s119
  $region4: #{bottle_stack_forward.21} parent=0 // loop_header_branch
    %12 = sbr.rel (%p10) target = $region8
  $region5: #{bottle_stack_forward.21} parent=0 // loop_body
    %s14 = ssub.s32 %s9, 1
    %s15 = ssub.s32 %s9, 2
    %s22 = sadd.s32 1, %s17
    %p23 = scmp.ge.s32.totalorder %s22, 1
    %s24 = scalar_select %p23, 0, %s22
    %s25 = sadd.s32 1, %s16
    %s26 = scalar_select %p23, %s25, %s16
    %p27 = scmp.ge.s32.totalorder %s26, 2
    %s28 = scalar_select %p27, 0, %s26
    %s29 = ssub.s32 %s16, %s28
    %s30 = ssub.s32 %s17, %s24
    %s31 = sor.u32 %s29, %s30
    %p32 = scmp.eq.s32.totalorder %s31, 0
    %s34 = sadd.s32 %s33, 1
    %s35 = scalar_select %p32, %s33, %s34
    %p38 = pneg %p32
    %p39 = scmp.eq.s32.totalorder %s9, 1
    %p40 = por %p38, %p39
    %p41 = scmp.ne.s32.totalorder %s33, %s36
    %p42 = scmp.eq.s32.totalorder %s9, 0
    %p43 = por %p41, %p42
    %p44 = scmp.ne.s32.totalorder %s33, %s36
    %p45 = scmp.eq.s32.totalorder %s14, 1
    %p46 = por %p44, %p45
    %p47 = scmp.ne.s32.totalorder %s36, %s37
    %p48 = scmp.eq.s32.totalorder %s14, 0
    %p49 = por %p47, %p48
    %p50 = scmp.ne.s32.totalorder %s36, %s37
    %p51 = scmp.eq.s32.totalorder %s15, 1
    %p52 = por %p50, %p51
    %p54 = scmp.ne.s32.totalorder %s37, %s53
    %p55 = scmp.eq.s32.totalorder %s15, 0
    %p56 = por %p54, %p55
    %s57 = ssub.s32 %s16, %s28
    %s58 = ssub.s32 %s17, %s24
    %s59 = sor.u32 %s57, %s58
    %p60 = scmp.eq.s32.totalorder %s59, 0
    %s62 = sadd.s32 %s61, 1
    %s63 = scalar_select %p60, %s61, %s62
    %p66 = pneg %p60
    %p67 = scmp.eq.s32.totalorder %s9, 1
    %p68 = por %p66, %p67
    %p69 = scmp.ne.s32.totalorder %s61, %s64
    %p70 = scmp.eq.s32.totalorder %s9, 0
    %p71 = por %p69, %p70
    %p72 = scmp.ne.s32.totalorder %s61, %s64
    %p73 = scmp.eq.s32.totalorder %s14, 1
    %p74 = por %p72, %p73
    %p75 = scmp.ne.s32.totalorder %s64, %s65
    %p76 = scmp.eq.s32.totalorder %s14, 0
    %p77 = por %p75, %p76
    %p78 = scmp.ne.s32.totalorder %s64, %s65
    %p79 = scmp.eq.s32.totalorder %s15, 1
    %p80 = por %p78, %p79
    %p82 = scmp.ne.s32.totalorder %s65, %s81
    %p83 = scmp.eq.s32.totalorder %s15, 0
    %p84 = por %p82, %p83
    %s85 = ssub.s32 %s16, %s28
    %p86 = scmp.eq.s32.totalorder %s85, 0
    %s88 = sadd.s32 %s87, 1
    %s89 = scalar_select %p86, %s87, %s88
    %p92 = pneg %p86
    %p93 = scmp.eq.s32.totalorder %s9, 1
    %p94 = por %p92, %p93
    %p95 = scmp.ne.s32.totalorder %s87, %s90
    %p96 = scmp.eq.s32.totalorder %s9, 0
    %p97 = por %p95, %p96
    %p98 = scmp.ne.s32.totalorder %s87, %s90
    %p99 = scmp.eq.s32.totalorder %s14, 1
    %p100 = por %p98, %p99
    %p101 = scmp.ne.s32.totalorder %s90, %s91
    %p102 = scmp.eq.s32.totalorder %s14, 0
    %p103 = por %p101, %p102
    %p104 = scmp.ne.s32.totalorder %s90, %s91
    %p105 = scmp.eq.s32.totalorder %s15, 1
    %p106 = por %p104, %p105
    %p108 = scmp.ne.s32.totalorder %s91, %s107
    %p109 = scmp.eq.s32.totalorder %s15, 0
    %p110 = por %p108, %p109
    %s111 = ssub.s32 %s16, %s28
    %s112 = ssub.s32 %s17, %s24
    %s113 = sor.u32 %s111, %s112
    %p114 = scmp.eq.s32.totalorder %s113, 0
    %s116 = sadd.s32 %s115, 1
    %s117 = scalar_select %p114, %s115, %s116
    %p120 = pneg %p114
    %p121 = scmp.eq.s32.totalorder %s9, 1
    %p122 = por %p120, %p121
    %p123 = scmp.ne.s32.totalorder %s115, %s118
    %p124 = scmp.eq.s32.totalorder %s9, 0
    %p125 = por %p123, %p124
    %p126 = scmp.ne.s32.totalorder %s115, %s118
    %p127 = scmp.eq.s32.totalorder %s14, 1
    %p128 = por %p126, %p127
    %p129 = scmp.ne.s32.totalorder %s118, %s119
    %p130 = scmp.eq.s32.totalorder %s14, 0
    %p131 = por %p129, %p130
    %p132 = scmp.ne.s32.totalorder %s118, %s119
    %p133 = scmp.eq.s32.totalorder %s15, 1
    %p134 = por %p132, %p133
    %p136 = scmp.ne.s32.totalorder %s119, %s135
    %p137 = scmp.eq.s32.totalorder %s15, 0
    %p138 = por %p136, %p137
    %p139 = scmp.le.s32.totalorder 1, %s9
    %p140 = scmp.lt.s32.totalorder %s9, 3
    %p141 = pnand %p139, %p140
    %p142 = pneg %p141
    // Predicated region
    $region9: #{bottle_stack_forward.21} parent=5 // pred_check
      _
    $region10: #{bottle_stack_forward.21} parent=5 // pred_check_branch
      %144 = sbr.rel (%p141) target = $region12
    $region11: #{bottle_stack_forward.21} parent=5 // pred_region
      %s145 = ssub.s32 %s9, 1
    $region12: #{bottle_stack_forward.21} parent=5 // pred_fallthru
      _
    %p146 = scmp.lt.s32.totalorder %s9, 2
    // Predicated region
    $region13: #{bottle_stack_forward.21} parent=5 // pred_check
      %p147 = pneg %p146
    $region14: #{bottle_stack_forward.21} parent=5 // pred_check_branch
      %149 = sbr.rel (%p147) target = $region16
    $region15: #{bottle_stack_forward.21} parent=5 // pred_region
      // Predicated region
      $region17: #{bottle_stack_forward.21} parent=15 // pred_check
        %p150 = pneg %p43
      $region18: #{bottle_stack_forward.21} parent=15 // pred_check_branch
        %152 = sbr.rel (%p150) target = $region20
      $region19: #{bottle_stack_forward.21} parent=15 // pred_region
        %s153 = smul.u32 2, %s17
        %p154 = scmp.lt.s32.totalorder %s16, 1
        %s155 = scalar_select %p154, %s16, 1
        %p156 = scmp.lt.s32.totalorder %s153, 1
        %s157 = scalar_select %p156, %s153, 1
        %s158 = smul.addr %s155, 2
        %s159 = sadd.s32 %s157, %s158
        %s160 = smul.addr %s159, 4
        %s161 = scalar_lea.vmem %s0, %s160
        %s162 = smul.u32 2, %s17
      $region20: #{bottle_stack_forward.21} parent=15 // pred_fallthru
        _
      // Predicated region
      $region21: #{bottle_stack_forward.21} parent=15 // pred_check
        %p163 = pneg %p71
      $region22: #{bottle_stack_forward.21} parent=15 // pred_check_branch
        %165 = sbr.rel (%p163) target = $region24
      $region23: #{bottle_stack_forward.21} parent=15 // pred_region
        %s166 = smul.u32 2, %s17
        %p167 = scmp.lt.s32.totalorder %s16, 1
        %s168 = scalar_select %p167, %s16, 1
        %p169 = scmp.lt.s32.totalorder %s166, 1
        %s170 = scalar_select %p169, %s166, 1
        %s171 = smul.addr %s168, 2
        %s172 = sadd.s32 %s170, %s171
        %s173 = smul.addr %s172, 4
        %s174 = scalar_lea.vmem %s1, %s173
        %s175 = smul.u32 2, %s17
      $region24: #{bottle_stack_forward.21} parent=15 // pred_fallthru
        _
      // Predicated region
      $region25: #{bottle_stack_forward.21} parent=15 // pred_check
        %p176 = pneg %p97
      $region26: #{bottle_stack_forward.21} parent=15 // pred_check_branch
        %178 = sbr.rel (%p176) target = $region28
      $region27: #{bottle_stack_forward.21} parent=15 // pred_region
        %p179 = scmp.lt.s32.totalorder %s16, 1
        %s180 = scalar_select %p179, %s16, 1
        %s181 = scalar_lea.vmem %s2, %s180
      $region28: #{bottle_stack_forward.21} parent=15 // pred_fallthru
        _
    $region16: #{bottle_stack_forward.21} parent=5 // pred_fallthru
      _
    %p182 = scmp.le.s32.totalorder 1, %s9
    %p183 = scmp.lt.s32.totalorder %s9, 3
    %p184 = pnand %p182, %p183
    %p185 = pneg %p184
    // Predicated region
    $region29: #{bottle_stack_forward.21} parent=5 // pred_check
      _
    $region30: #{bottle_stack_forward.21} parent=5 // pred_check_branch
      %187 = sbr.rel (%p184) target = $region32
    $region31: #{bottle_stack_forward.21} parent=5 // pred_region
      %s188 = ssub.s32 %s9, 1
      %s189 = smul.u32 2, %s19
      %p190 = scmp.lt.s32.totalorder %s18, 1
      %s191 = scalar_select %p190, %s18, 1
      %p192 = scmp.lt.s32.totalorder %s189, 1
      %s193 = scalar_select %p192, %s189, 1
      %s194 = smul.addr %s191, 2
      %s195 = sadd.s32 %s193, %s194
      %s196 = smul.addr %s195, 4
      %s197 = scalar_lea.vmem %s0, %s196
      %p198 = pneg %p49
      %p199 = pneg %p46
      %s200 = smul.u32 2, %s19
      %p201 = scmp.lt.s32.totalorder %s18, 1
      %s202 = scalar_select %p201, %s18, 1
      %p203 = scmp.lt.s32.totalorder %s200, 1
      %s204 = scalar_select %p203, %s200, 1
      %s205 = smul.addr %s202, 2
      %s206 = sadd.s32 %s204, %s205
      %s207 = smul.addr %s206, 4
      %s208 = scalar_lea.vmem %s1, %s207
      %p209 = pneg %p77
      %p210 = pneg %p74
      %p211 = scmp.lt.s32.totalorder %s18, 1
      %s212 = scalar_select %p211, %s18, 1
      %s213 = scalar_lea.vmem %s2, %s212
      %p214 = pneg %p103
      %p215 = pneg %p100
      %p216 = pneg %p131
      %p217 = pneg %p128
      %s218 = smul.u32 2, %s19
      %p219 = scmp.lt.s32.totalorder %s18, 1
      %s220 = scalar_select %p219, %s18, 1
      %p221 = scmp.lt.s32.totalorder %s218, 1
      %s222 = scalar_select %p221, %s218, 1
      %s223 = smul.addr %s220, 2
      %s224 = sadd.s32 %s222, %s223
      %s225 = smul.addr %s224, 4
      %s226 = scalar_lea.vmem %s3, %s225
      %s227 = smul.u32 2, %s19
      %p228 = scmp.lt.s32.totalorder %s18, 1
      %s229 = scalar_select %p228, %s18, 1
      %p230 = scmp.lt.s32.totalorder %s227, 1
      %s231 = scalar_select %p230, %s227, 1
      %s232 = smul.addr %s229, 2
      %s233 = sadd.s32 %s231, %s232
      %s234 = smul.addr %s233, 4
      %s235 = scalar_lea.vmem %s0, %s234
      %s236 = smul.u32 2, %s19
      %s237 = smul.u32 2, %s19
      %p238 = scmp.lt.s32.totalorder %s18, 1
      %s239 = scalar_select %p238, %s18, 1
      %p240 = scmp.lt.s32.totalorder %s237, 1
      %s241 = scalar_select %p240, %s237, 1
      %s242 = smul.addr %s239, 2
      %s243 = sadd.s32 %s241, %s242
      %s244 = smul.addr %s243, 4
      %s245 = scalar_lea.vmem %s1, %s244
      %s246 = smul.u32 2, %s19
      %p247 = scmp.lt.s32.totalorder %s18, 1
      %s248 = scalar_select %p247, %s18, 1
      %s249 = scalar_lea.vmem %s2, %s248
      %s250 = smul.u32 2, %s19
      %p251 = scmp.lt.s32.totalorder %s18, 1
      %s252 = scalar_select %p251, %s18, 1
      %p253 = scmp.lt.s32.totalorder %s250, 1
      %s254 = scalar_select %p253, %s250, 1
      %s255 = smul.addr %s252, 2
      %s256 = sadd.s32 %s254, %s255
      %s257 = smul.addr %s256, 4
      %s258 = scalar_lea.vmem %s3, %s257
      %s259 = smul.u32 2, %s19
      %v260 = vld [vmem:[%s249] sm:$0x1]
      %v261 = vld [vmem:[%s235] sm:$0xf]
      %v262 = vld [vmem:[%s235 + $0x4] sm:$0xf]
      %v263 = vunpack.c.l.bf16 %v261
      %v264 = vunpack.c.l.bf16 %v262
      %v266 = vlaneseq
      %v267 = vshrl.u32 %v266, 7
      %v268 = vsub.s32 0, %v267
      %v269 = vrot.slane %v260, %v268
      %v271 = vmul.f32 %v263, %v269
      %v272 = vmul.f32 %v264, %v269
      %v273 = vld [vmem:[%s245] sm:$0xf]
      %v274 = vld [vmem:[%s245 + $0x4] sm:$0xf]
      %v275 = vunpack.c.l.bf16 %v273
      %v276 = vunpack.c.l.bf16 %v274
      %v277 = vadd.f32 %v271, %v275
      %v278 = vadd.f32 %v272, %v276
      %v279 = vmax.f32 %v277, 0.0
      %v280 = vmax.f32 %v278, 0.0
      %v281 = vpack.c.bf16 %v280, %v279
      %v283 = vunpack.c.l.b16 %v281
      %v284 = vunpack.c.h.b16 %v281
      %v285 = vpack.c.b16 %v283, %v283
      %v286 = vpack.c.b16 %v284, %v284
      %vm289 = vcmask 519168
      %290 = vst.msk [vmem:[%s258] sm:$0xf] %vm289, %v285
      %291 = vst.msk [vmem:[%s258 + $0x4] sm:$0xf] %vm289, %v286
      %s292 = smul.u32 2, %s19
      %p293 = scmp.lt.s32.totalorder %s18, 1
      %s294 = scalar_select %p293, %s18, 1
      %p295 = scmp.lt.s32.totalorder %s292, 1
      %s296 = scalar_select %p295, %s292, 1
      %s297 = smul.addr %s294, 2
      %s298 = sadd.s32 %s296, %s297
      %s299 = smul.addr %s298, 4
      %s300 = scalar_lea.vmem %s3, %s299
      // Predicated region
      $region33: #{bottle_stack_forward.21} parent=31 // pred_check
        %p301 = pneg %p128
      $region34: #{bottle_stack_forward.21} parent=31 // pred_check_branch
        %303 = sbr.rel (%p301) target = $region36
      $region35: #{bottle_stack_forward.21} parent=31 // pred_region
        %s304 = smul.u32 2, %s19
      $region36: #{bottle_stack_forward.21} parent=31 // pred_fallthru
        _
    $region32: #{bottle_stack_forward.21} parent=5 // pred_fallthru
      _
    %p305 = scmp.le.s32.totalorder 2, %s9
    // Predicated region
    $region37: #{bottle_stack_forward.21} parent=5 // pred_check
      %p306 = pneg %p305
    $region38: #{bottle_stack_forward.21} parent=5 // pred_check_branch
      %308 = sbr.rel (%p306) target = $region40
    $region39: #{bottle_stack_forward.21} parent=5 // pred_region
      %s309 = ssub.s32 %s9, 2
      // Predicated region
      $region41: #{bottle_stack_forward.21} parent=39 // pred_check
        %p310 = pneg %p134
      $region42: #{bottle_stack_forward.21} parent=39 // pred_check_branch
        %312 = sbr.rel (%p310) target = $region44
      $region43: #{bottle_stack_forward.21} parent=39 // pred_region
        %s313 = smul.u32 2, %s21
        %p314 = scmp.lt.s32.totalorder %s20, 1
        %s315 = scalar_select %p314, %s20, 1
        %p316 = scmp.lt.s32.totalorder %s313, 1
        %s317 = scalar_select %p316, %s313, 1
        %s318 = smul.addr %s315, 2
        %s319 = sadd.s32 %s317, %s318
        %s320 = smul.addr %s319, 4
        %s321 = scalar_lea.vmem %s3, %s320
      $region44: #{bottle_stack_forward.21} parent=39 // pred_fallthru
        _
    $region40: #{bottle_stack_forward.21} parent=5 // pred_fallthru
      _
  $region6: #{bottle_stack_forward.21} parent=0 // loop_footer
    %s13 = sadd.s32 1, %s9
  $region7: #{bottle_stack_forward.21} parent=0 // loop_footer_branch
    %8 = sbr.rel target = $region3
  $region8: #{bottle_stack_forward.21} parent=0 // loop_exit
    _

// kernel: bottle_stack_forward.22
$region0: #{bottle_stack_forward.22}
  #allocation0 [shape = 'u32[]', space=smem, size = 0x4, offset = 0x4, fixed_abs, tag = 'smem constant byte address 0x4 - core index']
  #allocation1 [shape = 'u32[144,128]{1,0:T(1,128)}', space=vmem, size = 0x12000, scoped, tag = 'internal scratch']
  #allocation2 [shape = 'f32[16,16]{1,0:T(8,128)}', space=vmem, size = 0x2000, scoped, tag = 'scratch operand']
  %s0 = inlined_call_operand.vmem [shape: bf16[32,64], index: 0, kind: input, shape index: {}]
  %s1 = inlined_call_operand.vmem [shape: bf16[64,16], index: 1, kind: input, shape index: {}]
  %s2 = inlined_call_operand.vmem [shape: f32[1,16], index: 2, kind: input, shape index: {}]
  %s3 = inlined_call_operand.vmem [shape: f32[1,16], index: 3, kind: input, shape index: {}]
  %s4 = inlined_call_operand.vmem [shape: bf16[32,16], index: 4, kind: output, shape index: {}]
  %s5 = sld [smem:[#allocation0]]
  $region57: #{bottle_stack_forward.22} parent=0
    _
  %s7 = ssub.s32 1, %s5
  %s8 = scalar_select 0, %s7, %s5
  loop: start=0, step=1, limit=4
  $region2: #{bottle_stack_forward.22} parent=0 // loop_pre_header
    _
  $region3: #{bottle_stack_forward.22} parent=0 // loop_header
    %s10 = sphi 0, %s14
    %p11 = scmp.ge.s32.totalorder %s10, 4
    %s17 = sphi 0, %s29
    %s18 = sphi 0, %s25
    %s19 = sphi 0, %s17
    %s20 = sphi 0, %s18
    %s21 = sphi 0, %s19
    %s22 = sphi 0, %s20
    %s34 = sphi 0, %s36
    %s37 = sphi 0, %s34
    %s38 = sphi 0, %s37
    %s54 = sphi 0, %s38
    %s60 = sphi 0, %s62
    %s63 = sphi 0, %s60
    %s64 = sphi 0, %s63
    %s80 = sphi 0, %s64
    %s84 = sphi 0, %s84
    %s86 = sphi 0, %s84
    %s87 = sphi 0, %s86
    %s101 = sphi 0, %s87
    %s105 = sphi 0, %s105
    %s107 = sphi 0, %s105
    %s108 = sphi 0, %s107
    %s122 = sphi 0, %s108
    %s128 = sphi 0, %s130
    %s131 = sphi 0, %s128
    %s132 = sphi 0, %s131
    %s148 = sphi 0, %s132
  $region4: #{bottle_stack_forward.22} parent=0 // loop_header_branch
    %13 = sbr.rel (%p11) target = $region8
  $region5: #{bottle_stack_forward.22} parent=0 // loop_body
    %s15 = ssub.s32 %s10, 1
    %s16 = ssub.s32 %s10, 2
    %s23 = sadd.s32 1, %s18
    %p24 = scmp.ge.s32.totalorder %s23, 1
    %s25 = scalar_select %p24, 0, %s23
    %s26 = sadd.s32 1, %s17
    %s27 = scalar_select %p24, %s26, %s17
    %p28 = scmp.ge.s32.totalorder %s27, 2
    %s29 = scalar_select %p28, 0, %s27
    %s30 = ssub.s32 %s17, %s29
    %s31 = ssub.s32 %s18, %s25
    %s32 = sor.u32 %s30, %s31
    %p33 = scmp.eq.s32.totalorder %s32, 0
    %s35 = sadd.s32 %s34, 1
    %s36 = scalar_select %p33, %s34, %s35
    %p39 = pneg %p33
    %p40 = scmp.eq.s32.totalorder %s10, 1
    %p41 = por %p39, %p40
    %p42 = scmp.ne.s32.totalorder %s34, %s37
    %p43 = scmp.eq.s32.totalorder %s10, 0
    %p44 = por %p42, %p43
    %p45 = scmp.ne.s32.totalorder %s34, %s37
    %p46 = scmp.eq.s32.totalorder %s15, 1
    %p47 = por %p45, %p46
    %p48 = scmp.ne.s32.totalorder %s37, %s38
    %p49 = scmp.eq.s32.totalorder %s15, 0
    %p50 = por %p48, %p49
    %p51 = scmp.ne.s32.totalorder %s37, %s38
    %p52 = scmp.eq.s32.totalorder %s16, 1
    %p53 = por %p51, %p52
    %p55 = scmp.ne.s32.totalorder %s38, %s54
    %p56 = scmp.eq.s32.totalorder %s16, 0
    %p57 = por %p55, %p56
    %s58 = ssub.s32 %s18, %s25
    %p59 = scmp.eq.s32.totalorder %s58, 0
    %s61 = sadd.s32 %s60, 1
    %s62 = scalar_select %p59, %s60, %s61
    %p65 = pneg %p59
    %p66 = scmp.eq.s32.totalorder %s10, 1
    %p67 = por %p65, %p66
    %p68 = scmp.ne.s32.totalorder %s60, %s63
    %p69 = scmp.eq.s32.totalorder %s10, 0
    %p70 = por %p68, %p69
    %p71 = scmp.ne.s32.totalorder %s60, %s63
    %p72 = scmp.eq.s32.totalorder %s15, 1
    %p73 = por %p71, %p72
    %p74 = scmp.ne.s32.totalorder %s63, %s64
    %p75 = scmp.eq.s32.totalorder %s15, 0
    %p76 = por %p74, %p75
    %p77 = scmp.ne.s32.totalorder %s63, %s64
    %p78 = scmp.eq.s32.totalorder %s16, 1
    %p79 = por %p77, %p78
    %p81 = scmp.ne.s32.totalorder %s64, %s80
    %p82 = scmp.eq.s32.totalorder %s16, 0
    %p83 = por %p81, %p82
    %s85 = sadd.s32 %s84, 1
    %p88 = scmp.eq.s32.totalorder %s10, 1
    %p89 = scmp.ne.s32.totalorder %s84, %s86
    %p90 = scmp.eq.s32.totalorder %s10, 0
    %p91 = por %p89, %p90
    %p92 = scmp.ne.s32.totalorder %s84, %s86
    %p93 = scmp.eq.s32.totalorder %s15, 1
    %p94 = por %p92, %p93
    %p95 = scmp.ne.s32.totalorder %s86, %s87
    %p96 = scmp.eq.s32.totalorder %s15, 0
    %p97 = por %p95, %p96
    %p98 = scmp.ne.s32.totalorder %s86, %s87
    %p99 = scmp.eq.s32.totalorder %s16, 1
    %p100 = por %p98, %p99
    %p102 = scmp.ne.s32.totalorder %s87, %s101
    %p103 = scmp.eq.s32.totalorder %s16, 0
    %p104 = por %p102, %p103
    %s106 = sadd.s32 %s105, 1
    %p109 = scmp.eq.s32.totalorder %s10, 1
    %p110 = scmp.ne.s32.totalorder %s105, %s107
    %p111 = scmp.eq.s32.totalorder %s10, 0
    %p112 = por %p110, %p111
    %p113 = scmp.ne.s32.totalorder %s105, %s107
    %p114 = scmp.eq.s32.totalorder %s15, 1
    %p115 = por %p113, %p114
    %p116 = scmp.ne.s32.totalorder %s107, %s108
    %p117 = scmp.eq.s32.totalorder %s15, 0
    %p118 = por %p116, %p117
    %p119 = scmp.ne.s32.totalorder %s107, %s108
    %p120 = scmp.eq.s32.totalorder %s16, 1
    %p121 = por %p119, %p120
    %p123 = scmp.ne.s32.totalorder %s108, %s122
    %p124 = scmp.eq.s32.totalorder %s16, 0
    %p125 = por %p123, %p124
    %s126 = ssub.s32 %s17, %s29
    %p127 = scmp.eq.s32.totalorder %s126, 0
    %s129 = sadd.s32 %s128, 1
    %s130 = scalar_select %p127, %s128, %s129
    %p133 = pneg %p127
    %p134 = scmp.eq.s32.totalorder %s10, 1
    %p135 = por %p133, %p134
    %p136 = scmp.ne.s32.totalorder %s128, %s131
    %p137 = scmp.eq.s32.totalorder %s10, 0
    %p138 = por %p136, %p137
    %p139 = scmp.ne.s32.totalorder %s128, %s131
    %p140 = scmp.eq.s32.totalorder %s15, 1
    %p141 = por %p139, %p140
    %p142 = scmp.ne.s32.totalorder %s131, %s132
    %p143 = scmp.eq.s32.totalorder %s15, 0
    %p144 = por %p142, %p143
    %p145 = scmp.ne.s32.totalorder %s131, %s132
    %p146 = scmp.eq.s32.totalorder %s16, 1
    %p147 = por %p145, %p146
    %p149 = scmp.ne.s32.totalorder %s132, %s148
    %p150 = scmp.eq.s32.totalorder %s16, 0
    %p151 = por %p149, %p150
    %p152 = scmp.le.s32.totalorder 1, %s10
    %p153 = scmp.lt.s32.totalorder %s10, 3
    %p154 = pnand %p152, %p153
    %p155 = pneg %p154
    // Predicated region
    $region9: #{bottle_stack_forward.22} parent=5 // pred_check
      _
    $region10: #{bottle_stack_forward.22} parent=5 // pred_check_branch
      %157 = sbr.rel (%p154) target = $region12
    $region11: #{bottle_stack_forward.22} parent=5 // pred_region
      %s158 = ssub.s32 %s10, 1
      // Predicated region
      $region13: #{bottle_stack_forward.22} parent=11 // pred_check
        %p159 = pneg %p76
      $region14: #{bottle_stack_forward.22} parent=11 // pred_check_branch
        %161 = sbr.rel (%p159) target = $region16
      $region15: #{bottle_stack_forward.22} parent=11 // pred_region
        %s162 = smul.u32 8, %s20
        %p163 = scmp.lt.s32.totalorder %s162, 7
        %s164 = scalar_select %p163, %s162, 7
        %s165 = smul.addr %s164, 4
        %s166 = scalar_lea.vmem %s1, %s165
        %s167 = smul.u32 8, %s20
      $region16: #{bottle_stack_forward.22} parent=11 // pred_fallthru
        _
      // Predicated region
      $region17: #{bottle_stack_forward.22} parent=11 // pred_check
        %p168 = pneg %p97
      $region18: #{bottle_stack_forward.22} parent=11 // pred_check_branch
        %170 = sbr.rel (%p168) target = $region20
      $region19: #{bottle_stack_forward.22} parent=11 // pred_region
        _
      $region20: #{bottle_stack_forward.22} parent=11 // pred_fallthru
        _
      // Predicated region
      $region21: #{bottle_stack_forward.22} parent=11 // pred_check
        %p171 = pneg %p118
      $region22: #{bottle_stack_forward.22} parent=11 // pred_check_branch
        %173 = sbr.rel (%p171) target = $region24
      $region23: #{bottle_stack_forward.22} parent=11 // pred_region
        _
      $region24: #{bottle_stack_forward.22} parent=11 // pred_fallthru
        _
    $region12: #{bottle_stack_forward.22} parent=5 // pred_fallthru
      _
    %p174 = scmp.lt.s32.totalorder %s10, 2
    // Predicated region
    $region25: #{bottle_stack_forward.22} parent=5 // pred_check
      %p175 = pneg %p174
    $region26: #{bottle_stack_forward.22} parent=5 // pred_check_branch
      %177 = sbr.rel (%p175) target = $region28
    $region27: #{bottle_stack_forward.22} parent=5 // pred_region
      // Predicated region
      $region29: #{bottle_stack_forward.22} parent=27 // pred_check
        %p178 = pneg %p44
      $region30: #{bottle_stack_forward.22} parent=27 // pred_check_branch
        %180 = sbr.rel (%p178) target = $region32
      $region31: #{bottle_stack_forward.22} parent=27 // pred_region
        %s181 = smul.u32 2, %s17
        %p182 = scmp.lt.s32.totalorder %s181, 3
        %s183 = scalar_select %p182, %s181, 3
        %p184 = scmp.lt.s32.totalorder %s18, 0
        %s185 = scalar_select %p184, %s18, 0
        %s186 = sadd.s32 %s185, %s183
        %s187 = smul.addr %s186, 4
        %s188 = scalar_lea.vmem %s0, %s187
        %s189 = smul.u32 2, %s17
      $region32: #{bottle_stack_forward.22} parent=27 // pred_fallthru
        _
    $region28: #{bottle_stack_forward.22} parent=5 // pred_fallthru
      _
    %p190 = scmp.le.s32.totalorder 1, %s10
    %p191 = scmp.lt.s32.totalorder %s10, 3
    %p192 = pnand %p190, %p191
    %p193 = pneg %p192
    // Predicated region
    $region33: #{bottle_stack_forward.22} parent=5 // pred_check
      _
    $region34: #{bottle_stack_forward.22} parent=5 // pred_check_branch
      %195 = sbr.rel (%p192) target = $region36
    $region35: #{bottle_stack_forward.22} parent=5 // pred_region
      %s196 = ssub.s32 %s10, 1
      %s197 = smul.u32 2, %s19
      %p198 = scmp.lt.s32.totalorder %s197, 3
      %s199 = scalar_select %p198, %s197, 3
      %p200 = scmp.lt.s32.totalorder %s20, 0
      %s201 = scalar_select %p200, %s20, 0
      %s202 = sadd.s32 %s201, %s199
      %s203 = smul.addr %s202, 4
      %s204 = scalar_lea.vmem %s0, %s203
      %p205 = pneg %p50
      %p206 = pneg %p47
      %s207 = smul.u32 8, %s20
      %p208 = scmp.lt.s32.totalorder %s207, 7
      %s209 = scalar_select %p208, %s207, 7
      %s210 = smul.addr %s209, 4
      %s211 = scalar_lea.vmem %s1, %s210
      %p212 = pneg %p76
      %p213 = pneg %p73
      %p214 = pneg %p97
      %p215 = pneg %p94
      %p216 = pneg %p118
      %p217 = pneg %p115
      %p218 = pneg %p144
      %p219 = pneg %p141
      %s220 = smul.u32 2, %s19
      %p221 = scmp.lt.s32.totalorder %s220, 3
      %s222 = scalar_select %p221, %s220, 3
      %s223 = smul.addr %s222, 4
      %s224 = scalar_lea.vmem %s4, %s223
      %s225 = smul.u32 2, %s19
      %p226 = scmp.lt.s32.totalorder %s225, 3
      %s227 = scalar_select %p226, %s225, 3
      %p228 = scmp.lt.s32.totalorder %s20, 0
      %s229 = scalar_select %p228, %s20, 0
      %s230 = sadd.s32 %s229, %s227
      %s231 = smul.addr %s230, 4
      %s232 = scalar_lea.vmem %s0, %s231
      %s233 = smul.u32 2, %s19
      %s234 = smul.u32 8, %s20
      %p235 = scmp.lt.s32.totalorder %s234, 7
      %s236 = scalar_select %p235, %s234, 7
      %s237 = smul.addr %s236, 4
      %s238 = scalar_lea.vmem %s1, %s237
      %s239 = smul.u32 8, %s20
      %s240 = smul.u32 2, %s19
      %p241 = scmp.lt.s32.totalorder %s240, 3
      %s242 = scalar_select %p241, %s240, 3
      %s243 = smul.addr %s242, 4
      %s244 = scalar_lea.vmem %s4, %s243
      %s245 = smul.u32 2, %s19
      %p247 = scmp.eq.s32.totalorder %s20, 0
      // Predicated region
      $region37: #{bottle_stack_forward.22} parent=35 // pred_check
        %p248 = pneg %p247
      $region38: #{bottle_stack_forward.22} parent=35 // pred_check_branch
        %250 = sbr.rel (%p248) target = $region40
      $region39: #{bottle_stack_forward.22} parent=35 // pred_region
        %vm251 = vcmask 130048
        %252 = vst.msk [vmem:[#allocation2] sm:$0xff] %vm251, 0.0
        %253 = vst.msk [vmem:[#allocation2 + $0x8] sm:$0xff] %vm251, 0.0
      $region40: #{bottle_stack_forward.22} parent=35 // pred_fallthru
        _
      %v254 = vld [vmem:[%s232] sm:$0xf]
      %v255 = vld [vmem:[%s232 + $0x4] sm:$0xf]
      %v256 = vld [vmem:[#allocation2] sm:$0xff]
      %v257 = vld [vmem:[#allocation2 + $0x8] sm:$0xff]
      %v258 = vld [vmem:[%s238] sm:$0xf]
      %v259 = vld [vmem:[%s238 + $0x4] sm:$0xf]
      %v260 = vld [vmem:[%s238 + $0x8] sm:$0xf]
      %v261 = vld [vmem:[%s238 + $0xc] sm:$0xf]
      %v262 = vld [vmem:[%s238 + $0x10] sm:$0xf]
      %v263 = vld [vmem:[%s238 + $0x14] sm:$0xf]
      %v264 = vld [vmem:[%s238 + $0x18] sm:$0xf]
      %v265 = vld [vmem:[%s238 + $0x1c] sm:$0xf]
      %v268 = vunpack.c.l.b16 %v254
      %v269 = vunpack.c.l.b16 %v255
      %v270 = vpack.c.b16 %v269, %v268
      %v279 = vunpack.c.l.b16 %v258
      %v280 = vunpack.c.l.b16 %v259
      %v281 = vunpack.c.l.b16 %v260
      %v282 = vunpack.c.l.b16 %v261
      %v283 = vunpack.c.l.b16 %v262
      %v284 = vunpack.c.l.b16 %v263
      %v285 = vunpack.c.l.b16 %v264
      %v286 = vunpack.c.l.b16 %v265
      %v287 = vpack.c.b16 %v280, %v279
      %v288 = vpack.c.b16 %v282, %v281
      %v289 = vpack.c.b16 %v284, %v283
      %v290 = vpack.c.b16 %v286, %v285
      %vm295 = vcmask 523264
      %v297 = vsel %vm295, %v270, 0
      %299 = vmatprep.subr.bf16.mxu0 0
      %300 = vmatpush1.bf16.msra.mxu0 %v287
      %301 = vmatprep.subr.bf16.mxu0 0
      %302 = vmatpush1.bf16.msra.mxu0 %v288
      %303 = vmatprep.subr.bf16.mxu0 0
      %304 = vmatpush1.bf16.msra.mxu0 %v289
      %305 = vmatprep.subr.bf16.mxu0 0
      %306 = vmatpush1.bf16.msra.mxu0 %v290
      %307 = vmatprep.subr.bf16.mxu0 0
      %308 = vmatpush1.bf16.msra.mxu0 0
      %309 = vmatprep.subr.bf16.mxu0 0
      %310 = vmatpush1.bf16.msra.mxu0 0
      %311 = vmatprep.subr.bf16.mxu0 0
      %312 = vmatpush1.bf16.msra.mxu0 0
      %313 = vmatprep.subr.bf16.mxu0 0
      %314 = vmatpush1.bf16.msra.mxu0 0
      %315 = vmatprep.subr.bf16.mxu0 0
      %316 = vmatpush1.bf16.msra.mxu0 0
      %317 = vmatprep.subr.bf16.mxu0 0
      %318 = vmatpush1.bf16.msra.mxu0 0
      %319 = vmatprep.subr.bf16.mxu0 0
      %320 = vmatpush1.bf16.msra.mxu0 0
      %321 = vmatprep.subr.bf16.mxu0 0
      %322 = vmatpush1.bf16.msra.mxu0 0
      %323 = vmatprep.subr.bf16.mxu0 0
      %324 = vmatpush1.bf16.msra.mxu0 0
      %325 = vmatprep.subr.bf16.mxu0 0
      %326 = vmatpush1.bf16.msra.mxu0 0
      %327 = vmatprep.subr.bf16.mxu0 0
      %328 = vmatpush1.bf16.msra.mxu0 0
      %329 = vmatprep.subr.bf16.mxu0 0
      %330 = vmatpush1.bf16.msra.mxu0 0
      %331 = vmatprep.mubr.bf16.mxu0 0
      %332 = vmatmul.mubr.bf16.gmra.mrb[0].mxu0 %v297
      %v333 = vpop.f32.mrb[0].mxu0
      %v334 = vadd.f32 0.0, %v333
      %v335 = vpop.f32.mrb[0].mxu0
      %v336 = vpop.f32.mrb[0].mxu0
      %v337 = vadd.f32 0.0, %v336
      %v338 = vpop.f32.mrb[0].mxu0
      %339 = vdwg.mxu0
      %v340 = vadd.f32 %v256, %v334
      %v341 = vadd.f32 %v257, %v337
      %vm342 = vcmask 130048
      %343 = vst.msk [vmem:[#allocation2] sm:$0xff] %vm342, %v340
      %344 = vst.msk [vmem:[#allocation2 + $0x8] sm:$0xff] %vm342, %v341
      // Predicated region
      $region41: #{bottle_stack_forward.22} parent=35 // pred_check
        %p345 = pneg %p247
      $region42: #{bottle_stack_forward.22} parent=35 // pred_check_branch
        %347 = sbr.rel (%p345) target = $region44
      $region43: #{bottle_stack_forward.22} parent=35 // pred_region
        %v348 = vld [vmem:[#allocation2] sm:$0xff]
        %v349 = vld [vmem:[#allocation2 + $0x8] sm:$0xff]
        %v350 = vld [vmem:[%s2] sm:$0x1]
        %v352 = vlaneseq
        %v353 = vshrl.u32 %v352, 7
        %v354 = vsub.s32 0, %v353
        %v355 = vrot.slane %v350, %v354
        %v357 = vmul.f32 %v348, %v355
        %v358 = vmul.f32 %v349, %v355
        %v359 = vld [vmem:[%s3] sm:$0x1]
        %v361 = vlaneseq
        %v362 = vshrl.u32 %v361, 7
        %v363 = vsub.s32 0, %v362
        %v364 = vrot.slane %v359, %v363
        %v366 = vadd.f32 %v357, %v364
        %v367 = vadd.f32 %v358, %v364
        %v368 = vmax.f32 %v366, 0.0
        %v369 = vmax.f32 %v367, 0.0
        %v370 = vpack.c.bf16 %v369, %v368
        %v372 = vunpack.c.l.b16 %v370
        %v373 = vunpack.c.h.b16 %v370
        %v374 = vpack.c.b16 %v372, %v372
        %v375 = vpack.c.b16 %v373, %v373
        %vm378 = vcmask 125952
        %379 = vst.msk [vmem:[%s244] sm:$0xf] %vm378, %v374
        %380 = vst.msk [vmem:[%s244 + $0x4] sm:$0xf] %vm378, %v375
      $region44: #{bottle_stack_forward.22} parent=35 // pred_fallthru
        _
      %s381 = smul.u32 2, %s19
      %p382 = scmp.lt.s32.totalorder %s381, 3
      %s383 = scalar_select %p382, %s381, 3
      %s384 = smul.addr %s383, 4
      %s385 = scalar_lea.vmem %s4, %s384
      // Predicated region
      $region45: #{bottle_stack_forward.22} parent=35 // pred_check
        %p386 = pneg %p141
      $region46: #{bottle_stack_forward.22} parent=35 // pred_check_branch
        %388 = sbr.rel (%p386) target = $region48
      $region47: #{bottle_stack_forward.22} parent=35 // pred_region
        %s389 = smul.u32 2, %s19
      $region48: #{bottle_stack_forward.22} parent=35 // pred_fallthru
        _
    $region36: #{bottle_stack_forward.22} parent=5 // pred_fallthru
      _
    %p390 = scmp.le.s32.totalorder 2, %s10
    // Predicated region
    $region49: #{bottle_stack_forward.22} parent=5 // pred_check
      %p391 = pneg %p390
    $region50: #{bottle_stack_forward.22} parent=5 // pred_check_branch
      %393 = sbr.rel (%p391) target = $region52
    $region51: #{bottle_stack_forward.22} parent=5 // pred_region
      %s394 = ssub.s32 %s10, 2
      // Predicated region
      $region53: #{bottle_stack_forward.22} parent=51 // pred_check
        %p395 = pneg %p147
      $region54: #{bottle_stack_forward.22} parent=51 // pred_check_branch
        %397 = sbr.rel (%p395) target = $region56
      $region55: #{bottle_stack_forward.22} parent=51 // pred_region
        %s398 = smul.u32 2, %s21
        %p399 = scmp.lt.s32.totalorder %s398, 3
        %s400 = scalar_select %p399, %s398, 3
        %s401 = smul.addr %s400, 4
        %s402 = scalar_lea.vmem %s4, %s401
      $region56: #{bottle_stack_forward.22} parent=51 // pred_fallthru
        _
    $region52: #{bottle_stack_forward.22} parent=5 // pred_fallthru
      _
  $region6: #{bottle_stack_forward.22} parent=0 // loop_footer
    %s14 = sadd.s32 1, %s10
  $region7: #{bottle_stack_forward.22} parent=0 // loop_footer_branch
    %9 = sbr.rel target = $region3
  $region8: #{bottle_stack_forward.22} parent=0 // loop_exit
    _

// kernel: bottle_stack_forward.23
$region0: #{bottle_stack_forward.23}
  #allocation0 [shape = 'u32[]', space=smem, size = 0x4, offset = 0x4, fixed_abs, tag = 'smem constant byte address 0x4 - core index']
  #allocation1 [shape = 'u32[144,128]{1,0:T(1,128)}', space=vmem, size = 0x12000, scoped, tag = 'internal scratch']
  #allocation2 [shape = 'f32[16,48]{1,0:T(8,128)}', space=vmem, size = 0x2000, scoped, tag = 'scratch operand']
  %s0 = inlined_call_operand.vmem [shape: bf16[32,16], index: 0, kind: input, shape index: {}]
  %s1 = inlined_call_operand.vmem [shape: bf16[16,48], index: 1, kind: input, shape index: {}]
  %s2 = inlined_call_operand.vmem [shape: bf16[32,48], index: 2, kind: output, shape index: {}]
  %s3 = sld [smem:[#allocation0]]
  $region49: #{bottle_stack_forward.23} parent=0
    _
  %s5 = ssub.s32 1, %s3
  %s6 = scalar_select 0, %s5, %s3
  loop: start=0, step=1, limit=4
  $region2: #{bottle_stack_forward.23} parent=0 // loop_pre_header
    _
  $region3: #{bottle_stack_forward.23} parent=0 // loop_header
    %s8 = sphi 0, %s12
    %p9 = scmp.ge.s32.totalorder %s8, 4
    %s15 = sphi 0, %s27
    %s16 = sphi 0, %s23
    %s17 = sphi 0, %s15
    %s18 = sphi 0, %s16
    %s19 = sphi 0, %s17
    %s20 = sphi 0, %s18
    %s32 = sphi 0, %s34
    %s35 = sphi 0, %s32
    %s36 = sphi 0, %s35
    %s52 = sphi 0, %s36
    %s58 = sphi 0, %s60
    %s61 = sphi 0, %s58
    %s62 = sphi 0, %s61
    %s78 = sphi 0, %s62
    %s84 = sphi 0, %s86
    %s87 = sphi 0, %s84
    %s88 = sphi 0, %s87
    %s104 = sphi 0, %s88
  $region4: #{bottle_stack_forward.23} parent=0 // loop_header_branch
    %11 = sbr.rel (%p9) target = $region8
  $region5: #{bottle_stack_forward.23} parent=0 // loop_body
    %s13 = ssub.s32 %s8, 1
    %s14 = ssub.s32 %s8, 2
    %s21 = sadd.s32 1, %s16
    %p22 = scmp.ge.s32.totalorder %s21, 1
    %s23 = scalar_select %p22, 0, %s21
    %s24 = sadd.s32 1, %s15
    %s25 = scalar_select %p22, %s24, %s15
    %p26 = scmp.ge.s32.totalorder %s25, 2
    %s27 = scalar_select %p26, 0, %s25
    %s28 = ssub.s32 %s15, %s27
    %s29 = ssub.s32 %s16, %s23
    %s30 = sor.u32 %s28, %s29
    %p31 = scmp.eq.s32.totalorder %s30, 0
    %s33 = sadd.s32 %s32, 1
    %s34 = scalar_select %p31, %s32, %s33
    %p37 = pneg %p31
    %p38 = scmp.eq.s32.totalorder %s8, 1
    %p39 = por %p37, %p38
    %p40 = scmp.ne.s32.totalorder %s32, %s35
    %p41 = scmp.eq.s32.totalorder %s8, 0
    %p42 = por %p40, %p41
    %p43 = scmp.ne.s32.totalorder %s32, %s35
    %p44 = scmp.eq.s32.totalorder %s13, 1
    %p45 = por %p43, %p44
    %p46 = scmp.ne.s32.totalorder %s35, %s36
    %p47 = scmp.eq.s32.totalorder %s13, 0
    %p48 = por %p46, %p47
    %p49 = scmp.ne.s32.totalorder %s35, %s36
    %p50 = scmp.eq.s32.totalorder %s14, 1
    %p51 = por %p49, %p50
    %p53 = scmp.ne.s32.totalorder %s36, %s52
    %p54 = scmp.eq.s32.totalorder %s14, 0
    %p55 = por %p53, %p54
    %s56 = ssub.s32 %s16, %s23
    %p57 = scmp.eq.s32.totalorder %s56, 0
    %s59 = sadd.s32 %s58, 1
    %s60 = scalar_select %p57, %s58, %s59
    %p63 = pneg %p57
    %p64 = scmp.eq.s32.totalorder %s8, 1
    %p65 = por %p63, %p64
    %p66 = scmp.ne.s32.totalorder %s58, %s61
    %p67 = scmp.eq.s32.totalorder %s8, 0
    %p68 = por %p66, %p67
    %p69 = scmp.ne.s32.totalorder %s58, %s61
    %p70 = scmp.eq.s32.totalorder %s13, 1
    %p71 = por %p69, %p70
    %p72 = scmp.ne.s32.totalorder %s61, %s62
    %p73 = scmp.eq.s32.totalorder %s13, 0
    %p74 = por %p72, %p73
    %p75 = scmp.ne.s32.totalorder %s61, %s62
    %p76 = scmp.eq.s32.totalorder %s14, 1
    %p77 = por %p75, %p76
    %p79 = scmp.ne.s32.totalorder %s62, %s78
    %p80 = scmp.eq.s32.totalorder %s14, 0
    %p81 = por %p79, %p80
    %s82 = ssub.s32 %s15, %s27
    %p83 = scmp.eq.s32.totalorder %s82, 0
    %s85 = sadd.s32 %s84, 1
    %s86 = scalar_select %p83, %s84, %s85
    %p89 = pneg %p83
    %p90 = scmp.eq.s32.totalorder %s8, 1
    %p91 = por %p89, %p90
    %p92 = scmp.ne.s32.totalorder %s84, %s87
    %p93 = scmp.eq.s32.totalorder %s8, 0
    %p94 = por %p92, %p93
    %p95 = scmp.ne.s32.totalorder %s84, %s87
    %p96 = scmp.eq.s32.totalorder %s13, 1
    %p97 = por %p95, %p96
    %p98 = scmp.ne.s32.totalorder %s87, %s88
    %p99 = scmp.eq.s32.totalorder %s13, 0
    %p100 = por %p98, %p99
    %p101 = scmp.ne.s32.totalorder %s87, %s88
    %p102 = scmp.eq.s32.totalorder %s14, 1
    %p103 = por %p101, %p102
    %p105 = scmp.ne.s32.totalorder %s88, %s104
    %p106 = scmp.eq.s32.totalorder %s14, 0
    %p107 = por %p105, %p106
    %p108 = scmp.le.s32.totalorder 1, %s8
    %p109 = scmp.lt.s32.totalorder %s8, 3
    %p110 = pnand %p108, %p109
    %p111 = pneg %p110
    // Predicated region
    $region9: #{bottle_stack_forward.23} parent=5 // pred_check
      _
    $region10: #{bottle_stack_forward.23} parent=5 // pred_check_branch
      %113 = sbr.rel (%p110) target = $region12
    $region11: #{bottle_stack_forward.23} parent=5 // pred_region
      %s114 = ssub.s32 %s8, 1
      // Predicated region
      $region13: #{bottle_stack_forward.23} parent=11 // pred_check
        %p115 = pneg %p74
      $region14: #{bottle_stack_forward.23} parent=11 // pred_check_branch
        %117 = sbr.rel (%p115) target = $region16
      $region15: #{bottle_stack_forward.23} parent=11 // pred_region
        %s118 = smul.u32 2, %s18
        %p119 = scmp.lt.s32.totalorder %s118, 1
        %s120 = scalar_select %p119, %s118, 1
        %s121 = smul.addr %s120, 4
        %s122 = scalar_lea.vmem %s1, %s121
        %s123 = smul.u32 2, %s18
      $region16: #{bottle_stack_forward.23} parent=11 // pred_fallthru
        _
    $region12: #{bottle_stack_forward.23} parent=5 // pred_fallthru
      _
    %p124 = scmp.lt.s32.totalorder %s8, 2
    // Predicated region
    $region17: #{bottle_stack_forward.23} parent=5 // pred_check
      %p125 = pneg %p124
    $region18: #{bottle_stack_forward.23} parent=5 // pred_check_branch
      %127 = sbr.rel (%p125) target = $region20
    $region19: #{bottle_stack_forward.23} parent=5 // pred_region
      // Predicated region
      $region21: #{bottle_stack_forward.23} parent=19 // pred_check
        %p128 = pneg %p42
      $region22: #{bottle_stack_forward.23} parent=19 // pred_check_branch
        %130 = sbr.rel (%p128) target = $region24
      $region23: #{bottle_stack_forward.23} parent=19 // pred_region
        %s131 = smul.u32 2, %s15
        %p132 = scmp.lt.s32.totalorder %s131, 3
        %s133 = scalar_select %p132, %s131, 3
        %p134 = scmp.lt.s32.totalorder %s16, 0
        %s135 = scalar_select %p134, %s16, 0
        %s136 = sadd.s32 %s135, %s133
        %s137 = smul.addr %s136, 4
        %s138 = scalar_lea.vmem %s0, %s137
        %s139 = smul.u32 2, %s15
      $region24: #{bottle_stack_forward.23} parent=19 // pred_fallthru
        _
    $region20: #{bottle_stack_forward.23} parent=5 // pred_fallthru
      _
    %p140 = scmp.le.s32.totalorder 1, %s8
    %p141 = scmp.lt.s32.totalorder %s8, 3
    %p142 = pnand %p140, %p141
    %p143 = pneg %p142
    // Predicated region
    $region25: #{bottle_stack_forward.23} parent=5 // pred_check
      _
    $region26: #{bottle_stack_forward.23} parent=5 // pred_check_branch
      %145 = sbr.rel (%p142) target = $region28
    $region27: #{bottle_stack_forward.23} parent=5 // pred_region
      %s146 = ssub.s32 %s8, 1
      %s147 = smul.u32 2, %s17
      %p148 = scmp.lt.s32.totalorder %s147, 3
      %s149 = scalar_select %p148, %s147, 3
      %p150 = scmp.lt.s32.totalorder %s18, 0
      %s151 = scalar_select %p150, %s18, 0
      %s152 = sadd.s32 %s151, %s149
      %s153 = smul.addr %s152, 4
      %s154 = scalar_lea.vmem %s0, %s153
      %p155 = pneg %p48
      %p156 = pneg %p45
      %s157 = smul.u32 2, %s18
      %p158 = scmp.lt.s32.totalorder %s157, 1
      %s159 = scalar_select %p158, %s157, 1
      %s160 = smul.addr %s159, 4
      %s161 = scalar_lea.vmem %s1, %s160
      %p162 = pneg %p74
      %p163 = pneg %p71
      %p164 = pneg %p100
      %p165 = pneg %p97
      %s166 = smul.u32 2, %s17
      %p167 = scmp.lt.s32.totalorder %s166, 3
      %s168 = scalar_select %p167, %s166, 3
      %s169 = smul.addr %s168, 4
      %s170 = scalar_lea.vmem %s2, %s169
      %s171 = smul.u32 2, %s17
      %p172 = scmp.lt.s32.totalorder %s171, 3
      %s173 = scalar_select %p172, %s171, 3
      %p174 = scmp.lt.s32.totalorder %s18, 0
      %s175 = scalar_select %p174, %s18, 0
      %s176 = sadd.s32 %s175, %s173
      %s177 = smul.addr %s176, 4
      %s178 = scalar_lea.vmem %s0, %s177
      %s179 = smul.u32 2, %s17
      %s180 = smul.u32 2, %s18
      %p181 = scmp.lt.s32.totalorder %s180, 1
      %s182 = scalar_select %p181, %s180, 1
      %s183 = smul.addr %s182, 4
      %s184 = scalar_lea.vmem %s1, %s183
      %s185 = smul.u32 2, %s18
      %s186 = smul.u32 2, %s17
      %p187 = scmp.lt.s32.totalorder %s186, 3
      %s188 = scalar_select %p187, %s186, 3
      %s189 = smul.addr %s188, 4
      %s190 = scalar_lea.vmem %s2, %s189
      %s191 = smul.u32 2, %s17
      %p193 = scmp.eq.s32.totalorder %s18, 0
      // Predicated region
      $region29: #{bottle_stack_forward.23} parent=27 // pred_check
        %p194 = pneg %p193
      $region30: #{bottle_stack_forward.23} parent=27 // pred_check_branch
        %196 = sbr.rel (%p194) target = $region32
      $region31: #{bottle_stack_forward.23} parent=27 // pred_region
        %vm197 = vcmask 392192
        %198 = vst.msk [vmem:[#allocation2] sm:$0xff] %vm197, 0.0
        %199 = vst.msk [vmem:[#allocation2 + $0x8] sm:$0xff] %vm197, 0.0
      $region32: #{bottle_stack_forward.23} parent=27 // pred_fallthru
        _
      %v200 = vld [vmem:[%s178] sm:$0xf]
      %v201 = vld [vmem:[%s178 + $0x4] sm:$0xf]
      %v202 = vld [vmem:[#allocation2] sm:$0xff]
      %v203 = vld [vmem:[#allocation2 + $0x8] sm:$0xff]
      %v204 = vld [vmem:[%s184] sm:$0xf]
      %v205 = vld [vmem:[%s184 + $0x4] sm:$0xf]
      %v208 = vunpack.c.l.b16 %v200
      %v209 = vunpack.c.l.b16 %v201
      %v210 = vpack.c.b16 %v209, %v208
      %v213 = vunpack.c.l.b16 %v204
      %v214 = vunpack.c.l.b16 %v205
      %v215 = vpack.c.b16 %v214, %v213
      %vm217 = vcmask 130048
      %v219 = vsel %vm217, %v210, 0
      %221 = vmatprep.subr.bf16.mxu0 0
      %222 = vmatpush1.bf16.msra.mxu0 %v215
      %223 = vmatprep.subr.bf16.mxu0 0
      %224 = vmatpush1.bf16.msra.mxu0 0
      %225 = vmatprep.subr.bf16.mxu0 0
      %226 = vmatpush1.bf16.msra.mxu0 0
      %227 = vmatprep.subr.bf16.mxu0 0
      %228 = vmatpush1.bf16.msra.mxu0 0
      %229 = vmatprep.subr.bf16.mxu0 0
      %230 = vmatpush1.bf16.msra.mxu0 0
      %231 = vmatprep.subr.bf16.mxu0 0
      %232 = vmatpush1.bf16.msra.mxu0 0
      %233 = vmatprep.subr.bf16.mxu0 0
      %234 = vmatpush1.bf16.msra.mxu0 0
      %235 = vmatprep.subr.bf16.mxu0 0
      %236 = vmatpush1.bf16.msra.mxu0 0
      %237 = vmatprep.subr.bf16.mxu0 0
      %238 = vmatpush1.bf16.msra.mxu0 0
      %239 = vmatprep.subr.bf16.mxu0 0
      %240 = vmatpush1.bf16.msra.mxu0 0
      %241 = vmatprep.subr.bf16.mxu0 0
      %242 = vmatpush1.bf16.msra.mxu0 0
      %243 = vmatprep.subr.bf16.mxu0 0
      %244 = vmatpush1.bf16.msra.mxu0 0
      %245 = vmatprep.subr.bf16.mxu0 0
      %246 = vmatpush1.bf16.msra.mxu0 0
      %247 = vmatprep.subr.bf16.mxu0 0
      %248 = vmatpush1.bf16.msra.mxu0 0
      %249 = vmatprep.subr.bf16.mxu0 0
      %250 = vmatpush1.bf16.msra.mxu0 0
      %251 = vmatprep.subr.bf16.mxu0 0
      %252 = vmatpush1.bf16.msra.mxu0 0
      %253 = vmatprep.mubr.bf16.mxu0 0
      %254 = vmatmul.mubr.bf16.gmra.mrb[0].mxu0 %v219
      %v255 = vpop.f32.mrb[0].mxu0
      %v256 = vadd.f32 0.0, %v255
      %v257 = vpop.f32.mrb[0].mxu0
      %v258 = vpop.f32.mrb[0].mxu0
      %v259 = vadd.f32 0.0, %v258
      %v260 = vpop.f32.mrb[0].mxu0
      %261 = vdwg.mxu0
      %v262 = vadd.f32 %v202, %v256
      %v263 = vadd.f32 %v203, %v259
      %vm264 = vcmask 392192
      %265 = vst.msk [vmem:[#allocation2] sm:$0xff] %vm264, %v262
      %266 = vst.msk [vmem:[#allocation2 + $0x8] sm:$0xff] %vm264, %v263
      // Predicated region
      $region33: #{bottle_stack_forward.23} parent=27 // pred_check
        %p267 = pneg %p193
      $region34: #{bottle_stack_forward.23} parent=27 // pred_check_branch
        %269 = sbr.rel (%p267) target = $region36
      $region35: #{bottle_stack_forward.23} parent=27 // pred_region
        %v270 = vld [vmem:[#allocation2] sm:$0xff]
        %v271 = vld [vmem:[#allocation2 + $0x8] sm:$0xff]
        %v272 = vpack.c.bf16 %v271, %v270
        %v274 = vunpack.c.l.b16 %v272
        %v275 = vunpack.c.h.b16 %v272
        %v276 = vpack.c.b16 %v274, %v274
        %v277 = vpack.c.b16 %v275, %v275
        %vm280 = vcmask 388096
        %281 = vst.msk [vmem:[%s190] sm:$0xf] %vm280, %v276
        %282 = vst.msk [vmem:[%s190 + $0x4] sm:$0xf] %vm280, %v277
      $region36: #{bottle_stack_forward.23} parent=27 // pred_fallthru
        _
      %s283 = smul.u32 2, %s17
      %p284 = scmp.lt.s32.totalorder %s283, 3
      %s285 = scalar_select %p284, %s283, 3
      %s286 = smul.addr %s285, 4
      %s287 = scalar_lea.vmem %s2, %s286
      // Predicated region
      $region37: #{bottle_stack_forward.23} parent=27 // pred_check
        %p288 = pneg %p97
      $region38: #{bottle_stack_forward.23} parent=27 // pred_check_branch
        %290 = sbr.rel (%p288) target = $region40
      $region39: #{bottle_stack_forward.23} parent=27 // pred_region
        %s291 = smul.u32 2, %s17
      $region40: #{bottle_stack_forward.23} parent=27 // pred_fallthru
        _
    $region28: #{bottle_stack_forward.23} parent=5 // pred_fallthru
      _
    %p292 = scmp.le.s32.totalorder 2, %s8
    // Predicated region
    $region41: #{bottle_stack_forward.23} parent=5 // pred_check
      %p293 = pneg %p292
    $region42: #{bottle_stack_forward.23} parent=5 // pred_check_branch
      %295 = sbr.rel (%p293) target = $region44
    $region43: #{bottle_stack_forward.23} parent=5 // pred_region
      %s296 = ssub.s32 %s8, 2
      // Predicated region
      $region45: #{bottle_stack_forward.23} parent=43 // pred_check
        %p297 = pneg %p103
      $region46: #{bottle_stack_forward.23} parent=43 // pred_check_branch
        %299 = sbr.rel (%p297) target = $region48
      $region47: #{bottle_stack_forward.23} parent=43 // pred_region
        %s300 = smul.u32 2, %s19
        %p301 = scmp.lt.s32.totalorder %s300, 3
        %s302 = scalar_select %p301, %s300, 3
        %s303 = smul.addr %s302, 4
        %s304 = scalar_lea.vmem %s2, %s303
      $region48: #{bottle_stack_forward.23} parent=43 // pred_fallthru
        _
    $region44: #{bottle_stack_forward.23} parent=5 // pred_fallthru
      _
  $region6: #{bottle_stack_forward.23} parent=0 // loop_footer
    %s12 = sadd.s32 1, %s8
  $region7: #{bottle_stack_forward.23} parent=0 // loop_footer_branch
    %7 = sbr.rel target = $region3
  $region8: #{bottle_stack_forward.23} parent=0 // loop_exit
    _

// kernel: bottle_stack_forward.24
$region0: #{bottle_stack_forward.24}
  #allocation0 [shape = 'u32[]', space=smem, size = 0x4, offset = 0x4, fixed_abs, tag = 'smem constant byte address 0x4 - core index']
  #allocation1 [shape = 'u32[144,128]{1,0:T(1,128)}', space=vmem, size = 0x12000, scoped, tag = 'internal scratch']
  %s0 = inlined_call_operand.vmem [shape: bf16[2,2,16,8], index: 0, kind: input, shape index: {}]
  %s1 = inlined_call_operand.vmem [shape: bf16[2,2,16,8], index: 1, kind: input, shape index: {}]
  %s2 = inlined_call_operand.vmem [shape: bf16[2,2,16,8], index: 2, kind: input, shape index: {}]
  %s3 = inlined_call_operand.vmem [shape: bf16[2,2,16,16], index: 3, kind: input, shape index: {}]
  %s4 = inlined_call_operand.vmem [shape: bf16[2,2,16,8], index: 4, kind: output, shape index: {}]
  %s5 = sld [smem:[#allocation0]]
  $region49: #{bottle_stack_forward.24} parent=0
    _
  %s7 = ssub.s32 1, %s5
  %s8 = scalar_select 0, %s7, %s5
  loop: start=0, step=1, limit=6
  $region2: #{bottle_stack_forward.24} parent=0 // loop_pre_header
    _
  $region3: #{bottle_stack_forward.24} parent=0 // loop_header
    %s10 = sphi 0, %s14
    %p11 = scmp.ge.s32.totalorder %s10, 6
    %s17 = sphi 0, %s29
    %s18 = sphi 0, %s25
    %s19 = sphi 0, %s17
    %s20 = sphi 0, %s18
    %s21 = sphi 0, %s19
    %s22 = sphi 0, %s20
    %s34 = sphi 0, %s36
    %s37 = sphi 0, %s34
    %s38 = sphi 0, %s37
    %s54 = sphi 0, %s38
    %s62 = sphi 0, %s64
    %s65 = sphi 0, %s62
    %s66 = sphi 0, %s65
    %s82 = sphi 0, %s66
    %s90 = sphi 0, %s92
    %s93 = sphi 0, %s90
    %s94 = sphi 0, %s93
    %s110 = sphi 0, %s94
    %s118 = sphi 0, %s120
    %s121 = sphi 0, %s118
    %s122 = sphi 0, %s121
    %s138 = sphi 0, %s122
    %s146 = sphi 0, %s148
    %s149 = sphi 0, %s146
    %s150 = sphi 0, %s149
    %s166 = sphi 0, %s150
  $region4: #{bottle_stack_forward.24} parent=0 // loop_header_branch
    %13 = sbr.rel (%p11) target = $region8
  $region5: #{bottle_stack_forward.24} parent=0 // loop_body
    %s15 = ssub.s32 %s10, 1
    %s16 = ssub.s32 %s10, 2
    %s23 = sadd.s32 1, %s18
    %p24 = scmp.ge.s32.totalorder %s23, 2
    %s25 = scalar_select %p24, 0, %s23
    %s26 = sadd.s32 1, %s17
    %s27 = scalar_select %p24, %s26, %s17
    %p28 = scmp.ge.s32.totalorder %s27, 2
    %s29 = scalar_select %p28, 0, %s27
    %s30 = ssub.s32 %s17, %s29
    %s31 = ssub.s32 %s18, %s25
    %s32 = sor.u32 %s30, %s31
    %p33 = scmp.eq.s32.totalorder %s32, 0
    %s35 = sadd.s32 %s34, 1
    %s36 = scalar_select %p33, %s34, %s35
    %p39 = pneg %p33
    %p40 = scmp.eq.s32.totalorder %s10, 3
    %p41 = por %p39, %p40
    %p42 = scmp.ne.s32.totalorder %s34, %s37
    %p43 = scmp.eq.s32.totalorder %s10, 0
    %p44 = por %p42, %p43
    %p45 = scmp.ne.s32.totalorder %s34, %s37
    %p46 = scmp.eq.s32.totalorder %s15, 3
    %p47 = por %p45, %p46
    %p48 = scmp.ne.s32.totalorder %s37, %s38
    %p49 = scmp.eq.s32.totalorder %s15, 0
    %p50 = por %p48, %p49
    %p51 = scmp.ne.s32.totalorder %s37, %s38
    %p52 = scmp.eq.s32.totalorder %s16, 3
    %p53 = por %p51, %p52
    %p55 = scmp.ne.s32.totalorder %s38, %s54
    %p56 = scmp.eq.s32.totalorder %s16, 0
    %p57 = por %p55, %p56
    %s58 = ssub.s32 %s17, %s29
    %s59 = ssub.s32 %s18, %s25
    %s60 = sor.u32 %s58, %s59
    %p61 = scmp.eq.s32.totalorder %s60, 0
    %s63 = sadd.s32 %s62, 1
    %s64 = scalar_select %p61, %s62, %s63
    %p67 = pneg %p61
    %p68 = scmp.eq.s32.totalorder %s10, 3
    %p69 = por %p67, %p68
    %p70 = scmp.ne.s32.totalorder %s62, %s65
    %p71 = scmp.eq.s32.totalorder %s10, 0
    %p72 = por %p70, %p71
    %p73 = scmp.ne.s32.totalorder %s62, %s65
    %p74 = scmp.eq.s32.totalorder %s15, 3
    %p75 = por %p73, %p74
    %p76 = scmp.ne.s32.totalorder %s65, %s66
    %p77 = scmp.eq.s32.totalorder %s15, 0
    %p78 = por %p76, %p77
    %p79 = scmp.ne.s32.totalorder %s65, %s66
    %p80 = scmp.eq.s32.totalorder %s16, 3
    %p81 = por %p79, %p80
    %p83 = scmp.ne.s32.totalorder %s66, %s82
    %p84 = scmp.eq.s32.totalorder %s16, 0
    %p85 = por %p83, %p84
    %s86 = ssub.s32 %s17, %s29
    %s87 = ssub.s32 %s18, %s25
    %s88 = sor.u32 %s86, %s87
    %p89 = scmp.eq.s32.totalorder %s88, 0
    %s91 = sadd.s32 %s90, 1
    %s92 = scalar_select %p89, %s90, %s91
    %p95 = pneg %p89
    %p96 = scmp.eq.s32.totalorder %s10, 3
    %p97 = por %p95, %p96
    %p98 = scmp.ne.s32.totalorder %s90, %s93
    %p99 = scmp.eq.s32.totalorder %s10, 0
    %p100 = por %p98, %p99
    %p101 = scmp.ne.s32.totalorder %s90, %s93
    %p102 = scmp.eq.s32.totalorder %s15, 3
    %p103 = por %p101, %p102
    %p104 = scmp.ne.s32.totalorder %s93, %s94
    %p105 = scmp.eq.s32.totalorder %s15, 0
    %p106 = por %p104, %p105
    %p107 = scmp.ne.s32.totalorder %s93, %s94
    %p108 = scmp.eq.s32.totalorder %s16, 3
    %p109 = por %p107, %p108
    %p111 = scmp.ne.s32.totalorder %s94, %s110
    %p112 = scmp.eq.s32.totalorder %s16, 0
    %p113 = por %p111, %p112
    %s114 = ssub.s32 %s17, %s29
    %s115 = ssub.s32 %s18, %s25
    %s116 = sor.u32 %s114, %s115
    %p117 = scmp.eq.s32.totalorder %s116, 0
    %s119 = sadd.s32 %s118, 1
    %s120 = scalar_select %p117, %s118, %s119
    %p123 = pneg %p117
    %p124 = scmp.eq.s32.totalorder %s10, 3
    %p125 = por %p123, %p124
    %p126 = scmp.ne.s32.totalorder %s118, %s121
    %p127 = scmp.eq.s32.totalorder %s10, 0
    %p128 = por %p126, %p127
    %p129 = scmp.ne.s32.totalorder %s118, %s121
    %p130 = scmp.eq.s32.totalorder %s15, 3
    %p131 = por %p129, %p130
    %p132 = scmp.ne.s32.totalorder %s121, %s122
    %p133 = scmp.eq.s32.totalorder %s15, 0
    %p134 = por %p132, %p133
    %p135 = scmp.ne.s32.totalorder %s121, %s122
    %p136 = scmp.eq.s32.totalorder %s16, 3
    %p137 = por %p135, %p136
    %p139 = scmp.ne.s32.totalorder %s122, %s138
    %p140 = scmp.eq.s32.totalorder %s16, 0
    %p141 = por %p139, %p140
    %s142 = ssub.s32 %s17, %s29
    %s143 = ssub.s32 %s18, %s25
    %s144 = sor.u32 %s142, %s143
    %p145 = scmp.eq.s32.totalorder %s144, 0
    %s147 = sadd.s32 %s146, 1
    %s148 = scalar_select %p145, %s146, %s147
    %p151 = pneg %p145
    %p152 = scmp.eq.s32.totalorder %s10, 3
    %p153 = por %p151, %p152
    %p154 = scmp.ne.s32.totalorder %s146, %s149
    %p155 = scmp.eq.s32.totalorder %s10, 0
    %p156 = por %p154, %p155
    %p157 = scmp.ne.s32.totalorder %s146, %s149
    %p158 = scmp.eq.s32.totalorder %s15, 3
    %p159 = por %p157, %p158
    %p160 = scmp.ne.s32.totalorder %s149, %s150
    %p161 = scmp.eq.s32.totalorder %s15, 0
    %p162 = por %p160, %p161
    %p163 = scmp.ne.s32.totalorder %s149, %s150
    %p164 = scmp.eq.s32.totalorder %s16, 3
    %p165 = por %p163, %p164
    %p167 = scmp.ne.s32.totalorder %s150, %s166
    %p168 = scmp.eq.s32.totalorder %s16, 0
    %p169 = por %p167, %p168
    %p170 = scmp.le.s32.totalorder 1, %s10
    %p171 = scmp.lt.s32.totalorder %s10, 5
    %p172 = pnand %p170, %p171
    %p173 = pneg %p172
    // Predicated region
    $region9: #{bottle_stack_forward.24} parent=5 // pred_check
      _
    $region10: #{bottle_stack_forward.24} parent=5 // pred_check_branch
      %175 = sbr.rel (%p172) target = $region12
    $region11: #{bottle_stack_forward.24} parent=5 // pred_region
      %s176 = ssub.s32 %s10, 1
    $region12: #{bottle_stack_forward.24} parent=5 // pred_fallthru
      _
    %p177 = scmp.lt.s32.totalorder %s10, 4
    // Predicated region
    $region13: #{bottle_stack_forward.24} parent=5 // pred_check
      %p178 = pneg %p177
    $region14: #{bottle_stack_forward.24} parent=5 // pred_check_branch
      %180 = sbr.rel (%p178) target = $region16
    $region15: #{bottle_stack_forward.24} parent=5 // pred_region
      // Predicated region
      $region17: #{bottle_stack_forward.24} parent=15 // pred_check
        %p181 = pneg %p44
      $region18: #{bottle_stack_forward.24} parent=15 // pred_check_branch
        %183 = sbr.rel (%p181) target = $region20
      $region19: #{bottle_stack_forward.24} parent=15 // pred_region
        %p184 = scmp.lt.s32.totalorder %s17, 1
        %s185 = scalar_select %p184, %s17, 1
        %p186 = scmp.lt.s32.totalorder %s18, 1
        %s187 = scalar_select %p186, %s18, 1
        %s188 = smul.addr %s187, 2
        %s189 = smul.addr %s185, 4
        %s190 = sadd.s32 %s188, %s189
        %s191 = smul.addr %s190, 4
        %s192 = scalar_lea.vmem %s0, %s191
      $region20: #{bottle_stack_forward.24} parent=15 // pred_fallthru
        _
      // Predicated region
      $region21: #{bottle_stack_forward.24} parent=15 // pred_check
        %p193 = pneg %p72
      $region22: #{bottle_stack_forward.24} parent=15 // pred_check_branch
        %195 = sbr.rel (%p193) target = $region24
      $region23: #{bottle_stack_forward.24} parent=15 // pred_region
        %p196 = scmp.lt.s32.totalorder %s17, 1
        %s197 = scalar_select %p196, %s17, 1
        %p198 = scmp.lt.s32.totalorder %s18, 1
        %s199 = scalar_select %p198, %s18, 1
        %s200 = smul.addr %s199, 2
        %s201 = smul.addr %s197, 4
        %s202 = sadd.s32 %s200, %s201
        %s203 = smul.addr %s202, 4
        %s204 = scalar_lea.vmem %s1, %s203
      $region24: #{bottle_stack_forward.24} parent=15 // pred_fallthru
        _
      // Predicated region
      $region25: #{bottle_stack_forward.24} parent=15 // pred_check
        %p205 = pneg %p100
      $region26: #{bottle_stack_forward.24} parent=15 // pred_check_branch
        %207 = sbr.rel (%p205) target = $region28
      $region27: #{bottle_stack_forward.24} parent=15 // pred_region
        %p208 = scmp.lt.s32.totalorder %s17, 1
        %s209 = scalar_select %p208, %s17, 1
        %p210 = scmp.lt.s32.totalorder %s18, 1
        %s211 = scalar_select %p210, %s18, 1
        %s212 = smul.addr %s211, 2
        %s213 = smul.addr %s209, 4
        %s214 = sadd.s32 %s212, %s213
        %s215 = smul.addr %s214, 4
        %s216 = scalar_lea.vmem %s2, %s215
      $region28: #{bottle_stack_forward.24} parent=15 // pred_fallthru
        _
      // Predicated region
      $region29: #{bottle_stack_forward.24} parent=15 // pred_check
        %p217 = pneg %p128
      $region30: #{bottle_stack_forward.24} parent=15 // pred_check_branch
        %219 = sbr.rel (%p217) target = $region32
      $region31: #{bottle_stack_forward.24} parent=15 // pred_region
        %p220 = scmp.lt.s32.totalorder %s17, 1
        %s221 = scalar_select %p220, %s17, 1
        %p222 = scmp.lt.s32.totalorder %s18, 1
        %s223 = scalar_select %p222, %s18, 1
        %s224 = smul.addr %s223, 2
        %s225 = smul.addr %s221, 4
        %s226 = sadd.s32 %s224, %s225
        %s227 = smul.addr %s226, 4
        %s228 = scalar_lea.vmem %s3, %s227
      $region32: #{bottle_stack_forward.24} parent=15 // pred_fallthru
        _
    $region16: #{bottle_stack_forward.24} parent=5 // pred_fallthru
      _
    %p229 = scmp.le.s32.totalorder 1, %s10
    %p230 = scmp.lt.s32.totalorder %s10, 5
    %p231 = pnand %p229, %p230
    %p232 = pneg %p231
    // Predicated region
    $region33: #{bottle_stack_forward.24} parent=5 // pred_check
      _
    $region34: #{bottle_stack_forward.24} parent=5 // pred_check_branch
      %234 = sbr.rel (%p231) target = $region36
    $region35: #{bottle_stack_forward.24} parent=5 // pred_region
      %s235 = ssub.s32 %s10, 1
      %p236 = scmp.lt.s32.totalorder %s19, 1
      %s237 = scalar_select %p236, %s19, 1
      %p238 = scmp.lt.s32.totalorder %s20, 1
      %s239 = scalar_select %p238, %s20, 1
      %s240 = smul.addr %s239, 2
      %s241 = smul.addr %s237, 4
      %s242 = sadd.s32 %s240, %s241
      %s243 = smul.addr %s242, 4
      %s244 = scalar_lea.vmem %s0, %s243
      %p245 = pneg %p50
      %p246 = pneg %p47
      %p247 = scmp.lt.s32.totalorder %s19, 1
      %s248 = scalar_select %p247, %s19, 1
      %p249 = scmp.lt.s32.totalorder %s20, 1
      %s250 = scalar_select %p249, %s20, 1
      %s251 = smul.addr %s250, 2
      %s252 = smul.addr %s248, 4
      %s253 = sadd.s32 %s251, %s252
      %s254 = smul.addr %s253, 4
      %s255 = scalar_lea.vmem %s1, %s254
      %p256 = pneg %p78
      %p257 = pneg %p75
      %p258 = scmp.lt.s32.totalorder %s19, 1
      %s259 = scalar_select %p258, %s19, 1
      %p260 = scmp.lt.s32.totalorder %s20, 1
      %s261 = scalar_select %p260, %s20, 1
      %s262 = smul.addr %s261, 2
      %s263 = smul.addr %s259, 4
      %s264 = sadd.s32 %s262, %s263
      %s265 = smul.addr %s264, 4
      %s266 = scalar_lea.vmem %s2, %s265
      %p267 = pneg %p106
      %p268 = pneg %p103
      %p269 = scmp.lt.s32.totalorder %s19, 1
      %s270 = scalar_select %p269, %s19, 1
      %p271 = scmp.lt.s32.totalorder %s20, 1
      %s272 = scalar_select %p271, %s20, 1
      %s273 = smul.addr %s272, 2
      %s274 = smul.addr %s270, 4
      %s275 = sadd.s32 %s273, %s274
      %s276 = smul.addr %s275, 4
      %s277 = scalar_lea.vmem %s3, %s276
      %p278 = pneg %p134
      %p279 = pneg %p131
      %p280 = pneg %p162
      %p281 = pneg %p159
      %p282 = scmp.lt.s32.totalorder %s19, 1
      %s283 = scalar_select %p282, %s19, 1
      %p284 = scmp.lt.s32.totalorder %s20, 1
      %s285 = scalar_select %p284, %s20, 1
      %s286 = smul.addr %s285, 2
      %s287 = smul.addr %s283, 4
      %s288 = sadd.s32 %s286, %s287
      %s289 = smul.addr %s288, 4
      %s290 = scalar_lea.vmem %s4, %s289
      %p291 = scmp.lt.s32.totalorder %s19, 1
      %s292 = scalar_select %p291, %s19, 1
      %p293 = scmp.lt.s32.totalorder %s20, 1
      %s294 = scalar_select %p293, %s20, 1
      %s295 = smul.addr %s294, 2
      %s296 = smul.addr %s292, 4
      %s297 = sadd.s32 %s295, %s296
      %s298 = smul.addr %s297, 4
      %s299 = scalar_lea.vmem %s0, %s298
      %p300 = scmp.lt.s32.totalorder %s19, 1
      %s301 = scalar_select %p300, %s19, 1
      %p302 = scmp.lt.s32.totalorder %s20, 1
      %s303 = scalar_select %p302, %s20, 1
      %s304 = smul.addr %s303, 2
      %s305 = smul.addr %s301, 4
      %s306 = sadd.s32 %s304, %s305
      %s307 = smul.addr %s306, 4
      %s308 = scalar_lea.vmem %s1, %s307
      %p309 = scmp.lt.s32.totalorder %s19, 1
      %s310 = scalar_select %p309, %s19, 1
      %p311 = scmp.lt.s32.totalorder %s20, 1
      %s312 = scalar_select %p311, %s20, 1
      %s313 = smul.addr %s312, 2
      %s314 = smul.addr %s310, 4
      %s315 = sadd.s32 %s313, %s314
      %s316 = smul.addr %s315, 4
      %s317 = scalar_lea.vmem %s2, %s316
      %p318 = scmp.lt.s32.totalorder %s19, 1
      %s319 = scalar_select %p318, %s19, 1
      %p320 = scmp.lt.s32.totalorder %s20, 1
      %s321 = scalar_select %p320, %s20, 1
      %s322 = smul.addr %s321, 2
      %s323 = smul.addr %s319, 4
      %s324 = sadd.s32 %s322, %s323
      %s325 = smul.addr %s324, 4
      %s326 = scalar_lea.vmem %s3, %s325
      %p327 = scmp.lt.s32.totalorder %s19, 1
      %s328 = scalar_select %p327, %s19, 1
      %p329 = scmp.lt.s32.totalorder %s20, 1
      %s330 = scalar_select %p329, %s20, 1
      %s331 = smul.addr %s330, 2
      %s332 = smul.addr %s328, 4
      %s333 = sadd.s32 %s331, %s332
      %s334 = smul.addr %s333, 4
      %s335 = scalar_lea.vmem %s4, %s334
      %v337 = vld [vmem:[%s299] sm:$0xf]
      %v338 = vld [vmem:[%s299 + $0x4] sm:$0xf]
      %v339 = vld [vmem:[%s308] sm:$0xf]
      %v340 = vld [vmem:[%s308 + $0x4] sm:$0xf]
      %v341 = vld [vmem:[%s317] sm:$0xf]
      %v342 = vld [vmem:[%s317 + $0x4] sm:$0xf]
      %v345 = vunpack.c.l.b16 %v337
      %v346 = vunpack.c.l.b16 %v338
      %v347 = vpack.c.b16 %v346, %v345
      %v350 = vunpack.c.l.b16 %v339
      %v351 = vunpack.c.l.b16 %v340
      %v352 = vpack.c.b16 %v351, %v350
      %vm353 = vcmask 64512
      %v355 = vsel %vm353, %v347, 0
      %v358 = vsel %vm353, %v352, 0
      %360 = vmatprep.subr.bf16.mxu0 0
      %361 = vmatpush1.bf16.xpose.msra.mxu0 %v358
      %362 = vmatprep.subr.bf16.mxu0 0
      %363 = vmatpush1.bf16.xpose.msra.mxu0 0
      %364 = vmatprep.subr.bf16.mxu0 0
      %365 = vmatpush1.bf16.xpose.msra.mxu0 0
      %366 = vmatprep.subr.bf16.mxu0 0
      %367 = vmatpush1.bf16.xpose.msra.mxu0 0
      %368 = vmatprep.subr.bf16.mxu0 0
      %369 = vmatpush1.bf16.xpose.msra.mxu0 0
      %370 = vmatprep.subr.bf16.mxu0 0
      %371 = vmatpush1.bf16.xpose.msra.mxu0 0
      %372 = vmatprep.subr.bf16.mxu0 0
      %373 = vmatpush1.bf16.xpose.msra.mxu0 0
      %374 = vmatprep.subr.bf16.mxu0 0
      %375 = vmatpush1.bf16.xpose.msra.mxu0 0
      %376 = vmatprep.subr.bf16.mxu0 0
      %377 = vmatpush1.bf16.xpose.msra.mxu0 0
      %378 = vmatprep.subr.bf16.mxu0 0
      %379 = vmatpush1.bf16.xpose.msra.mxu0 0
      %380 = vmatprep.subr.bf16.mxu0 0
      %381 = vmatpush1.bf16.xpose.msra.mxu0 0
      %382 = vmatprep.subr.bf16.mxu0 0
      %383 = vmatpush1.bf16.xpose.msra.mxu0 0
      %384 = vmatprep.subr.bf16.mxu0 0
      %385 = vmatpush1.bf16.xpose.msra.mxu0 0
      %386 = vmatprep.subr.bf16.mxu0 0
      %387 = vmatpush1.bf16.xpose.msra.mxu0 0
      %388 = vmatprep.subr.bf16.mxu0 0
      %389 = vmatpush1.bf16.xpose.msra.mxu0 0
      %390 = vmatprep.subr.bf16.mxu0 0
      %391 = vmatpush1.bf16.xpose.msra.mxu0 0
      %392 = vmatprep.mubr.bf16.mxu0 0
      %393 = vmatmul.mubr.bf16.gmra.mrb[0].mxu0 %v355
      %v394 = vpop.f32.mrb[0].mxu0
      %v395 = vadd.f32 0.0, %v394
      %v396 = vpop.f32.mrb[0].mxu0
      %v397 = vpop.f32.mrb[0].mxu0
      %v398 = vadd.f32 0.0, %v397
      %v399 = vpop.f32.mrb[0].mxu0
      %400 = vdwg.mxu0
      %v401 = vmul.f32 %v395, 0.35355338
      %v402 = vmul.f32 %v398, 0.35355338
      %v403 = vld [vmem:[%s326] sm:$0xf]
      %v404 = vld [vmem:[%s326 + $0x4] sm:$0xf]
      %v405 = vunpack.c.l.bf16 %v403
      %v406 = vunpack.c.l.bf16 %v404
      %v407 = vadd.f32 %v401, %v405
      %v408 = vadd.f32 %v402, %v406
      %vm409 = vcmask 130048
      %v410 = vsel %vm409, %v407, -inf
      %411 = vmax.xlane.f32.xlu0 %v410
      %v412 = vpop.xlane.xlu0 %411
      %v413 = vsel %vm409, %v408, -inf
      %414 = vmax.xlane.f32.xlu0 %v413
      %v415 = vpop.xlane.xlu0 %414
      %v416 = vsub.f32 %v407, %v412
      %v417 = vsub.f32 %v408, %v415
      %v418 = vmul.f32 %v416, 1.442695
      %v419 = vpow.pop %v418
      %v420 = vmul.f32 %v417, 1.442695
      %v421 = vpow.pop %v420
      %v422 = vsel %vm409, %v419, 0.0
      %423 = vadd.xlane.f32.xlu0 %v422
      %v424 = vpop.xlane.xlu0 %423
      %v425 = vsel %vm409, %v421, 0.0
      %426 = vadd.xlane.f32.xlu0 %v425
      %v427 = vpop.xlane.xlu0 %426
      %v428 = vrcp.pop %v424
      %v429 = vrcp.pop %v427
      %v430 = vmul.f32 %v419, %v428
      %v431 = vmul.f32 %v421, %v429
      %v432 = vpack.c.bf16 %v431, %v430
      %v435 = vunpack.c.l.b16 %v341
      %v436 = vunpack.c.l.b16 %v342
      %v437 = vpack.c.b16 %v436, %v435
      %v440 = vsel %vm409, %v432, 0
      %442 = vmatprep.subr.bf16.mxu0 0
      %443 = vmatpush1.bf16.msra.mxu0 %v437
      %444 = vmatprep.subr.bf16.mxu0 0
      %445 = vmatpush1.bf16.msra.mxu0 0
      %446 = vmatprep.subr.bf16.mxu0 0
      %447 = vmatpush1.bf16.msra.mxu0 0
      %448 = vmatprep.subr.bf16.mxu0 0
      %449 = vmatpush1.bf16.msra.mxu0 0
      %450 = vmatprep.subr.bf16.mxu0 0
      %451 = vmatpush1.bf16.msra.mxu0 0
      %452 = vmatprep.subr.bf16.mxu0 0
      %453 = vmatpush1.bf16.msra.mxu0 0
      %454 = vmatprep.subr.bf16.mxu0 0
      %455 = vmatpush1.bf16.msra.mxu0 0
      %456 = vmatprep.subr.bf16.mxu0 0
      %457 = vmatpush1.bf16.msra.mxu0 0
      %458 = vmatprep.subr.bf16.mxu0 0
      %459 = vmatpush1.bf16.msra.mxu0 0
      %460 = vmatprep.subr.bf16.mxu0 0
      %461 = vmatpush1.bf16.msra.mxu0 0
      %462 = vmatprep.subr.bf16.mxu0 0
      %463 = vmatpush1.bf16.msra.mxu0 0
      %464 = vmatprep.subr.bf16.mxu0 0
      %465 = vmatpush1.bf16.msra.mxu0 0
      %466 = vmatprep.subr.bf16.mxu0 0
      %467 = vmatpush1.bf16.msra.mxu0 0
      %468 = vmatprep.subr.bf16.mxu0 0
      %469 = vmatpush1.bf16.msra.mxu0 0
      %470 = vmatprep.subr.bf16.mxu0 0
      %471 = vmatpush1.bf16.msra.mxu0 0
      %472 = vmatprep.subr.bf16.mxu0 0
      %473 = vmatpush1.bf16.msra.mxu0 0
      %474 = vmatprep.mubr.bf16.mxu0 0
      %475 = vmatmul.mubr.bf16.gmra.mrb[0].mxu0 %v440
      %v476 = vpop.f32.mrb[0].mxu0
      %v477 = vadd.f32 0.0, %v476
      %v478 = vpop.f32.mrb[0].mxu0
      %v479 = vpop.f32.mrb[0].mxu0
      %v480 = vadd.f32 0.0, %v479
      %v481 = vpop.f32.mrb[0].mxu0
      %482 = vdwg.mxu0
      %v483 = vpack.c.bf16 %v480, %v477
      %v485 = vunpack.c.l.b16 %v483
      %v486 = vunpack.c.h.b16 %v483
      %v487 = vpack.c.b16 %v485, %v485
      %v488 = vpack.c.b16 %v486, %v486
      %vm491 = vcmask 60416
      %492 = vst.msk [vmem:[%s335] sm:$0xf] %vm491, %v487
      %493 = vst.msk [vmem:[%s335 + $0x4] sm:$0xf] %vm491, %v488
      %p494 = scmp.lt.s32.totalorder %s19, 1
      %s495 = scalar_select %p494, %s19, 1
      %p496 = scmp.lt.s32.totalorder %s20, 1
      %s497 = scalar_select %p496, %s20, 1
      %s498 = smul.addr %s497, 2
      %s499 = smul.addr %s495, 4
      %s500 = sadd.s32 %s498, %s499
      %s501 = smul.addr %s500, 4
      %s502 = scalar_lea.vmem %s4, %s501
      // Predicated region
      $region37: #{bottle_stack_forward.24} parent=35 // pred_check
        %p503 = pneg %p159
      $region38: #{bottle_stack_forward.24} parent=35 // pred_check_branch
        %505 = sbr.rel (%p503) target = $region40
      $region39: #{bottle_stack_forward.24} parent=35 // pred_region
        _
      $region40: #{bottle_stack_forward.24} parent=35 // pred_fallthru
        _
    $region36: #{bottle_stack_forward.24} parent=5 // pred_fallthru
      _
    %p506 = scmp.le.s32.totalorder 2, %s10
    // Predicated region
    $region41: #{bottle_stack_forward.24} parent=5 // pred_check
      %p507 = pneg %p506
    $region42: #{bottle_stack_forward.24} parent=5 // pred_check_branch
      %509 = sbr.rel (%p507) target = $region44
    $region43: #{bottle_stack_forward.24} parent=5 // pred_region
      %s510 = ssub.s32 %s10, 2
      // Predicated region
      $region45: #{bottle_stack_forward.24} parent=43 // pred_check
        %p511 = pneg %p165
      $region46: #{bottle_stack_forward.24} parent=43 // pred_check_branch
        %513 = sbr.rel (%p511) target = $region48
      $region47: #{bottle_stack_forward.24} parent=43 // pred_region
        %p514 = scmp.lt.s32.totalorder %s21, 1
        %s515 = scalar_select %p514, %s21, 1
        %p516 = scmp.lt.s32.totalorder %s22, 1
        %s517 = scalar_select %p516, %s22, 1
        %s518 = smul.addr %s517, 2
        %s519 = smul.addr %s515, 4
        %s520 = sadd.s32 %s518, %s519
        %s521 = smul.addr %s520, 4
        %s522 = scalar_lea.vmem %s4, %s521
      $region48: #{bottle_stack_forward.24} parent=43 // pred_fallthru
        _
    $region44: #{bottle_stack_forward.24} parent=5 // pred_fallthru
      _
  $region6: #{bottle_stack_forward.24} parent=0 // loop_footer
    %s14 = sadd.s32 1, %s10
  $region7: #{bottle_stack_forward.24} parent=0 // loop_footer_branch
    %9 = sbr.rel target = $region3
  $region8: #{bottle_stack_forward.24} parent=0 // loop_exit
    _

</llo_original>
